<compile_context>
chip_gen: v7x
topology: tpu7x:2x2x1
jax: 0.10.0
libtpu: 0.0.40
codegen_flags: <defaults>
</compile_context>

<pallas_src>
import jax
import jax.numpy as jnp
from jax import lax
from jax.experimental import pallas as pl
from jax.experimental.pallas import tpu as pltpu


def _fused_linear_relu_maxpool_kernel(x_ref, w_ref, b_ref, o_ref):
    # x_ref: (1, mb, K) bf16   w_ref: (N, K) bf16 (native torch Linear layout)
    # b_ref: (1, N) f32        o_ref: (1, mb//2, N//2) f32
    x2 = x_ref[0]                      # (mb, K) bf16
    w = w_ref[...]                     # (N, K)  bf16

    # Linear over the last dim: x2 @ w.T, contracting K with K.
    # bf16 operands, f32 MXU accumulation (transposed-RHS MXU path, no XLU
    # transpose of the 12288-wide weight).
    acc = lax.dot_general(
        x2, w, (((1,), (1,)), ((), ())), preferred_element_type=jnp.float32
    )                                                               # (mb, N) f32
    a = jnp.maximum(acc + b_ref[...], 0.0)                          # bias + ReLU

    M, N = a.shape
    MP, NP = M // 2, N // 2

    # --- MaxPool2d(2,2): pool over rows (H dim, mapped to sublanes) ---
    ri = lax.broadcasted_iota(jnp.int32, (MP, M), 0)
    ci = lax.broadcasted_iota(jnp.int32, (MP, M), 1)
    sel_r_even = (ci == 2 * ri).astype(jnp.float32)                 # rows 0,2,4,...
    sel_r_odd = (ci == 2 * ri + 1).astype(jnp.float32)              # rows 1,3,5,...
    rows = jnp.maximum(
        jnp.dot(sel_r_even, a, preferred_element_type=jnp.float32),
        jnp.dot(sel_r_odd, a, preferred_element_type=jnp.float32),
    )                                                               # (MP, N)

    # --- MaxPool2d(2,2): pool over columns (feature dim, mapped to lanes) ---
    ri2 = lax.broadcasted_iota(jnp.int32, (N, NP), 0)
    ci2 = lax.broadcasted_iota(jnp.int32, (N, NP), 1)
    sel_c_even = (ri2 == 2 * ci2).astype(jnp.float32)               # cols 0,2,4,...
    sel_c_odd = (ri2 == 2 * ci2 + 1).astype(jnp.float32)            # cols 1,3,5,...
    o_ref[0] = jnp.maximum(
        jnp.dot(rows, sel_c_even, preferred_element_type=jnp.float32),
        jnp.dot(rows, sel_c_odd, preferred_element_type=jnp.float32),
    )                                                               # (MP, NP)


def _default_m_blocks():
    """2 row-blocks only on v7x-class chips (2 TCs/chip); 1 elsewhere."""
    try:
        kind = jax.devices()[0].device_kind.lower()
    except Exception:
        return 1
    return 2 if ("v7" in kind or "7x" in kind) else 1


def model_forward(x, weight, bias, *, m_blocks=None):
    """x: (B, C, H, K) f32; weight: (N, K) f32 (torch Linear layout); bias: (N,) f32."""
    B, C, H, K = x.shape
    N = weight.shape[0]
    assert weight.shape == (N, K) and bias.shape == (N,)
    assert H % 2 == 0 and N % 2 == 0
    assert K % 128 == 0

    if m_blocks is None:
        m_blocks = _default_m_blocks()

    M = B * C * H
    assert M % m_blocks == 0
    mb = M // m_blocks
    # Pool pairs must stay inside a block and inside a (b, c) group; sublane-aligned.
    assert mb % H == 0 and mb % 8 == 0

    # bf16 operands for the big HBM reads; all accumulation remains f32 in-kernel.
    x3 = x.reshape(m_blocks, mb, K).astype(jnp.bfloat16)
    w16 = weight.astype(jnp.bfloat16)
    b2 = bias.astype(jnp.float32).reshape(1, N)

    out = pl.pallas_call(
        _fused_linear_relu_maxpool_kernel,
        out_shape=jax.ShapeDtypeStruct((m_blocks, mb // 2, N // 2), jnp.float32),
        grid_spec=pltpu.PrefetchScalarGridSpec(
            num_scalar_prefetch=0,
            grid=(m_blocks,),
            in_specs=[
                pl.BlockSpec((1, mb, K), lambda g: (g, 0, 0)),   # x rows for this block
                pl.BlockSpec((N, K), lambda g: (0, 0)),          # full weight, resident
                pl.BlockSpec((1, N), lambda g: (0, 0)),          # bias
            ],
            out_specs=pl.BlockSpec((1, mb // 2, N // 2), lambda g: (g, 0, 0)),
        ),
        compiler_params=pltpu.CompilerParams(
            dimension_semantics=("parallel",),      # shards row-blocks across TCs on v7x
            vmem_limit_bytes=12 * 1024 * 1024,      # peak use ≲ 4 MiB with bf16
        ),
    )(x3, w16, b2)

    # (m_blocks, mb/2, N/2) == pooled rows in order -> (B, C, H/2, N/2) -> flatten(1)
    return out.reshape(B, C * (H // 2) * (N // 2))


def reference_forward(x, weight, bias):
    B, C, H, K = x.shape
    N = weight.shape[0]
    y = jnp.einsum("bchk,nk->bchn", x, weight,
                   precision=lax.Precision.HIGHEST) + bias         # Linear (true f32)
    y = jnp.maximum(y, 0.0)                                         # ReLU
    y = y.reshape(B, C, H // 2, 2, N // 2, 2).max(axis=(3, 5))      # MaxPool2d(2,2)
    return y.reshape(B, -1)                                         # flatten(start_dim=1)


if __name__ == "__main__":
    # Module-defined dims: in_features = 3*64*64 = 12288, out_features = 30.
    IN_FEATURES = 3 * 64 * 64
    OUT_FEATURES = 30
    # Small remaining input dims (forward implies x last dim == in_features).
    B, C, H = 2, 3, 8

    key = jax.random.PRNGKey(0)
    kx, kw, kb = jax.random.split(key, 3)
    x = jax.random.normal(kx, (B, C, H, IN_FEATURES), dtype=jnp.float32)
    # Deterministic Linear params (torch-like scale 1/sqrt(fan_in)).
    scale = 1.0 / jnp.sqrt(jnp.float32(IN_FEATURES))
    w = jax.random.uniform(kw, (OUT_FEATURES, IN_FEATURES), jnp.float32, -scale, scale)
    b = jax.random.uniform(kb, (OUT_FEATURES,), jnp.float32, -scale, scale)

    out = model_forward(x, w, b)
    out = jax.block_until_ready(out)

    ref = reference_forward(x, w, b)
    assert out.shape == (B, C * (H // 2) * (OUT_FEATURES // 2)), out.shape
    # bf16 operands (K=12288 reduction, f32 accumulate) vs true-f32 reference.
    assert jnp.allclose(out, ref, rtol=1e-2, atol=2e-2), "mismatch vs reference"

    print("KERNEL_OK")
</pallas_src>

<mosaic_0001>
module attributes {stable_mosaic.version = 11 : i64} {
  func.func @_fused_linear_relu_maxpool_kernel(%arg0: i32, %arg1: memref<1x48x12288xbf16, #tpu.memory_space<vmem>>, %arg2: memref<30x12288xbf16, #tpu.memory_space<vmem>>, %arg3: memref<1x30xf32, #tpu.memory_space<vmem>>, %arg4: memref<1x24x15xf32, #tpu.memory_space<vmem>>) attributes {dimension_semantics = [#tpu.dimension_semantics<parallel>], iteration_bounds = array<i64: 1>, scalar_prefetch = 0 : i64, scratch_operands = 0 : i64, tpu.core_type = #tpu.core_type<tc>, window_params = [{transform_indices = @transform_0, window_bounds = array<i64: 1, 48, 12288>}, {pipeline_mode = #tpu.pipeline_mode<synchronous>, transform_indices = @transform_1, window_bounds = array<i64: 30, 12288>}, {pipeline_mode = #tpu.pipeline_mode<synchronous>, transform_indices = @transform_2, window_bounds = array<i64: 1, 30>}, {transform_indices = @transform_3, window_bounds = array<i64: 1, 24, 15>}]} {
    %c0 = arith.constant 0 : index
    %c0_0 = arith.constant 0 : index
    %c0_1 = arith.constant 0 : index
    %0 = vector.load %arg1[%c0, %c0_0, %c0_1] : memref<1x48x12288xbf16, #tpu.memory_space<vmem>>, vector<1x48x12288xbf16>
    %1 = vector.shape_cast %0 : vector<1x48x12288xbf16> to vector<48x12288xbf16>
    %c0_2 = arith.constant 0 : index
    %c0_3 = arith.constant 0 : index
    %2 = vector.load %arg2[%c0_2, %c0_3] : memref<30x12288xbf16, #tpu.memory_space<vmem>>, vector<30x12288xbf16>
    %cst = arith.constant dense<0.000000e+00> : vector<48x30xf32>
    %3 = tpu.matmul %1, %2, %cst {dimension_numbers = #tpu.dot_dimension_numbers<[1], [1], [0], [0], [0, 0, 1, 0], [], []>} : vector<48x12288xbf16>, vector<30x12288xbf16>, vector<48x30xf32> -> vector<48x30xf32>
    %c0_4 = arith.constant 0 : index
    %c0_5 = arith.constant 0 : index
    %4 = vector.load %arg3[%c0_4, %c0_5] : memref<1x30xf32, #tpu.memory_space<vmem>>, vector<1x30xf32>
    %5 = vector.broadcast %4 : vector<1x30xf32> to vector<48x30xf32>
    %6 = arith.addf %3, %5 : vector<48x30xf32>
    %cst_6 = arith.constant 0.000000e+00 : f32
    %7 = vector.broadcast %cst_6 : f32 to vector<48x30xf32>
    %8 = arith.maximumf %6, %7 : vector<48x30xf32>
    %9 = tpu.iota {dimensions = array<i32: 0>} : vector<24x48xi32>
    %10 = tpu.iota {dimensions = array<i32: 1>} : vector<24x48xi32>
    %c2_i32 = arith.constant 2 : i32
    %11 = vector.broadcast %c2_i32 : i32 to vector<24x48xi32>
    %12 = arith.muli %11, %9 : vector<24x48xi32>
    %13 = arith.cmpi eq, %10, %12 : vector<24x48xi32>
    %14 = arith.extui %13 : vector<24x48xi1> to vector<24x48xi32>
    %15 = arith.sitofp %14 : vector<24x48xi32> to vector<24x48xf32>
    %c2_i32_7 = arith.constant 2 : i32
    %16 = vector.broadcast %c2_i32_7 : i32 to vector<24x48xi32>
    %17 = arith.muli %16, %9 : vector<24x48xi32>
    %c1_i32 = arith.constant 1 : i32
    %18 = vector.broadcast %c1_i32 : i32 to vector<24x48xi32>
    %19 = arith.addi %17, %18 : vector<24x48xi32>
    %20 = arith.cmpi eq, %10, %19 : vector<24x48xi32>
    %21 = arith.extui %20 : vector<24x48xi1> to vector<24x48xi32>
    %22 = arith.sitofp %21 : vector<24x48xi32> to vector<24x48xf32>
    %cst_8 = arith.constant dense<0.000000e+00> : vector<24x30xf32>
    %23 = tpu.matmul %15, %8, %cst_8 {dimension_numbers = #tpu.dot_dimension_numbers<[1], [0], [0], [1], [0, 0, 1, 1], [], []>} : vector<24x48xf32>, vector<48x30xf32>, vector<24x30xf32> -> vector<24x30xf32>
    %cst_9 = arith.constant dense<0.000000e+00> : vector<24x30xf32>
    %24 = tpu.matmul %22, %8, %cst_9 {dimension_numbers = #tpu.dot_dimension_numbers<[1], [0], [0], [1], [0, 0, 1, 1], [], []>} : vector<24x48xf32>, vector<48x30xf32>, vector<24x30xf32> -> vector<24x30xf32>
    %25 = arith.maximumf %23, %24 : vector<24x30xf32>
    %26 = tpu.iota {dimensions = array<i32: 0>} : vector<30x15xi32>
    %27 = tpu.iota {dimensions = array<i32: 1>} : vector<30x15xi32>
    %c2_i32_10 = arith.constant 2 : i32
    %28 = vector.broadcast %c2_i32_10 : i32 to vector<30x15xi32>
    %29 = arith.muli %28, %27 : vector<30x15xi32>
    %30 = arith.cmpi eq, %26, %29 : vector<30x15xi32>
    %31 = arith.extui %30 : vector<30x15xi1> to vector<30x15xi32>
    %32 = arith.sitofp %31 : vector<30x15xi32> to vector<30x15xf32>
    %c2_i32_11 = arith.constant 2 : i32
    %33 = vector.broadcast %c2_i32_11 : i32 to vector<30x15xi32>
    %34 = arith.muli %33, %27 : vector<30x15xi32>
    %c1_i32_12 = arith.constant 1 : i32
    %35 = vector.broadcast %c1_i32_12 : i32 to vector<30x15xi32>
    %36 = arith.addi %34, %35 : vector<30x15xi32>
    %37 = arith.cmpi eq, %26, %36 : vector<30x15xi32>
    %38 = arith.extui %37 : vector<30x15xi1> to vector<30x15xi32>
    %39 = arith.sitofp %38 : vector<30x15xi32> to vector<30x15xf32>
    %cst_13 = arith.constant dense<0.000000e+00> : vector<24x15xf32>
    %40 = tpu.matmul %25, %32, %cst_13 {dimension_numbers = #tpu.dot_dimension_numbers<[1], [0], [0], [1], [0, 0, 1, 1], [], []>} : vector<24x30xf32>, vector<30x15xf32>, vector<24x15xf32> -> vector<24x15xf32>
    %cst_14 = arith.constant dense<0.000000e+00> : vector<24x15xf32>
    %41 = tpu.matmul %25, %39, %cst_14 {dimension_numbers = #tpu.dot_dimension_numbers<[1], [0], [0], [1], [0, 0, 1, 1], [], []>} : vector<24x30xf32>, vector<30x15xf32>, vector<24x15xf32> -> vector<24x15xf32>
    %42 = arith.maximumf %40, %41 : vector<24x15xf32>
    %c0_15 = arith.constant 0 : index
    %c0_16 = arith.constant 0 : index
    %c0_17 = arith.constant 0 : index
    %43 = vector.load %arg4[%c0_15, %c0_16, %c0_17] : memref<1x24x15xf32, #tpu.memory_space<vmem>>, vector<1x24x15xf32>
    %44 = vector.shape_cast %43 : vector<1x24x15xf32> to vector<24x15xf32>
    %45 = vector.shape_cast %42 : vector<24x15xf32> to vector<1x24x15xf32>
    tpu.vector_store %arg4[%c0_15, %c0_16, %c0_17], %45 {strides = array<i32>} : memref<1x24x15xf32, #tpu.memory_space<vmem>>, vector<1x24x15xf32>,
    return
  }
  func.func @transform_0(%arg0: i32) -> (i32, i32, i32) {
    %c0_i32 = arith.constant 0 : i32
    %c0_i32_0 = arith.constant 0 : i32
    %c0_i32_1 = arith.constant 0 : i32
    return %arg0, %c0_i32, %c0_i32_0 : i32, i32, i32
  }
  func.func @transform_1(%arg0: i32) -> (i32, i32) {
    %c0_i32 = arith.constant 0 : i32
    %c0_i32_0 = arith.constant 0 : i32
    %c0_i32_1 = arith.constant 0 : i32
    return %c0_i32, %c0_i32_0 : i32, i32
  }
  func.func @transform_2(%arg0: i32) -> (i32, i32) {
    %c0_i32 = arith.constant 0 : i32
    %c0_i32_0 = arith.constant 0 : i32
    %c0_i32_1 = arith.constant 0 : i32
    return %c0_i32, %c0_i32_0 : i32, i32
  }
  func.func @transform_3(%arg0: i32) -> (i32, i32, i32) {
    %c0_i32 = arith.constant 0 : i32
    %c0_i32_0 = arith.constant 0 : i32
    %c0_i32_1 = arith.constant 0 : i32
    return %arg0, %c0_i32, %c0_i32_0 : i32, i32, i32
  }
}

</mosaic_0001>

<llo_original>
// kernel: tpu_custom_call.1
$region0: #{tpu_custom_call.1}
  #allocation0 [shape = 'u32[]', space=smem, size = 0x4, offset = 0x4, fixed_abs, tag = 'smem constant byte address 0x4 - core index']
  #allocation1 [shape = 'u32[144,128]{1,0:T(1,128)}', space=vmem, size = 0x12000, scoped, tag = 'internal scratch']
  %s0 = inlined_call_operand.hbm [shape: bf16[1,48,12288], index: 0, kind: input, shape index: {}]
  %s1 = inlined_call_operand.hbm [shape: bf16[30,12288], index: 1, kind: input, shape index: {}]
  %s2 = inlined_call_operand.hbm [shape: f32[1,30], index: 2, kind: input, shape index: {}]
  %s3 = inlined_call_operand.vmem [shape: f32[1,24,15], index: 3, kind: output, shape index: {}]
  %s4 = sld [smem:[#allocation0]]
  $region34: #{tpu_custom_call.1} parent=0
    _
  %s6 = ssub.s32 1, %s4
  %s7 = scalar_select 0, %s6, %s4
  $region1: #{tpu_custom_call.1} parent=0
    #allocation2 [shape = 'u8[1179648]{0}', space=vmem, size = 0x120000, scoped, tag = 'input window, operand 0, single buffered']
    #allocation3 [shape = 's32[1]{0}', space=sflag, size = 0x4, scoped, tag = 'scoped memory for tpu_custom_call.1']
    #allocation4 [shape = 'u8[786432]{0}', space=vmem, size = 0xc0000, scoped, tag = 'input window, operand 1, single buffered']
    #allocation5 [shape = 's32[1]{0}', space=sflag, size = 0x4, scoped, tag = 'scoped memory for tpu_custom_call.1']
    #allocation6 [shape = 'u8[512]{0}', space=vmem, size = 0x400, scoped, tag = 'input window, operand 2, single buffered']
    %8 = vsyncpa [#allocation3], 0
    %9 = vsyncpa [#allocation5], 0
    // Predicated region
    $region2: #{tpu_custom_call.1} parent=1 // pred_check
      _
    $region3: #{tpu_custom_call.1} parent=1 // pred_check_branch
      %11 = sbr.rel (0) target = $region5
    $region4: #{tpu_custom_call.1} parent=1 // pred_region
      %s13 = ssub.s32 36864, 36864
      %14 = vsyncadd [#allocation3], %s13
      %s15 = sshll.u32 [#allocation2], 4
      %s16 = int_to_ptr.vmem [resolvable:$true] %s15
      %21 = dma.hbm_to_vmem [thread:$0]  %s0, 36864, %s16, [#allocation3], 6144, 6144, 384
    $region5: #{tpu_custom_call.1} parent=1 // pred_fallthru
      _
    // Predicated region
    $region6: #{tpu_custom_call.1} parent=1 // pred_check
      _
    $region7: #{tpu_custom_call.1} parent=1 // pred_check_branch
      %23 = sbr.rel (0) target = $region9
    $region8: #{tpu_custom_call.1} parent=1 // pred_region
      %s25 = ssub.s32 24576, 24576
      %26 = vsyncadd [#allocation5], %s25
      %s27 = sshll.u32 [#allocation4], 4
      %s28 = int_to_ptr.vmem [resolvable:$true] %s27
      %33 = dma.hbm_to_vmem [thread:$0]  %s1, 24576, %s28, [#allocation5], 6144, 6144, 384
    $region9: #{tpu_custom_call.1} parent=1 // pred_fallthru
      _
    // Predicated region
    $region10: #{tpu_custom_call.1} parent=1 // pred_check
      _
    $region11: #{tpu_custom_call.1} parent=1 // pred_check_branch
      %35 = sbr.rel (0) target = $region13
    $region12: #{tpu_custom_call.1} parent=1 // pred_region
      %s37 = ssub.s32 16, 16
      %38 = vsyncadd [#allocation5], %s37
      %s40 = sshll.u32 [#allocation6], 4
      %s41 = int_to_ptr.vmem [resolvable:$true] %s40
      %43 = dma.hbm_to_vmem [thread:$0]  %s2, 16, %s41, [#allocation5]
    $region13: #{tpu_custom_call.1} parent=1 // pred_fallthru
      _
    // Predicated region
    $region14: #{tpu_custom_call.1} parent=1 // pred_check
      _
    $region15: #{tpu_custom_call.1} parent=1 // pred_check_branch
      %45 = sbr.rel (0) target = $region17
    $region16: #{tpu_custom_call.1} parent=1 // pred_region
      %46 = dma.done [#allocation3], 36864
    $region17: #{tpu_custom_call.1} parent=1 // pred_fallthru
      _
    // Predicated region
    $region18: #{tpu_custom_call.1} parent=1 // pred_check
      _
    $region19: #{tpu_custom_call.1} parent=1 // pred_check_branch
      %48 = sbr.rel (0) target = $region21
    $region20: #{tpu_custom_call.1} parent=1 // pred_region
      %49 = dma.done [#allocation5], 24576
    $region21: #{tpu_custom_call.1} parent=1 // pred_fallthru
      _
    // Predicated region
    $region22: #{tpu_custom_call.1} parent=1 // pred_check
      _
    $region23: #{tpu_custom_call.1} parent=1 // pred_check_branch
      %51 = sbr.rel (0) target = $region25
    $region24: #{tpu_custom_call.1} parent=1 // pred_region
      %52 = dma.done [#allocation5], 16
    $region25: #{tpu_custom_call.1} parent=1 // pred_fallthru
      _
    %v54 = vld [vmem:[#allocation2] sm:$0xff]
    %v55 = vld [vmem:[#allocation2 + $0x8] sm:$0xff]
    %v56 = vld [vmem:[#allocation2 + $0x10] sm:$0xff]
    %v57 = vld [vmem:[#allocation2 + $0x18] sm:$0xff]
    %v58 = vld [vmem:[#allocation2 + $0x20] sm:$0xff]
    %v59 = vld [vmem:[#allocation2 + $0x28] sm:$0xff]
    %v60 = vld [vmem:[#allocation2 + $0x30] sm:$0xff]
    %v61 = vld [vmem:[#allocation2 + $0x38] sm:$0xff]
    %v62 = vld [vmem:[#allocation2 + $0x40] sm:$0xff]
    %v63 = vld [vmem:[#allocation2 + $0x48] sm:$0xff]
    %v64 = vld [vmem:[#allocation2 + $0x50] sm:$0xff]
    %v65 = vld [vmem:[#allocation2 + $0x58] sm:$0xff]
    %v66 = vld [vmem:[#allocation2 + $0x60] sm:$0xff]
    %v67 = vld [vmem:[#allocation2 + $0x68] sm:$0xff]
    %v68 = vld [vmem:[#allocation2 + $0x70] sm:$0xff]
    %v69 = vld [vmem:[#allocation2 + $0x78] sm:$0xff]
    %v70 = vld [vmem:[#allocation2 + $0x80] sm:$0xff]
    %v71 = vld [vmem:[#allocation2 + $0x88] sm:$0xff]
    %v72 = vld [vmem:[#allocation2 + $0x90] sm:$0xff]
    %v73 = vld [vmem:[#allocation2 + $0x98] sm:$0xff]
    %v74 = vld [vmem:[#allocation2 + $0xa0] sm:$0xff]
    %v75 = vld [vmem:[#allocation2 + $0xa8] sm:$0xff]
    %v76 = vld [vmem:[#allocation2 + $0xb0] sm:$0xff]
    %v77 = vld [vmem:[#allocation2 + $0xb8] sm:$0xff]
    %v78 = vld [vmem:[#allocation2 + $0xc0] sm:$0xff]
    %v79 = vld [vmem:[#allocation2 + $0xc8] sm:$0xff]
    %v80 = vld [vmem:[#allocation2 + $0xd0] sm:$0xff]
    %v81 = vld [vmem:[#allocation2 + $0xd8] sm:$0xff]
    %v82 = vld [vmem:[#allocation2 + $0xe0] sm:$0xff]
    %v83 = vld [vmem:[#allocation2 + $0xe8] sm:$0xff]
    %v84 = vld [vmem:[#allocation2 + $0xf0] sm:$0xff]
    %v85 = vld [vmem:[#allocation2 + $0xf8] sm:$0xff]
    %v86 = vld [vmem:[#allocation2 + $0x100] sm:$0xff]
    %v87 = vld [vmem:[#allocation2 + $0x108] sm:$0xff]
    %v88 = vld [vmem:[#allocation2 + $0x110] sm:$0xff]
    %v89 = vld [vmem:[#allocation2 + $0x118] sm:$0xff]
    %v90 = vld [vmem:[#allocation2 + $0x120] sm:$0xff]
    %v91 = vld [vmem:[#allocation2 + $0x128] sm:$0xff]
    %v92 = vld [vmem:[#allocation2 + $0x130] sm:$0xff]
    %v93 = vld [vmem:[#allocation2 + $0x138] sm:$0xff]
    %v94 = vld [vmem:[#allocation2 + $0x140] sm:$0xff]
    %v95 = vld [vmem:[#allocation2 + $0x148] sm:$0xff]
    %v96 = vld [vmem:[#allocation2 + $0x150] sm:$0xff]
    %v97 = vld [vmem:[#allocation2 + $0x158] sm:$0xff]
    %v98 = vld [vmem:[#allocation2 + $0x160] sm:$0xff]
    %v99 = vld [vmem:[#allocation2 + $0x168] sm:$0xff]
    %v100 = vld [vmem:[#allocation2 + $0x170] sm:$0xff]
    %v101 = vld [vmem:[#allocation2 + $0x178] sm:$0xff]
    %v102 = vld [vmem:[#allocation2 + $0x180] sm:$0xff]
    %v103 = vld [vmem:[#allocation2 + $0x188] sm:$0xff]
    %v104 = vld [vmem:[#allocation2 + $0x190] sm:$0xff]
    %v105 = vld [vmem:[#allocation2 + $0x198] sm:$0xff]
    %v106 = vld [vmem:[#allocation2 + $0x1a0] sm:$0xff]
    %v107 = vld [vmem:[#allocation2 + $0x1a8] sm:$0xff]
    %v108 = vld [vmem:[#allocation2 + $0x1b0] sm:$0xff]
    %v109 = vld [vmem:[#allocation2 + $0x1b8] sm:$0xff]
    %v110 = vld [vmem:[#allocation2 + $0x1c0] sm:$0xff]
    %v111 = vld [vmem:[#allocation2 + $0x1c8] sm:$0xff]
    %v112 = vld [vmem:[#allocation2 + $0x1d0] sm:$0xff]
    %v113 = vld [vmem:[#allocation2 + $0x1d8] sm:$0xff]
    %v114 = vld [vmem:[#allocation2 + $0x1e0] sm:$0xff]
    %v115 = vld [vmem:[#allocation2 + $0x1e8] sm:$0xff]
    %v116 = vld [vmem:[#allocation2 + $0x1f0] sm:$0xff]
    %v117 = vld [vmem:[#allocation2 + $0x1f8] sm:$0xff]
    %v118 = vld [vmem:[#allocation2 + $0x200] sm:$0xff]
    %v119 = vld [vmem:[#allocation2 + $0x208] sm:$0xff]
    %v120 = vld [vmem:[#allocation2 + $0x210] sm:$0xff]
    %v121 = vld [vmem:[#allocation2 + $0x218] sm:$0xff]
    %v122 = vld [vmem:[#allocation2 + $0x220] sm:$0xff]
    %v123 = vld [vmem:[#allocation2 + $0x228] sm:$0xff]
    %v124 = vld [vmem:[#allocation2 + $0x230] sm:$0xff]
    %v125 = vld [vmem:[#allocation2 + $0x238] sm:$0xff]
    %v126 = vld [vmem:[#allocation2 + $0x240] sm:$0xff]
    %v127 = vld [vmem:[#allocation2 + $0x248] sm:$0xff]
    %v128 = vld [vmem:[#allocation2 + $0x250] sm:$0xff]
    %v129 = vld [vmem:[#allocation2 + $0x258] sm:$0xff]
    %v130 = vld [vmem:[#allocation2 + $0x260] sm:$0xff]
    %v131 = vld [vmem:[#allocation2 + $0x268] sm:$0xff]
    %v132 = vld [vmem:[#allocation2 + $0x270] sm:$0xff]
    %v133 = vld [vmem:[#allocation2 + $0x278] sm:$0xff]
    %v134 = vld [vmem:[#allocation2 + $0x280] sm:$0xff]
    %v135 = vld [vmem:[#allocation2 + $0x288] sm:$0xff]
    %v136 = vld [vmem:[#allocation2 + $0x290] sm:$0xff]
    %v137 = vld [vmem:[#allocation2 + $0x298] sm:$0xff]
    %v138 = vld [vmem:[#allocation2 + $0x2a0] sm:$0xff]
    %v139 = vld [vmem:[#allocation2 + $0x2a8] sm:$0xff]
    %v140 = vld [vmem:[#allocation2 + $0x2b0] sm:$0xff]
    %v141 = vld [vmem:[#allocation2 + $0x2b8] sm:$0xff]
    %v142 = vld [vmem:[#allocation2 + $0x2c0] sm:$0xff]
    %v143 = vld [vmem:[#allocation2 + $0x2c8] sm:$0xff]
    %v144 = vld [vmem:[#allocation2 + $0x2d0] sm:$0xff]
    %v145 = vld [vmem:[#allocation2 + $0x2d8] sm:$0xff]
    %v146 = vld [vmem:[#allocation2 + $0x2e0] sm:$0xff]
    %v147 = vld [vmem:[#allocation2 + $0x2e8] sm:$0xff]
    %v148 = vld [vmem:[#allocation2 + $0x2f0] sm:$0xff]
    %v149 = vld [vmem:[#allocation2 + $0x2f8] sm:$0xff]
    %v150 = vld [vmem:[#allocation2 + $0x300] sm:$0xff]
    %v151 = vld [vmem:[#allocation2 + $0x308] sm:$0xff]
    %v152 = vld [vmem:[#allocation2 + $0x310] sm:$0xff]
    %v153 = vld [vmem:[#allocation2 + $0x318] sm:$0xff]
    %v154 = vld [vmem:[#allocation2 + $0x320] sm:$0xff]
    %v155 = vld [vmem:[#allocation2 + $0x328] sm:$0xff]
    %v156 = vld [vmem:[#allocation2 + $0x330] sm:$0xff]
    %v157 = vld [vmem:[#allocation2 + $0x338] sm:$0xff]
    %v158 = vld [vmem:[#allocation2 + $0x340] sm:$0xff]
    %v159 = vld [vmem:[#allocation2 + $0x348] sm:$0xff]
    %v160 = vld [vmem:[#allocation2 + $0x350] sm:$0xff]
    %v161 = vld [vmem:[#allocation2 + $0x358] sm:$0xff]
    %v162 = vld [vmem:[#allocation2 + $0x360] sm:$0xff]
    %v163 = vld [vmem:[#allocation2 + $0x368] sm:$0xff]
    %v164 = vld [vmem:[#allocation2 + $0x370] sm:$0xff]
    %v165 = vld [vmem:[#allocation2 + $0x378] sm:$0xff]
    %v166 = vld [vmem:[#allocation2 + $0x380] sm:$0xff]
    %v167 = vld [vmem:[#allocation2 + $0x388] sm:$0xff]
    %v168 = vld [vmem:[#allocation2 + $0x390] sm:$0xff]
    %v169 = vld [vmem:[#allocation2 + $0x398] sm:$0xff]
    %v170 = vld [vmem:[#allocation2 + $0x3a0] sm:$0xff]
    %v171 = vld [vmem:[#allocation2 + $0x3a8] sm:$0xff]
    %v172 = vld [vmem:[#allocation2 + $0x3b0] sm:$0xff]
    %v173 = vld [vmem:[#allocation2 + $0x3b8] sm:$0xff]
    %v174 = vld [vmem:[#allocation2 + $0x3c0] sm:$0xff]
    %v175 = vld [vmem:[#allocation2 + $0x3c8] sm:$0xff]
    %v176 = vld [vmem:[#allocation2 + $0x3d0] sm:$0xff]
    %v177 = vld [vmem:[#allocation2 + $0x3d8] sm:$0xff]
    %v178 = vld [vmem:[#allocation2 + $0x3e0] sm:$0xff]
    %v179 = vld [vmem:[#allocation2 + $0x3e8] sm:$0xff]
    %v180 = vld [vmem:[#allocation2 + $0x3f0] sm:$0xff]
    %v181 = vld [vmem:[#allocation2 + $0x3f8] sm:$0xff]
    %v182 = vld [vmem:[#allocation2 + $0x400] sm:$0xff]
    %v183 = vld [vmem:[#allocation2 + $0x408] sm:$0xff]
    %v184 = vld [vmem:[#allocation2 + $0x410] sm:$0xff]
    %v185 = vld [vmem:[#allocation2 + $0x418] sm:$0xff]
    %v186 = vld [vmem:[#allocation2 + $0x420] sm:$0xff]
    %v187 = vld [vmem:[#allocation2 + $0x428] sm:$0xff]
    %v188 = vld [vmem:[#allocation2 + $0x430] sm:$0xff]
    %v189 = vld [vmem:[#allocation2 + $0x438] sm:$0xff]
    %v190 = vld [vmem:[#allocation2 + $0x440] sm:$0xff]
    %v191 = vld [vmem:[#allocation2 + $0x448] sm:$0xff]
    %v192 = vld [vmem:[#allocation2 + $0x450] sm:$0xff]
    %v193 = vld [vmem:[#allocation2 + $0x458] sm:$0xff]
    %v194 = vld [vmem:[#allocation2 + $0x460] sm:$0xff]
    %v195 = vld [vmem:[#allocation2 + $0x468] sm:$0xff]
    %v196 = vld [vmem:[#allocation2 + $0x470] sm:$0xff]
    %v197 = vld [vmem:[#allocation2 + $0x478] sm:$0xff]
    %v198 = vld [vmem:[#allocation2 + $0x480] sm:$0xff]
    %v199 = vld [vmem:[#allocation2 + $0x488] sm:$0xff]
    %v200 = vld [vmem:[#allocation2 + $0x490] sm:$0xff]
    %v201 = vld [vmem:[#allocation2 + $0x498] sm:$0xff]
    %v202 = vld [vmem:[#allocation2 + $0x4a0] sm:$0xff]
    %v203 = vld [vmem:[#allocation2 + $0x4a8] sm:$0xff]
    %v204 = vld [vmem:[#allocation2 + $0x4b0] sm:$0xff]
    %v205 = vld [vmem:[#allocation2 + $0x4b8] sm:$0xff]
    %v206 = vld [vmem:[#allocation2 + $0x4c0] sm:$0xff]
    %v207 = vld [vmem:[#allocation2 + $0x4c8] sm:$0xff]
    %v208 = vld [vmem:[#allocation2 + $0x4d0] sm:$0xff]
    %v209 = vld [vmem:[#allocation2 + $0x4d8] sm:$0xff]
    %v210 = vld [vmem:[#allocation2 + $0x4e0] sm:$0xff]
    %v211 = vld [vmem:[#allocation2 + $0x4e8] sm:$0xff]
    %v212 = vld [vmem:[#allocation2 + $0x4f0] sm:$0xff]
    %v213 = vld [vmem:[#allocation2 + $0x4f8] sm:$0xff]
    %v214 = vld [vmem:[#allocation2 + $0x500] sm:$0xff]
    %v215 = vld [vmem:[#allocation2 + $0x508] sm:$0xff]
    %v216 = vld [vmem:[#allocation2 + $0x510] sm:$0xff]
    %v217 = vld [vmem:[#allocation2 + $0x518] sm:$0xff]
    %v218 = vld [vmem:[#allocation2 + $0x520] sm:$0xff]
    %v219 = vld [vmem:[#allocation2 + $0x528] sm:$0xff]
    %v220 = vld [vmem:[#allocation2 + $0x530] sm:$0xff]
    %v221 = vld [vmem:[#allocation2 + $0x538] sm:$0xff]
    %v222 = vld [vmem:[#allocation2 + $0x540] sm:$0xff]
    %v223 = vld [vmem:[#allocation2 + $0x548] sm:$0xff]
    %v224 = vld [vmem:[#allocation2 + $0x550] sm:$0xff]
    %v225 = vld [vmem:[#allocation2 + $0x558] sm:$0xff]
    %v226 = vld [vmem:[#allocation2 + $0x560] sm:$0xff]
    %v227 = vld [vmem:[#allocation2 + $0x568] sm:$0xff]
    %v228 = vld [vmem:[#allocation2 + $0x570] sm:$0xff]
    %v229 = vld [vmem:[#allocation2 + $0x578] sm:$0xff]
    %v230 = vld [vmem:[#allocation2 + $0x580] sm:$0xff]
    %v231 = vld [vmem:[#allocation2 + $0x588] sm:$0xff]
    %v232 = vld [vmem:[#allocation2 + $0x590] sm:$0xff]
    %v233 = vld [vmem:[#allocation2 + $0x598] sm:$0xff]
    %v234 = vld [vmem:[#allocation2 + $0x5a0] sm:$0xff]
    %v235 = vld [vmem:[#allocation2 + $0x5a8] sm:$0xff]
    %v236 = vld [vmem:[#allocation2 + $0x5b0] sm:$0xff]
    %v237 = vld [vmem:[#allocation2 + $0x5b8] sm:$0xff]
    %v238 = vld [vmem:[#allocation2 + $0x5c0] sm:$0xff]
    %v239 = vld [vmem:[#allocation2 + $0x5c8] sm:$0xff]
    %v240 = vld [vmem:[#allocation2 + $0x5d0] sm:$0xff]
    %v241 = vld [vmem:[#allocation2 + $0x5d8] sm:$0xff]
    %v242 = vld [vmem:[#allocation2 + $0x5e0] sm:$0xff]
    %v243 = vld [vmem:[#allocation2 + $0x5e8] sm:$0xff]
    %v244 = vld [vmem:[#allocation2 + $0x5f0] sm:$0xff]
    %v245 = vld [vmem:[#allocation2 + $0x5f8] sm:$0xff]
    %v246 = vld [vmem:[#allocation2 + $0x600] sm:$0xff]
    %v247 = vld [vmem:[#allocation2 + $0x608] sm:$0xff]
    %v248 = vld [vmem:[#allocation2 + $0x610] sm:$0xff]
    %v249 = vld [vmem:[#allocation2 + $0x618] sm:$0xff]
    %v250 = vld [vmem:[#allocation2 + $0x620] sm:$0xff]
    %v251 = vld [vmem:[#allocation2 + $0x628] sm:$0xff]
    %v252 = vld [vmem:[#allocation2 + $0x630] sm:$0xff]
    %v253 = vld [vmem:[#allocation2 + $0x638] sm:$0xff]
    %v254 = vld [vmem:[#allocation2 + $0x640] sm:$0xff]
    %v255 = vld [vmem:[#allocation2 + $0x648] sm:$0xff]
    %v256 = vld [vmem:[#allocation2 + $0x650] sm:$0xff]
    %v257 = vld [vmem:[#allocation2 + $0x658] sm:$0xff]
    %v258 = vld [vmem:[#allocation2 + $0x660] sm:$0xff]
    %v259 = vld [vmem:[#allocation2 + $0x668] sm:$0xff]
    %v260 = vld [vmem:[#allocation2 + $0x670] sm:$0xff]
    %v261 = vld [vmem:[#allocation2 + $0x678] sm:$0xff]
    %v262 = vld [vmem:[#allocation2 + $0x680] sm:$0xff]
    %v263 = vld [vmem:[#allocation2 + $0x688] sm:$0xff]
    %v264 = vld [vmem:[#allocation2 + $0x690] sm:$0xff]
    %v265 = vld [vmem:[#allocation2 + $0x698] sm:$0xff]
    %v266 = vld [vmem:[#allocation2 + $0x6a0] sm:$0xff]
    %v267 = vld [vmem:[#allocation2 + $0x6a8] sm:$0xff]
    %v268 = vld [vmem:[#allocation2 + $0x6b0] sm:$0xff]
    %v269 = vld [vmem:[#allocation2 + $0x6b8] sm:$0xff]
    %v270 = vld [vmem:[#allocation2 + $0x6c0] sm:$0xff]
    %v271 = vld [vmem:[#allocation2 + $0x6c8] sm:$0xff]
    %v272 = vld [vmem:[#allocation2 + $0x6d0] sm:$0xff]
    %v273 = vld [vmem:[#allocation2 + $0x6d8] sm:$0xff]
    %v274 = vld [vmem:[#allocation2 + $0x6e0] sm:$0xff]
    %v275 = vld [vmem:[#allocation2 + $0x6e8] sm:$0xff]
    %v276 = vld [vmem:[#allocation2 + $0x6f0] sm:$0xff]
    %v277 = vld [vmem:[#allocation2 + $0x6f8] sm:$0xff]
    %v278 = vld [vmem:[#allocation2 + $0x700] sm:$0xff]
    %v279 = vld [vmem:[#allocation2 + $0x708] sm:$0xff]
    %v280 = vld [vmem:[#allocation2 + $0x710] sm:$0xff]
    %v281 = vld [vmem:[#allocation2 + $0x718] sm:$0xff]
    %v282 = vld [vmem:[#allocation2 + $0x720] sm:$0xff]
    %v283 = vld [vmem:[#allocation2 + $0x728] sm:$0xff]
    %v284 = vld [vmem:[#allocation2 + $0x730] sm:$0xff]
    %v285 = vld [vmem:[#allocation2 + $0x738] sm:$0xff]
    %v286 = vld [vmem:[#allocation2 + $0x740] sm:$0xff]
    %v287 = vld [vmem:[#allocation2 + $0x748] sm:$0xff]
    %v288 = vld [vmem:[#allocation2 + $0x750] sm:$0xff]
    %v289 = vld [vmem:[#allocation2 + $0x758] sm:$0xff]
    %v290 = vld [vmem:[#allocation2 + $0x760] sm:$0xff]
    %v291 = vld [vmem:[#allocation2 + $0x768] sm:$0xff]
    %v292 = vld [vmem:[#allocation2 + $0x770] sm:$0xff]
    %v293 = vld [vmem:[#allocation2 + $0x778] sm:$0xff]
    %v294 = vld [vmem:[#allocation2 + $0x780] sm:$0xff]
    %v295 = vld [vmem:[#allocation2 + $0x788] sm:$0xff]
    %v296 = vld [vmem:[#allocation2 + $0x790] sm:$0xff]
    %v297 = vld [vmem:[#allocation2 + $0x798] sm:$0xff]
    %v298 = vld [vmem:[#allocation2 + $0x7a0] sm:$0xff]
    %v299 = vld [vmem:[#allocation2 + $0x7a8] sm:$0xff]
    %v300 = vld [vmem:[#allocation2 + $0x7b0] sm:$0xff]
    %v301 = vld [vmem:[#allocation2 + $0x7b8] sm:$0xff]
    %v302 = vld [vmem:[#allocation2 + $0x7c0] sm:$0xff]
    %v303 = vld [vmem:[#allocation2 + $0x7c8] sm:$0xff]
    %v304 = vld [vmem:[#allocation2 + $0x7d0] sm:$0xff]
    %v305 = vld [vmem:[#allocation2 + $0x7d8] sm:$0xff]
    %v306 = vld [vmem:[#allocation2 + $0x7e0] sm:$0xff]
    %v307 = vld [vmem:[#allocation2 + $0x7e8] sm:$0xff]
    %v308 = vld [vmem:[#allocation2 + $0x7f0] sm:$0xff]
    %v309 = vld [vmem:[#allocation2 + $0x7f8] sm:$0xff]
    %v310 = vld [vmem:[#allocation2 + $0x800] sm:$0xff]
    %v311 = vld [vmem:[#allocation2 + $0x808] sm:$0xff]
    %v312 = vld [vmem:[#allocation2 + $0x810] sm:$0xff]
    %v313 = vld [vmem:[#allocation2 + $0x818] sm:$0xff]
    %v314 = vld [vmem:[#allocation2 + $0x820] sm:$0xff]
    %v315 = vld [vmem:[#allocation2 + $0x828] sm:$0xff]
    %v316 = vld [vmem:[#allocation2 + $0x830] sm:$0xff]
    %v317 = vld [vmem:[#allocation2 + $0x838] sm:$0xff]
    %v318 = vld [vmem:[#allocation2 + $0x840] sm:$0xff]
    %v319 = vld [vmem:[#allocation2 + $0x848] sm:$0xff]
    %v320 = vld [vmem:[#allocation2 + $0x850] sm:$0xff]
    %v321 = vld [vmem:[#allocation2 + $0x858] sm:$0xff]
    %v322 = vld [vmem:[#allocation2 + $0x860] sm:$0xff]
    %v323 = vld [vmem:[#allocation2 + $0x868] sm:$0xff]
    %v324 = vld [vmem:[#allocation2 + $0x870] sm:$0xff]
    %v325 = vld [vmem:[#allocation2 + $0x878] sm:$0xff]
    %v326 = vld [vmem:[#allocation2 + $0x880] sm:$0xff]
    %v327 = vld [vmem:[#allocation2 + $0x888] sm:$0xff]
    %v328 = vld [vmem:[#allocation2 + $0x890] sm:$0xff]
    %v329 = vld [vmem:[#allocation2 + $0x898] sm:$0xff]
    %v330 = vld [vmem:[#allocation2 + $0x8a0] sm:$0xff]
    %v331 = vld [vmem:[#allocation2 + $0x8a8] sm:$0xff]
    %v332 = vld [vmem:[#allocation2 + $0x8b0] sm:$0xff]
    %v333 = vld [vmem:[#allocation2 + $0x8b8] sm:$0xff]
    %v334 = vld [vmem:[#allocation2 + $0x8c0] sm:$0xff]
    %v335 = vld [vmem:[#allocation2 + $0x8c8] sm:$0xff]
    %v336 = vld [vmem:[#allocation2 + $0x8d0] sm:$0xff]
    %v337 = vld [vmem:[#allocation2 + $0x8d8] sm:$0xff]
    %v338 = vld [vmem:[#allocation2 + $0x8e0] sm:$0xff]
    %v339 = vld [vmem:[#allocation2 + $0x8e8] sm:$0xff]
    %v340 = vld [vmem:[#allocation2 + $0x8f0] sm:$0xff]
    %v341 = vld [vmem:[#allocation2 + $0x8f8] sm:$0xff]
    %v342 = vld [vmem:[#allocation4] sm:$0xff]
    %v343 = vld [vmem:[#allocation4 + $0x8] sm:$0xff]
    %v344 = vld [vmem:[#allocation4 + $0x10] sm:$0xff]
    %v345 = vld [vmem:[#allocation4 + $0x18] sm:$0xff]
    %v346 = vld [vmem:[#allocation4 + $0x20] sm:$0xff]
    %v347 = vld [vmem:[#allocation4 + $0x28] sm:$0xff]
    %v348 = vld [vmem:[#allocation4 + $0x30] sm:$0xff]
    %v349 = vld [vmem:[#allocation4 + $0x38] sm:$0xff]
    %v350 = vld [vmem:[#allocation4 + $0x40] sm:$0xff]
    %v351 = vld [vmem:[#allocation4 + $0x48] sm:$0xff]
    %v352 = vld [vmem:[#allocation4 + $0x50] sm:$0xff]
    %v353 = vld [vmem:[#allocation4 + $0x58] sm:$0xff]
    %v354 = vld [vmem:[#allocation4 + $0x60] sm:$0xff]
    %v355 = vld [vmem:[#allocation4 + $0x68] sm:$0xff]
    %v356 = vld [vmem:[#allocation4 + $0x70] sm:$0xff]
    %v357 = vld [vmem:[#allocation4 + $0x78] sm:$0xff]
    %v358 = vld [vmem:[#allocation4 + $0x80] sm:$0xff]
    %v359 = vld [vmem:[#allocation4 + $0x88] sm:$0xff]
    %v360 = vld [vmem:[#allocation4 + $0x90] sm:$0xff]
    %v361 = vld [vmem:[#allocation4 + $0x98] sm:$0xff]
    %v362 = vld [vmem:[#allocation4 + $0xa0] sm:$0xff]
    %v363 = vld [vmem:[#allocation4 + $0xa8] sm:$0xff]
    %v364 = vld [vmem:[#allocation4 + $0xb0] sm:$0xff]
    %v365 = vld [vmem:[#allocation4 + $0xb8] sm:$0xff]
    %v366 = vld [vmem:[#allocation4 + $0xc0] sm:$0xff]
    %v367 = vld [vmem:[#allocation4 + $0xc8] sm:$0xff]
    %v368 = vld [vmem:[#allocation4 + $0xd0] sm:$0xff]
    %v369 = vld [vmem:[#allocation4 + $0xd8] sm:$0xff]
    %v370 = vld [vmem:[#allocation4 + $0xe0] sm:$0xff]
    %v371 = vld [vmem:[#allocation4 + $0xe8] sm:$0xff]
    %v372 = vld [vmem:[#allocation4 + $0xf0] sm:$0xff]
    %v373 = vld [vmem:[#allocation4 + $0xf8] sm:$0xff]
    %v374 = vld [vmem:[#allocation4 + $0x100] sm:$0xff]
    %v375 = vld [vmem:[#allocation4 + $0x108] sm:$0xff]
    %v376 = vld [vmem:[#allocation4 + $0x110] sm:$0xff]
    %v377 = vld [vmem:[#allocation4 + $0x118] sm:$0xff]
    %v378 = vld [vmem:[#allocation4 + $0x120] sm:$0xff]
    %v379 = vld [vmem:[#allocation4 + $0x128] sm:$0xff]
    %v380 = vld [vmem:[#allocation4 + $0x130] sm:$0xff]
    %v381 = vld [vmem:[#allocation4 + $0x138] sm:$0xff]
    %v382 = vld [vmem:[#allocation4 + $0x140] sm:$0xff]
    %v383 = vld [vmem:[#allocation4 + $0x148] sm:$0xff]
    %v384 = vld [vmem:[#allocation4 + $0x150] sm:$0xff]
    %v385 = vld [vmem:[#allocation4 + $0x158] sm:$0xff]
    %v386 = vld [vmem:[#allocation4 + $0x160] sm:$0xff]
    %v387 = vld [vmem:[#allocation4 + $0x168] sm:$0xff]
    %v388 = vld [vmem:[#allocation4 + $0x170] sm:$0xff]
    %v389 = vld [vmem:[#allocation4 + $0x178] sm:$0xff]
    %v390 = vld [vmem:[#allocation4 + $0x180] sm:$0xff]
    %v391 = vld [vmem:[#allocation4 + $0x188] sm:$0xff]
    %v392 = vld [vmem:[#allocation4 + $0x190] sm:$0xff]
    %v393 = vld [vmem:[#allocation4 + $0x198] sm:$0xff]
    %v394 = vld [vmem:[#allocation4 + $0x1a0] sm:$0xff]
    %v395 = vld [vmem:[#allocation4 + $0x1a8] sm:$0xff]
    %v396 = vld [vmem:[#allocation4 + $0x1b0] sm:$0xff]
    %v397 = vld [vmem:[#allocation4 + $0x1b8] sm:$0xff]
    %v398 = vld [vmem:[#allocation4 + $0x1c0] sm:$0xff]
    %v399 = vld [vmem:[#allocation4 + $0x1c8] sm:$0xff]
    %v400 = vld [vmem:[#allocation4 + $0x1d0] sm:$0xff]
    %v401 = vld [vmem:[#allocation4 + $0x1d8] sm:$0xff]
    %v402 = vld [vmem:[#allocation4 + $0x1e0] sm:$0xff]
    %v403 = vld [vmem:[#allocation4 + $0x1e8] sm:$0xff]
    %v404 = vld [vmem:[#allocation4 + $0x1f0] sm:$0xff]
    %v405 = vld [vmem:[#allocation4 + $0x1f8] sm:$0xff]
    %v406 = vld [vmem:[#allocation4 + $0x200] sm:$0xff]
    %v407 = vld [vmem:[#allocation4 + $0x208] sm:$0xff]
    %v408 = vld [vmem:[#allocation4 + $0x210] sm:$0xff]
    %v409 = vld [vmem:[#allocation4 + $0x218] sm:$0xff]
    %v410 = vld [vmem:[#allocation4 + $0x220] sm:$0xff]
    %v411 = vld [vmem:[#allocation4 + $0x228] sm:$0xff]
    %v412 = vld [vmem:[#allocation4 + $0x230] sm:$0xff]
    %v413 = vld [vmem:[#allocation4 + $0x238] sm:$0xff]
    %v414 = vld [vmem:[#allocation4 + $0x240] sm:$0xff]
    %v415 = vld [vmem:[#allocation4 + $0x248] sm:$0xff]
    %v416 = vld [vmem:[#allocation4 + $0x250] sm:$0xff]
    %v417 = vld [vmem:[#allocation4 + $0x258] sm:$0xff]
    %v418 = vld [vmem:[#allocation4 + $0x260] sm:$0xff]
    %v419 = vld [vmem:[#allocation4 + $0x268] sm:$0xff]
    %v420 = vld [vmem:[#allocation4 + $0x270] sm:$0xff]
    %v421 = vld [vmem:[#allocation4 + $0x278] sm:$0xff]
    %v422 = vld [vmem:[#allocation4 + $0x280] sm:$0xff]
    %v423 = vld [vmem:[#allocation4 + $0x288] sm:$0xff]
    %v424 = vld [vmem:[#allocation4 + $0x290] sm:$0xff]
    %v425 = vld [vmem:[#allocation4 + $0x298] sm:$0xff]
    %v426 = vld [vmem:[#allocation4 + $0x2a0] sm:$0xff]
    %v427 = vld [vmem:[#allocation4 + $0x2a8] sm:$0xff]
    %v428 = vld [vmem:[#allocation4 + $0x2b0] sm:$0xff]
    %v429 = vld [vmem:[#allocation4 + $0x2b8] sm:$0xff]
    %v430 = vld [vmem:[#allocation4 + $0x2c0] sm:$0xff]
    %v431 = vld [vmem:[#allocation4 + $0x2c8] sm:$0xff]
    %v432 = vld [vmem:[#allocation4 + $0x2d0] sm:$0xff]
    %v433 = vld [vmem:[#allocation4 + $0x2d8] sm:$0xff]
    %v434 = vld [vmem:[#allocation4 + $0x2e0] sm:$0xff]
    %v435 = vld [vmem:[#allocation4 + $0x2e8] sm:$0xff]
    %v436 = vld [vmem:[#allocation4 + $0x2f0] sm:$0xff]
    %v437 = vld [vmem:[#allocation4 + $0x2f8] sm:$0xff]
    %v438 = vld [vmem:[#allocation4 + $0x300] sm:$0xff]
    %v439 = vld [vmem:[#allocation4 + $0x308] sm:$0xff]
    %v440 = vld [vmem:[#allocation4 + $0x310] sm:$0xff]
    %v441 = vld [vmem:[#allocation4 + $0x318] sm:$0xff]
    %v442 = vld [vmem:[#allocation4 + $0x320] sm:$0xff]
    %v443 = vld [vmem:[#allocation4 + $0x328] sm:$0xff]
    %v444 = vld [vmem:[#allocation4 + $0x330] sm:$0xff]
    %v445 = vld [vmem:[#allocation4 + $0x338] sm:$0xff]
    %v446 = vld [vmem:[#allocation4 + $0x340] sm:$0xff]
    %v447 = vld [vmem:[#allocation4 + $0x348] sm:$0xff]
    %v448 = vld [vmem:[#allocation4 + $0x350] sm:$0xff]
    %v449 = vld [vmem:[#allocation4 + $0x358] sm:$0xff]
    %v450 = vld [vmem:[#allocation4 + $0x360] sm:$0xff]
    %v451 = vld [vmem:[#allocation4 + $0x368] sm:$0xff]
    %v452 = vld [vmem:[#allocation4 + $0x370] sm:$0xff]
    %v453 = vld [vmem:[#allocation4 + $0x378] sm:$0xff]
    %v454 = vld [vmem:[#allocation4 + $0x380] sm:$0xff]
    %v455 = vld [vmem:[#allocation4 + $0x388] sm:$0xff]
    %v456 = vld [vmem:[#allocation4 + $0x390] sm:$0xff]
    %v457 = vld [vmem:[#allocation4 + $0x398] sm:$0xff]
    %v458 = vld [vmem:[#allocation4 + $0x3a0] sm:$0xff]
    %v459 = vld [vmem:[#allocation4 + $0x3a8] sm:$0xff]
    %v460 = vld [vmem:[#allocation4 + $0x3b0] sm:$0xff]
    %v461 = vld [vmem:[#allocation4 + $0x3b8] sm:$0xff]
    %v462 = vld [vmem:[#allocation4 + $0x3c0] sm:$0xff]
    %v463 = vld [vmem:[#allocation4 + $0x3c8] sm:$0xff]
    %v464 = vld [vmem:[#allocation4 + $0x3d0] sm:$0xff]
    %v465 = vld [vmem:[#allocation4 + $0x3d8] sm:$0xff]
    %v466 = vld [vmem:[#allocation4 + $0x3e0] sm:$0xff]
    %v467 = vld [vmem:[#allocation4 + $0x3e8] sm:$0xff]
    %v468 = vld [vmem:[#allocation4 + $0x3f0] sm:$0xff]
    %v469 = vld [vmem:[#allocation4 + $0x3f8] sm:$0xff]
    %v470 = vld [vmem:[#allocation4 + $0x400] sm:$0xff]
    %v471 = vld [vmem:[#allocation4 + $0x408] sm:$0xff]
    %v472 = vld [vmem:[#allocation4 + $0x410] sm:$0xff]
    %v473 = vld [vmem:[#allocation4 + $0x418] sm:$0xff]
    %v474 = vld [vmem:[#allocation4 + $0x420] sm:$0xff]
    %v475 = vld [vmem:[#allocation4 + $0x428] sm:$0xff]
    %v476 = vld [vmem:[#allocation4 + $0x430] sm:$0xff]
    %v477 = vld [vmem:[#allocation4 + $0x438] sm:$0xff]
    %v478 = vld [vmem:[#allocation4 + $0x440] sm:$0xff]
    %v479 = vld [vmem:[#allocation4 + $0x448] sm:$0xff]
    %v480 = vld [vmem:[#allocation4 + $0x450] sm:$0xff]
    %v481 = vld [vmem:[#allocation4 + $0x458] sm:$0xff]
    %v482 = vld [vmem:[#allocation4 + $0x460] sm:$0xff]
    %v483 = vld [vmem:[#allocation4 + $0x468] sm:$0xff]
    %v484 = vld [vmem:[#allocation4 + $0x470] sm:$0xff]
    %v485 = vld [vmem:[#allocation4 + $0x478] sm:$0xff]
    %v486 = vld [vmem:[#allocation4 + $0x480] sm:$0x77]
    %v487 = vld [vmem:[#allocation4 + $0x488] sm:$0x77]
    %v488 = vld [vmem:[#allocation4 + $0x490] sm:$0x77]
    %v489 = vld [vmem:[#allocation4 + $0x498] sm:$0x77]
    %v490 = vld [vmem:[#allocation4 + $0x4a0] sm:$0x77]
    %v491 = vld [vmem:[#allocation4 + $0x4a8] sm:$0x77]
    %v492 = vld [vmem:[#allocation4 + $0x4b0] sm:$0x77]
    %v493 = vld [vmem:[#allocation4 + $0x4b8] sm:$0x77]
    %v494 = vld [vmem:[#allocation4 + $0x4c0] sm:$0x77]
    %v495 = vld [vmem:[#allocation4 + $0x4c8] sm:$0x77]
    %v496 = vld [vmem:[#allocation4 + $0x4d0] sm:$0x77]
    %v497 = vld [vmem:[#allocation4 + $0x4d8] sm:$0x77]
    %v498 = vld [vmem:[#allocation4 + $0x4e0] sm:$0x77]
    %v499 = vld [vmem:[#allocation4 + $0x4e8] sm:$0x77]
    %v500 = vld [vmem:[#allocation4 + $0x4f0] sm:$0x77]
    %v501 = vld [vmem:[#allocation4 + $0x4f8] sm:$0x77]
    %v502 = vld [vmem:[#allocation4 + $0x500] sm:$0x77]
    %v503 = vld [vmem:[#allocation4 + $0x508] sm:$0x77]
    %v504 = vld [vmem:[#allocation4 + $0x510] sm:$0x77]
    %v505 = vld [vmem:[#allocation4 + $0x518] sm:$0x77]
    %v506 = vld [vmem:[#allocation4 + $0x520] sm:$0x77]
    %v507 = vld [vmem:[#allocation4 + $0x528] sm:$0x77]
    %v508 = vld [vmem:[#allocation4 + $0x530] sm:$0x77]
    %v509 = vld [vmem:[#allocation4 + $0x538] sm:$0x77]
    %v510 = vld [vmem:[#allocation4 + $0x540] sm:$0x77]
    %v511 = vld [vmem:[#allocation4 + $0x548] sm:$0x77]
    %v512 = vld [vmem:[#allocation4 + $0x550] sm:$0x77]
    %v513 = vld [vmem:[#allocation4 + $0x558] sm:$0x77]
    %v514 = vld [vmem:[#allocation4 + $0x560] sm:$0x77]
    %v515 = vld [vmem:[#allocation4 + $0x568] sm:$0x77]
    %v516 = vld [vmem:[#allocation4 + $0x570] sm:$0x77]
    %v517 = vld [vmem:[#allocation4 + $0x578] sm:$0x77]
    %v518 = vld [vmem:[#allocation4 + $0x580] sm:$0x77]
    %v519 = vld [vmem:[#allocation4 + $0x588] sm:$0x77]
    %v520 = vld [vmem:[#allocation4 + $0x590] sm:$0x77]
    %v521 = vld [vmem:[#allocation4 + $0x598] sm:$0x77]
    %v522 = vld [vmem:[#allocation4 + $0x5a0] sm:$0x77]
    %v523 = vld [vmem:[#allocation4 + $0x5a8] sm:$0x77]
    %v524 = vld [vmem:[#allocation4 + $0x5b0] sm:$0x77]
    %v525 = vld [vmem:[#allocation4 + $0x5b8] sm:$0x77]
    %v526 = vld [vmem:[#allocation4 + $0x5c0] sm:$0x77]
    %v527 = vld [vmem:[#allocation4 + $0x5c8] sm:$0x77]
    %v528 = vld [vmem:[#allocation4 + $0x5d0] sm:$0x77]
    %v529 = vld [vmem:[#allocation4 + $0x5d8] sm:$0x77]
    %v530 = vld [vmem:[#allocation4 + $0x5e0] sm:$0x77]
    %v531 = vld [vmem:[#allocation4 + $0x5e8] sm:$0x77]
    %v532 = vld [vmem:[#allocation4 + $0x5f0] sm:$0x77]
    %v533 = vld [vmem:[#allocation4 + $0x5f8] sm:$0x77]
    %v534 = vld [vmem:[#allocation6] sm:$0x1]
    %v536 = vlaneseq
    %v537 = vshrl.u32 %v536, 7
    %v538 = vsub.s32 0, %v537
    %v539 = vrot.slane %v534, %v538
    %v829 = vunpack.c.l.b16 %v54
    %v830 = vunpack.c.h.b16 %v54
    %v831 = vunpack.c.l.b16 %v55
    %v832 = vunpack.c.h.b16 %v55
    %v833 = vunpack.c.l.b16 %v56
    %v834 = vunpack.c.h.b16 %v56
    %v835 = vunpack.c.l.b16 %v57
    %v836 = vunpack.c.h.b16 %v57
    %v837 = vunpack.c.l.b16 %v58
    %v838 = vunpack.c.h.b16 %v58
    %v839 = vunpack.c.l.b16 %v59
    %v840 = vunpack.c.h.b16 %v59
    %v841 = vunpack.c.l.b16 %v60
    %v842 = vunpack.c.h.b16 %v60
    %v843 = vunpack.c.l.b16 %v61
    %v844 = vunpack.c.h.b16 %v61
    %v845 = vunpack.c.l.b16 %v62
    %v846 = vunpack.c.h.b16 %v62
    %v847 = vunpack.c.l.b16 %v63
    %v848 = vunpack.c.h.b16 %v63
    %v849 = vunpack.c.l.b16 %v64
    %v850 = vunpack.c.h.b16 %v64
    %v851 = vunpack.c.l.b16 %v65
    %v852 = vunpack.c.h.b16 %v65
    %v853 = vunpack.c.l.b16 %v66
    %v854 = vunpack.c.h.b16 %v66
    %v855 = vunpack.c.l.b16 %v67
    %v856 = vunpack.c.h.b16 %v67
    %v857 = vunpack.c.l.b16 %v68
    %v858 = vunpack.c.h.b16 %v68
    %v859 = vunpack.c.l.b16 %v69
    %v860 = vunpack.c.h.b16 %v69
    %v861 = vunpack.c.l.b16 %v70
    %v862 = vunpack.c.h.b16 %v70
    %v863 = vunpack.c.l.b16 %v71
    %v864 = vunpack.c.h.b16 %v71
    %v865 = vunpack.c.l.b16 %v72
    %v866 = vunpack.c.h.b16 %v72
    %v867 = vunpack.c.l.b16 %v73
    %v868 = vunpack.c.h.b16 %v73
    %v869 = vunpack.c.l.b16 %v74
    %v870 = vunpack.c.h.b16 %v74
    %v871 = vunpack.c.l.b16 %v75
    %v872 = vunpack.c.h.b16 %v75
    %v873 = vunpack.c.l.b16 %v76
    %v874 = vunpack.c.h.b16 %v76
    %v875 = vunpack.c.l.b16 %v77
    %v876 = vunpack.c.h.b16 %v77
    %v877 = vunpack.c.l.b16 %v78
    %v878 = vunpack.c.h.b16 %v78
    %v879 = vunpack.c.l.b16 %v79
    %v880 = vunpack.c.h.b16 %v79
    %v881 = vunpack.c.l.b16 %v80
    %v882 = vunpack.c.h.b16 %v80
    %v883 = vunpack.c.l.b16 %v81
    %v884 = vunpack.c.h.b16 %v81
    %v885 = vunpack.c.l.b16 %v82
    %v886 = vunpack.c.h.b16 %v82
    %v887 = vunpack.c.l.b16 %v83
    %v888 = vunpack.c.h.b16 %v83
    %v889 = vunpack.c.l.b16 %v84
    %v890 = vunpack.c.h.b16 %v84
    %v891 = vunpack.c.l.b16 %v85
    %v892 = vunpack.c.h.b16 %v85
    %v893 = vunpack.c.l.b16 %v86
    %v894 = vunpack.c.h.b16 %v86
    %v895 = vunpack.c.l.b16 %v87
    %v896 = vunpack.c.h.b16 %v87
    %v897 = vunpack.c.l.b16 %v88
    %v898 = vunpack.c.h.b16 %v88
    %v899 = vunpack.c.l.b16 %v89
    %v900 = vunpack.c.h.b16 %v89
    %v901 = vunpack.c.l.b16 %v90
    %v902 = vunpack.c.h.b16 %v90
    %v903 = vunpack.c.l.b16 %v91
    %v904 = vunpack.c.h.b16 %v91
    %v905 = vunpack.c.l.b16 %v92
    %v906 = vunpack.c.h.b16 %v92
    %v907 = vunpack.c.l.b16 %v93
    %v908 = vunpack.c.h.b16 %v93
    %v909 = vunpack.c.l.b16 %v94
    %v910 = vunpack.c.h.b16 %v94
    %v911 = vunpack.c.l.b16 %v95
    %v912 = vunpack.c.h.b16 %v95
    %v913 = vunpack.c.l.b16 %v96
    %v914 = vunpack.c.h.b16 %v96
    %v915 = vunpack.c.l.b16 %v97
    %v916 = vunpack.c.h.b16 %v97
    %v917 = vunpack.c.l.b16 %v98
    %v918 = vunpack.c.h.b16 %v98
    %v919 = vunpack.c.l.b16 %v99
    %v920 = vunpack.c.h.b16 %v99
    %v921 = vunpack.c.l.b16 %v100
    %v922 = vunpack.c.h.b16 %v100
    %v923 = vunpack.c.l.b16 %v101
    %v924 = vunpack.c.h.b16 %v101
    %v925 = vunpack.c.l.b16 %v102
    %v926 = vunpack.c.h.b16 %v102
    %v927 = vunpack.c.l.b16 %v103
    %v928 = vunpack.c.h.b16 %v103
    %v929 = vunpack.c.l.b16 %v104
    %v930 = vunpack.c.h.b16 %v104
    %v931 = vunpack.c.l.b16 %v105
    %v932 = vunpack.c.h.b16 %v105
    %v933 = vunpack.c.l.b16 %v106
    %v934 = vunpack.c.h.b16 %v106
    %v935 = vunpack.c.l.b16 %v107
    %v936 = vunpack.c.h.b16 %v107
    %v937 = vunpack.c.l.b16 %v108
    %v938 = vunpack.c.h.b16 %v108
    %v939 = vunpack.c.l.b16 %v109
    %v940 = vunpack.c.h.b16 %v109
    %v941 = vunpack.c.l.b16 %v110
    %v942 = vunpack.c.h.b16 %v110
    %v943 = vunpack.c.l.b16 %v111
    %v944 = vunpack.c.h.b16 %v111
    %v945 = vunpack.c.l.b16 %v112
    %v946 = vunpack.c.h.b16 %v112
    %v947 = vunpack.c.l.b16 %v113
    %v948 = vunpack.c.h.b16 %v113
    %v949 = vunpack.c.l.b16 %v114
    %v950 = vunpack.c.h.b16 %v114
    %v951 = vunpack.c.l.b16 %v115
    %v952 = vunpack.c.h.b16 %v115
    %v953 = vunpack.c.l.b16 %v116
    %v954 = vunpack.c.h.b16 %v116
    %v955 = vunpack.c.l.b16 %v117
    %v956 = vunpack.c.h.b16 %v117
    %v957 = vunpack.c.l.b16 %v118
    %v958 = vunpack.c.h.b16 %v118
    %v959 = vunpack.c.l.b16 %v119
    %v960 = vunpack.c.h.b16 %v119
    %v961 = vunpack.c.l.b16 %v120
    %v962 = vunpack.c.h.b16 %v120
    %v963 = vunpack.c.l.b16 %v121
    %v964 = vunpack.c.h.b16 %v121
    %v965 = vunpack.c.l.b16 %v122
    %v966 = vunpack.c.h.b16 %v122
    %v967 = vunpack.c.l.b16 %v123
    %v968 = vunpack.c.h.b16 %v123
    %v969 = vunpack.c.l.b16 %v124
    %v970 = vunpack.c.h.b16 %v124
    %v971 = vunpack.c.l.b16 %v125
    %v972 = vunpack.c.h.b16 %v125
    %v973 = vunpack.c.l.b16 %v126
    %v974 = vunpack.c.h.b16 %v126
    %v975 = vunpack.c.l.b16 %v127
    %v976 = vunpack.c.h.b16 %v127
    %v977 = vunpack.c.l.b16 %v128
    %v978 = vunpack.c.h.b16 %v128
    %v979 = vunpack.c.l.b16 %v129
    %v980 = vunpack.c.h.b16 %v129
    %v981 = vunpack.c.l.b16 %v130
    %v982 = vunpack.c.h.b16 %v130
    %v983 = vunpack.c.l.b16 %v131
    %v984 = vunpack.c.h.b16 %v131
    %v985 = vunpack.c.l.b16 %v132
    %v986 = vunpack.c.h.b16 %v132
    %v987 = vunpack.c.l.b16 %v133
    %v988 = vunpack.c.h.b16 %v133
    %v989 = vunpack.c.l.b16 %v134
    %v990 = vunpack.c.h.b16 %v134
    %v991 = vunpack.c.l.b16 %v135
    %v992 = vunpack.c.h.b16 %v135
    %v993 = vunpack.c.l.b16 %v136
    %v994 = vunpack.c.h.b16 %v136
    %v995 = vunpack.c.l.b16 %v137
    %v996 = vunpack.c.h.b16 %v137
    %v997 = vunpack.c.l.b16 %v138
    %v998 = vunpack.c.h.b16 %v138
    %v999 = vunpack.c.l.b16 %v139
    %v1000 = vunpack.c.h.b16 %v139
    %v1001 = vunpack.c.l.b16 %v140
    %v1002 = vunpack.c.h.b16 %v140
    %v1003 = vunpack.c.l.b16 %v141
    %v1004 = vunpack.c.h.b16 %v141
    %v1005 = vunpack.c.l.b16 %v142
    %v1006 = vunpack.c.h.b16 %v142
    %v1007 = vunpack.c.l.b16 %v143
    %v1008 = vunpack.c.h.b16 %v143
    %v1009 = vunpack.c.l.b16 %v144
    %v1010 = vunpack.c.h.b16 %v144
    %v1011 = vunpack.c.l.b16 %v145
    %v1012 = vunpack.c.h.b16 %v145
    %v1013 = vunpack.c.l.b16 %v146
    %v1014 = vunpack.c.h.b16 %v146
    %v1015 = vunpack.c.l.b16 %v147
    %v1016 = vunpack.c.h.b16 %v147
    %v1017 = vunpack.c.l.b16 %v148
    %v1018 = vunpack.c.h.b16 %v148
    %v1019 = vunpack.c.l.b16 %v149
    %v1020 = vunpack.c.h.b16 %v149
    %v1021 = vunpack.c.l.b16 %v150
    %v1022 = vunpack.c.h.b16 %v150
    %v1023 = vunpack.c.l.b16 %v151
    %v1024 = vunpack.c.h.b16 %v151
    %v1025 = vunpack.c.l.b16 %v152
    %v1026 = vunpack.c.h.b16 %v152
    %v1027 = vunpack.c.l.b16 %v153
    %v1028 = vunpack.c.h.b16 %v153
    %v1029 = vunpack.c.l.b16 %v154
    %v1030 = vunpack.c.h.b16 %v154
    %v1031 = vunpack.c.l.b16 %v155
    %v1032 = vunpack.c.h.b16 %v155
    %v1033 = vunpack.c.l.b16 %v156
    %v1034 = vunpack.c.h.b16 %v156
    %v1035 = vunpack.c.l.b16 %v157
    %v1036 = vunpack.c.h.b16 %v157
    %v1037 = vunpack.c.l.b16 %v158
    %v1038 = vunpack.c.h.b16 %v158
    %v1039 = vunpack.c.l.b16 %v159
    %v1040 = vunpack.c.h.b16 %v159
    %v1041 = vunpack.c.l.b16 %v160
    %v1042 = vunpack.c.h.b16 %v160
    %v1043 = vunpack.c.l.b16 %v161
    %v1044 = vunpack.c.h.b16 %v161
    %v1045 = vunpack.c.l.b16 %v162
    %v1046 = vunpack.c.h.b16 %v162
    %v1047 = vunpack.c.l.b16 %v163
    %v1048 = vunpack.c.h.b16 %v163
    %v1049 = vunpack.c.l.b16 %v164
    %v1050 = vunpack.c.h.b16 %v164
    %v1051 = vunpack.c.l.b16 %v165
    %v1052 = vunpack.c.h.b16 %v165
    %v1053 = vunpack.c.l.b16 %v166
    %v1054 = vunpack.c.h.b16 %v166
    %v1055 = vunpack.c.l.b16 %v167
    %v1056 = vunpack.c.h.b16 %v167
    %v1057 = vunpack.c.l.b16 %v168
    %v1058 = vunpack.c.h.b16 %v168
    %v1059 = vunpack.c.l.b16 %v169
    %v1060 = vunpack.c.h.b16 %v169
    %v1061 = vunpack.c.l.b16 %v170
    %v1062 = vunpack.c.h.b16 %v170
    %v1063 = vunpack.c.l.b16 %v171
    %v1064 = vunpack.c.h.b16 %v171
    %v1065 = vunpack.c.l.b16 %v172
    %v1066 = vunpack.c.h.b16 %v172
    %v1067 = vunpack.c.l.b16 %v173
    %v1068 = vunpack.c.h.b16 %v173
    %v1069 = vunpack.c.l.b16 %v174
    %v1070 = vunpack.c.h.b16 %v174
    %v1071 = vunpack.c.l.b16 %v175
    %v1072 = vunpack.c.h.b16 %v175
    %v1073 = vunpack.c.l.b16 %v176
    %v1074 = vunpack.c.h.b16 %v176
    %v1075 = vunpack.c.l.b16 %v177
    %v1076 = vunpack.c.h.b16 %v177
    %v1077 = vunpack.c.l.b16 %v178
    %v1078 = vunpack.c.h.b16 %v178
    %v1079 = vunpack.c.l.b16 %v179
    %v1080 = vunpack.c.h.b16 %v179
    %v1081 = vunpack.c.l.b16 %v180
    %v1082 = vunpack.c.h.b16 %v180
    %v1083 = vunpack.c.l.b16 %v181
    %v1084 = vunpack.c.h.b16 %v181
    %v1085 = vunpack.c.l.b16 %v182
    %v1086 = vunpack.c.h.b16 %v182
    %v1087 = vunpack.c.l.b16 %v183
    %v1088 = vunpack.c.h.b16 %v183
    %v1089 = vunpack.c.l.b16 %v184
    %v1090 = vunpack.c.h.b16 %v184
    %v1091 = vunpack.c.l.b16 %v185
    %v1092 = vunpack.c.h.b16 %v185
    %v1093 = vunpack.c.l.b16 %v186
    %v1094 = vunpack.c.h.b16 %v186
    %v1095 = vunpack.c.l.b16 %v187
    %v1096 = vunpack.c.h.b16 %v187
    %v1097 = vunpack.c.l.b16 %v188
    %v1098 = vunpack.c.h.b16 %v188
    %v1099 = vunpack.c.l.b16 %v189
    %v1100 = vunpack.c.h.b16 %v189
    %v1101 = vunpack.c.l.b16 %v190
    %v1102 = vunpack.c.h.b16 %v190
    %v1103 = vunpack.c.l.b16 %v191
    %v1104 = vunpack.c.h.b16 %v191
    %v1105 = vunpack.c.l.b16 %v192
    %v1106 = vunpack.c.h.b16 %v192
    %v1107 = vunpack.c.l.b16 %v193
    %v1108 = vunpack.c.h.b16 %v193
    %v1109 = vunpack.c.l.b16 %v194
    %v1110 = vunpack.c.h.b16 %v194
    %v1111 = vunpack.c.l.b16 %v195
    %v1112 = vunpack.c.h.b16 %v195
    %v1113 = vunpack.c.l.b16 %v196
    %v1114 = vunpack.c.h.b16 %v196
    %v1115 = vunpack.c.l.b16 %v197
    %v1116 = vunpack.c.h.b16 %v197
    %v1117 = vunpack.c.l.b16 %v198
    %v1118 = vunpack.c.h.b16 %v198
    %v1119 = vunpack.c.l.b16 %v199
    %v1120 = vunpack.c.h.b16 %v199
    %v1121 = vunpack.c.l.b16 %v200
    %v1122 = vunpack.c.h.b16 %v200
    %v1123 = vunpack.c.l.b16 %v201
    %v1124 = vunpack.c.h.b16 %v201
    %v1125 = vunpack.c.l.b16 %v202
    %v1126 = vunpack.c.h.b16 %v202
    %v1127 = vunpack.c.l.b16 %v203
    %v1128 = vunpack.c.h.b16 %v203
    %v1129 = vunpack.c.l.b16 %v204
    %v1130 = vunpack.c.h.b16 %v204
    %v1131 = vunpack.c.l.b16 %v205
    %v1132 = vunpack.c.h.b16 %v205
    %v1133 = vunpack.c.l.b16 %v206
    %v1134 = vunpack.c.h.b16 %v206
    %v1135 = vunpack.c.l.b16 %v207
    %v1136 = vunpack.c.h.b16 %v207
    %v1137 = vunpack.c.l.b16 %v208
    %v1138 = vunpack.c.h.b16 %v208
    %v1139 = vunpack.c.l.b16 %v209
    %v1140 = vunpack.c.h.b16 %v209
    %v1141 = vunpack.c.l.b16 %v210
    %v1142 = vunpack.c.h.b16 %v210
    %v1143 = vunpack.c.l.b16 %v211
    %v1144 = vunpack.c.h.b16 %v211
    %v1145 = vunpack.c.l.b16 %v212
    %v1146 = vunpack.c.h.b16 %v212
    %v1147 = vunpack.c.l.b16 %v213
    %v1148 = vunpack.c.h.b16 %v213
    %v1149 = vunpack.c.l.b16 %v214
    %v1150 = vunpack.c.h.b16 %v214
    %v1151 = vunpack.c.l.b16 %v215
    %v1152 = vunpack.c.h.b16 %v215
    %v1153 = vunpack.c.l.b16 %v216
    %v1154 = vunpack.c.h.b16 %v216
    %v1155 = vunpack.c.l.b16 %v217
    %v1156 = vunpack.c.h.b16 %v217
    %v1157 = vunpack.c.l.b16 %v218
    %v1158 = vunpack.c.h.b16 %v218
    %v1159 = vunpack.c.l.b16 %v219
    %v1160 = vunpack.c.h.b16 %v219
    %v1161 = vunpack.c.l.b16 %v220
    %v1162 = vunpack.c.h.b16 %v220
    %v1163 = vunpack.c.l.b16 %v221
    %v1164 = vunpack.c.h.b16 %v221
    %v1165 = vunpack.c.l.b16 %v222
    %v1166 = vunpack.c.h.b16 %v222
    %v1167 = vunpack.c.l.b16 %v223
    %v1168 = vunpack.c.h.b16 %v223
    %v1169 = vunpack.c.l.b16 %v224
    %v1170 = vunpack.c.h.b16 %v224
    %v1171 = vunpack.c.l.b16 %v225
    %v1172 = vunpack.c.h.b16 %v225
    %v1173 = vunpack.c.l.b16 %v226
    %v1174 = vunpack.c.h.b16 %v226
    %v1175 = vunpack.c.l.b16 %v227
    %v1176 = vunpack.c.h.b16 %v227
    %v1177 = vunpack.c.l.b16 %v228
    %v1178 = vunpack.c.h.b16 %v228
    %v1179 = vunpack.c.l.b16 %v229
    %v1180 = vunpack.c.h.b16 %v229
    %v1181 = vunpack.c.l.b16 %v230
    %v1182 = vunpack.c.h.b16 %v230
    %v1183 = vunpack.c.l.b16 %v231
    %v1184 = vunpack.c.h.b16 %v231
    %v1185 = vunpack.c.l.b16 %v232
    %v1186 = vunpack.c.h.b16 %v232
    %v1187 = vunpack.c.l.b16 %v233
    %v1188 = vunpack.c.h.b16 %v233
    %v1189 = vunpack.c.l.b16 %v234
    %v1190 = vunpack.c.h.b16 %v234
    %v1191 = vunpack.c.l.b16 %v235
    %v1192 = vunpack.c.h.b16 %v235
    %v1193 = vunpack.c.l.b16 %v236
    %v1194 = vunpack.c.h.b16 %v236
    %v1195 = vunpack.c.l.b16 %v237
    %v1196 = vunpack.c.h.b16 %v237
    %v1197 = vunpack.c.l.b16 %v238
    %v1198 = vunpack.c.h.b16 %v238
    %v1199 = vunpack.c.l.b16 %v239
    %v1200 = vunpack.c.h.b16 %v239
    %v1201 = vunpack.c.l.b16 %v240
    %v1202 = vunpack.c.h.b16 %v240
    %v1203 = vunpack.c.l.b16 %v241
    %v1204 = vunpack.c.h.b16 %v241
    %v1205 = vunpack.c.l.b16 %v242
    %v1206 = vunpack.c.h.b16 %v242
    %v1207 = vunpack.c.l.b16 %v243
    %v1208 = vunpack.c.h.b16 %v243
    %v1209 = vunpack.c.l.b16 %v244
    %v1210 = vunpack.c.h.b16 %v244
    %v1211 = vunpack.c.l.b16 %v245
    %v1212 = vunpack.c.h.b16 %v245
    %v1213 = vunpack.c.l.b16 %v246
    %v1214 = vunpack.c.h.b16 %v246
    %v1215 = vunpack.c.l.b16 %v247
    %v1216 = vunpack.c.h.b16 %v247
    %v1217 = vunpack.c.l.b16 %v248
    %v1218 = vunpack.c.h.b16 %v248
    %v1219 = vunpack.c.l.b16 %v249
    %v1220 = vunpack.c.h.b16 %v249
    %v1221 = vunpack.c.l.b16 %v250
    %v1222 = vunpack.c.h.b16 %v250
    %v1223 = vunpack.c.l.b16 %v251
    %v1224 = vunpack.c.h.b16 %v251
    %v1225 = vunpack.c.l.b16 %v252
    %v1226 = vunpack.c.h.b16 %v252
    %v1227 = vunpack.c.l.b16 %v253
    %v1228 = vunpack.c.h.b16 %v253
    %v1229 = vunpack.c.l.b16 %v254
    %v1230 = vunpack.c.h.b16 %v254
    %v1231 = vunpack.c.l.b16 %v255
    %v1232 = vunpack.c.h.b16 %v255
    %v1233 = vunpack.c.l.b16 %v256
    %v1234 = vunpack.c.h.b16 %v256
    %v1235 = vunpack.c.l.b16 %v257
    %v1236 = vunpack.c.h.b16 %v257
    %v1237 = vunpack.c.l.b16 %v258
    %v1238 = vunpack.c.h.b16 %v258
    %v1239 = vunpack.c.l.b16 %v259
    %v1240 = vunpack.c.h.b16 %v259
    %v1241 = vunpack.c.l.b16 %v260
    %v1242 = vunpack.c.h.b16 %v260
    %v1243 = vunpack.c.l.b16 %v261
    %v1244 = vunpack.c.h.b16 %v261
    %v1245 = vunpack.c.l.b16 %v262
    %v1246 = vunpack.c.h.b16 %v262
    %v1247 = vunpack.c.l.b16 %v263
    %v1248 = vunpack.c.h.b16 %v263
    %v1249 = vunpack.c.l.b16 %v264
    %v1250 = vunpack.c.h.b16 %v264
    %v1251 = vunpack.c.l.b16 %v265
    %v1252 = vunpack.c.h.b16 %v265
    %v1253 = vunpack.c.l.b16 %v266
    %v1254 = vunpack.c.h.b16 %v266
    %v1255 = vunpack.c.l.b16 %v267
    %v1256 = vunpack.c.h.b16 %v267
    %v1257 = vunpack.c.l.b16 %v268
    %v1258 = vunpack.c.h.b16 %v268
    %v1259 = vunpack.c.l.b16 %v269
    %v1260 = vunpack.c.h.b16 %v269
    %v1261 = vunpack.c.l.b16 %v270
    %v1262 = vunpack.c.h.b16 %v270
    %v1263 = vunpack.c.l.b16 %v271
    %v1264 = vunpack.c.h.b16 %v271
    %v1265 = vunpack.c.l.b16 %v272
    %v1266 = vunpack.c.h.b16 %v272
    %v1267 = vunpack.c.l.b16 %v273
    %v1268 = vunpack.c.h.b16 %v273
    %v1269 = vunpack.c.l.b16 %v274
    %v1270 = vunpack.c.h.b16 %v274
    %v1271 = vunpack.c.l.b16 %v275
    %v1272 = vunpack.c.h.b16 %v275
    %v1273 = vunpack.c.l.b16 %v276
    %v1274 = vunpack.c.h.b16 %v276
    %v1275 = vunpack.c.l.b16 %v277
    %v1276 = vunpack.c.h.b16 %v277
    %v1277 = vunpack.c.l.b16 %v278
    %v1278 = vunpack.c.h.b16 %v278
    %v1279 = vunpack.c.l.b16 %v279
    %v1280 = vunpack.c.h.b16 %v279
    %v1281 = vunpack.c.l.b16 %v280
    %v1282 = vunpack.c.h.b16 %v280
    %v1283 = vunpack.c.l.b16 %v281
    %v1284 = vunpack.c.h.b16 %v281
    %v1285 = vunpack.c.l.b16 %v282
    %v1286 = vunpack.c.h.b16 %v282
    %v1287 = vunpack.c.l.b16 %v283
    %v1288 = vunpack.c.h.b16 %v283
    %v1289 = vunpack.c.l.b16 %v284
    %v1290 = vunpack.c.h.b16 %v284
    %v1291 = vunpack.c.l.b16 %v285
    %v1292 = vunpack.c.h.b16 %v285
    %v1293 = vunpack.c.l.b16 %v286
    %v1294 = vunpack.c.h.b16 %v286
    %v1295 = vunpack.c.l.b16 %v287
    %v1296 = vunpack.c.h.b16 %v287
    %v1297 = vunpack.c.l.b16 %v288
    %v1298 = vunpack.c.h.b16 %v288
    %v1299 = vunpack.c.l.b16 %v289
    %v1300 = vunpack.c.h.b16 %v289
    %v1301 = vunpack.c.l.b16 %v290
    %v1302 = vunpack.c.h.b16 %v290
    %v1303 = vunpack.c.l.b16 %v291
    %v1304 = vunpack.c.h.b16 %v291
    %v1305 = vunpack.c.l.b16 %v292
    %v1306 = vunpack.c.h.b16 %v292
    %v1307 = vunpack.c.l.b16 %v293
    %v1308 = vunpack.c.h.b16 %v293
    %v1309 = vunpack.c.l.b16 %v294
    %v1310 = vunpack.c.h.b16 %v294
    %v1311 = vunpack.c.l.b16 %v295
    %v1312 = vunpack.c.h.b16 %v295
    %v1313 = vunpack.c.l.b16 %v296
    %v1314 = vunpack.c.h.b16 %v296
    %v1315 = vunpack.c.l.b16 %v297
    %v1316 = vunpack.c.h.b16 %v297
    %v1317 = vunpack.c.l.b16 %v298
    %v1318 = vunpack.c.h.b16 %v298
    %v1319 = vunpack.c.l.b16 %v299
    %v1320 = vunpack.c.h.b16 %v299
    %v1321 = vunpack.c.l.b16 %v300
    %v1322 = vunpack.c.h.b16 %v300
    %v1323 = vunpack.c.l.b16 %v301
    %v1324 = vunpack.c.h.b16 %v301
    %v1325 = vunpack.c.l.b16 %v302
    %v1326 = vunpack.c.h.b16 %v302
    %v1327 = vunpack.c.l.b16 %v303
    %v1328 = vunpack.c.h.b16 %v303
    %v1329 = vunpack.c.l.b16 %v304
    %v1330 = vunpack.c.h.b16 %v304
    %v1331 = vunpack.c.l.b16 %v305
    %v1332 = vunpack.c.h.b16 %v305
    %v1333 = vunpack.c.l.b16 %v306
    %v1334 = vunpack.c.h.b16 %v306
    %v1335 = vunpack.c.l.b16 %v307
    %v1336 = vunpack.c.h.b16 %v307
    %v1337 = vunpack.c.l.b16 %v308
    %v1338 = vunpack.c.h.b16 %v308
    %v1339 = vunpack.c.l.b16 %v309
    %v1340 = vunpack.c.h.b16 %v309
    %v1341 = vunpack.c.l.b16 %v310
    %v1342 = vunpack.c.h.b16 %v310
    %v1343 = vunpack.c.l.b16 %v311
    %v1344 = vunpack.c.h.b16 %v311
    %v1345 = vunpack.c.l.b16 %v312
    %v1346 = vunpack.c.h.b16 %v312
    %v1347 = vunpack.c.l.b16 %v313
    %v1348 = vunpack.c.h.b16 %v313
    %v1349 = vunpack.c.l.b16 %v314
    %v1350 = vunpack.c.h.b16 %v314
    %v1351 = vunpack.c.l.b16 %v315
    %v1352 = vunpack.c.h.b16 %v315
    %v1353 = vunpack.c.l.b16 %v316
    %v1354 = vunpack.c.h.b16 %v316
    %v1355 = vunpack.c.l.b16 %v317
    %v1356 = vunpack.c.h.b16 %v317
    %v1357 = vunpack.c.l.b16 %v318
    %v1358 = vunpack.c.h.b16 %v318
    %v1359 = vunpack.c.l.b16 %v319
    %v1360 = vunpack.c.h.b16 %v319
    %v1361 = vunpack.c.l.b16 %v320
    %v1362 = vunpack.c.h.b16 %v320
    %v1363 = vunpack.c.l.b16 %v321
    %v1364 = vunpack.c.h.b16 %v321
    %v1365 = vunpack.c.l.b16 %v322
    %v1366 = vunpack.c.h.b16 %v322
    %v1367 = vunpack.c.l.b16 %v323
    %v1368 = vunpack.c.h.b16 %v323
    %v1369 = vunpack.c.l.b16 %v324
    %v1370 = vunpack.c.h.b16 %v324
    %v1371 = vunpack.c.l.b16 %v325
    %v1372 = vunpack.c.h.b16 %v325
    %v1373 = vunpack.c.l.b16 %v326
    %v1374 = vunpack.c.h.b16 %v326
    %v1375 = vunpack.c.l.b16 %v327
    %v1376 = vunpack.c.h.b16 %v327
    %v1377 = vunpack.c.l.b16 %v328
    %v1378 = vunpack.c.h.b16 %v328
    %v1379 = vunpack.c.l.b16 %v329
    %v1380 = vunpack.c.h.b16 %v329
    %v1381 = vunpack.c.l.b16 %v330
    %v1382 = vunpack.c.h.b16 %v330
    %v1383 = vunpack.c.l.b16 %v331
    %v1384 = vunpack.c.h.b16 %v331
    %v1385 = vunpack.c.l.b16 %v332
    %v1386 = vunpack.c.h.b16 %v332
    %v1387 = vunpack.c.l.b16 %v333
    %v1388 = vunpack.c.h.b16 %v333
    %v1389 = vunpack.c.l.b16 %v334
    %v1390 = vunpack.c.h.b16 %v334
    %v1391 = vunpack.c.l.b16 %v335
    %v1392 = vunpack.c.h.b16 %v335
    %v1393 = vunpack.c.l.b16 %v336
    %v1394 = vunpack.c.h.b16 %v336
    %v1395 = vunpack.c.l.b16 %v337
    %v1396 = vunpack.c.h.b16 %v337
    %v1397 = vunpack.c.l.b16 %v338
    %v1398 = vunpack.c.h.b16 %v338
    %v1399 = vunpack.c.l.b16 %v339
    %v1400 = vunpack.c.h.b16 %v339
    %v1401 = vunpack.c.l.b16 %v340
    %v1402 = vunpack.c.h.b16 %v340
    %v1403 = vunpack.c.l.b16 %v341
    %v1404 = vunpack.c.h.b16 %v341
    %v1405 = vpack.c.b16 %v925, %v829
    %v1406 = vpack.c.b16 %v926, %v830
    %v1407 = vpack.c.b16 %v927, %v831
    %v1408 = vpack.c.b16 %v928, %v832
    %v1409 = vpack.c.b16 %v929, %v833
    %v1410 = vpack.c.b16 %v930, %v834
    %v1411 = vpack.c.b16 %v931, %v835
    %v1412 = vpack.c.b16 %v932, %v836
    %v1413 = vpack.c.b16 %v933, %v837
    %v1414 = vpack.c.b16 %v934, %v838
    %v1415 = vpack.c.b16 %v935, %v839
    %v1416 = vpack.c.b16 %v936, %v840
    %v1417 = vpack.c.b16 %v937, %v841
    %v1418 = vpack.c.b16 %v938, %v842
    %v1419 = vpack.c.b16 %v939, %v843
    %v1420 = vpack.c.b16 %v940, %v844
    %v1421 = vpack.c.b16 %v941, %v845
    %v1422 = vpack.c.b16 %v942, %v846
    %v1423 = vpack.c.b16 %v943, %v847
    %v1424 = vpack.c.b16 %v944, %v848
    %v1425 = vpack.c.b16 %v945, %v849
    %v1426 = vpack.c.b16 %v946, %v850
    %v1427 = vpack.c.b16 %v947, %v851
    %v1428 = vpack.c.b16 %v948, %v852
    %v1429 = vpack.c.b16 %v949, %v853
    %v1430 = vpack.c.b16 %v950, %v854
    %v1431 = vpack.c.b16 %v951, %v855
    %v1432 = vpack.c.b16 %v952, %v856
    %v1433 = vpack.c.b16 %v953, %v857
    %v1434 = vpack.c.b16 %v954, %v858
    %v1435 = vpack.c.b16 %v955, %v859
    %v1436 = vpack.c.b16 %v956, %v860
    %v1437 = vpack.c.b16 %v957, %v861
    %v1438 = vpack.c.b16 %v958, %v862
    %v1439 = vpack.c.b16 %v959, %v863
    %v1440 = vpack.c.b16 %v960, %v864
    %v1441 = vpack.c.b16 %v961, %v865
    %v1442 = vpack.c.b16 %v962, %v866
    %v1443 = vpack.c.b16 %v963, %v867
    %v1444 = vpack.c.b16 %v964, %v868
    %v1445 = vpack.c.b16 %v965, %v869
    %v1446 = vpack.c.b16 %v966, %v870
    %v1447 = vpack.c.b16 %v967, %v871
    %v1448 = vpack.c.b16 %v968, %v872
    %v1449 = vpack.c.b16 %v969, %v873
    %v1450 = vpack.c.b16 %v970, %v874
    %v1451 = vpack.c.b16 %v971, %v875
    %v1452 = vpack.c.b16 %v972, %v876
    %v1453 = vpack.c.b16 %v973, %v877
    %v1454 = vpack.c.b16 %v974, %v878
    %v1455 = vpack.c.b16 %v975, %v879
    %v1456 = vpack.c.b16 %v976, %v880
    %v1457 = vpack.c.b16 %v977, %v881
    %v1458 = vpack.c.b16 %v978, %v882
    %v1459 = vpack.c.b16 %v979, %v883
    %v1460 = vpack.c.b16 %v980, %v884
    %v1461 = vpack.c.b16 %v981, %v885
    %v1462 = vpack.c.b16 %v982, %v886
    %v1463 = vpack.c.b16 %v983, %v887
    %v1464 = vpack.c.b16 %v984, %v888
    %v1465 = vpack.c.b16 %v985, %v889
    %v1466 = vpack.c.b16 %v986, %v890
    %v1467 = vpack.c.b16 %v987, %v891
    %v1468 = vpack.c.b16 %v988, %v892
    %v1469 = vpack.c.b16 %v989, %v893
    %v1470 = vpack.c.b16 %v990, %v894
    %v1471 = vpack.c.b16 %v991, %v895
    %v1472 = vpack.c.b16 %v992, %v896
    %v1473 = vpack.c.b16 %v993, %v897
    %v1474 = vpack.c.b16 %v994, %v898
    %v1475 = vpack.c.b16 %v995, %v899
    %v1476 = vpack.c.b16 %v996, %v900
    %v1477 = vpack.c.b16 %v997, %v901
    %v1478 = vpack.c.b16 %v998, %v902
    %v1479 = vpack.c.b16 %v999, %v903
    %v1480 = vpack.c.b16 %v1000, %v904
    %v1481 = vpack.c.b16 %v1001, %v905
    %v1482 = vpack.c.b16 %v1002, %v906
    %v1483 = vpack.c.b16 %v1003, %v907
    %v1484 = vpack.c.b16 %v1004, %v908
    %v1485 = vpack.c.b16 %v1005, %v909
    %v1486 = vpack.c.b16 %v1006, %v910
    %v1487 = vpack.c.b16 %v1007, %v911
    %v1488 = vpack.c.b16 %v1008, %v912
    %v1489 = vpack.c.b16 %v1009, %v913
    %v1490 = vpack.c.b16 %v1010, %v914
    %v1491 = vpack.c.b16 %v1011, %v915
    %v1492 = vpack.c.b16 %v1012, %v916
    %v1493 = vpack.c.b16 %v1013, %v917
    %v1494 = vpack.c.b16 %v1014, %v918
    %v1495 = vpack.c.b16 %v1015, %v919
    %v1496 = vpack.c.b16 %v1016, %v920
    %v1497 = vpack.c.b16 %v1017, %v921
    %v1498 = vpack.c.b16 %v1018, %v922
    %v1499 = vpack.c.b16 %v1019, %v923
    %v1500 = vpack.c.b16 %v1020, %v924
    %v1501 = vpack.c.b16 %v1117, %v1021
    %v1502 = vpack.c.b16 %v1118, %v1022
    %v1503 = vpack.c.b16 %v1119, %v1023
    %v1504 = vpack.c.b16 %v1120, %v1024
    %v1505 = vpack.c.b16 %v1121, %v1025
    %v1506 = vpack.c.b16 %v1122, %v1026
    %v1507 = vpack.c.b16 %v1123, %v1027
    %v1508 = vpack.c.b16 %v1124, %v1028
    %v1509 = vpack.c.b16 %v1125, %v1029
    %v1510 = vpack.c.b16 %v1126, %v1030
    %v1511 = vpack.c.b16 %v1127, %v1031
    %v1512 = vpack.c.b16 %v1128, %v1032
    %v1513 = vpack.c.b16 %v1129, %v1033
    %v1514 = vpack.c.b16 %v1130, %v1034
    %v1515 = vpack.c.b16 %v1131, %v1035
    %v1516 = vpack.c.b16 %v1132, %v1036
    %v1517 = vpack.c.b16 %v1133, %v1037
    %v1518 = vpack.c.b16 %v1134, %v1038
    %v1519 = vpack.c.b16 %v1135, %v1039
    %v1520 = vpack.c.b16 %v1136, %v1040
    %v1521 = vpack.c.b16 %v1137, %v1041
    %v1522 = vpack.c.b16 %v1138, %v1042
    %v1523 = vpack.c.b16 %v1139, %v1043
    %v1524 = vpack.c.b16 %v1140, %v1044
    %v1525 = vpack.c.b16 %v1141, %v1045
    %v1526 = vpack.c.b16 %v1142, %v1046
    %v1527 = vpack.c.b16 %v1143, %v1047
    %v1528 = vpack.c.b16 %v1144, %v1048
    %v1529 = vpack.c.b16 %v1145, %v1049
    %v1530 = vpack.c.b16 %v1146, %v1050
    %v1531 = vpack.c.b16 %v1147, %v1051
    %v1532 = vpack.c.b16 %v1148, %v1052
    %v1533 = vpack.c.b16 %v1149, %v1053
    %v1534 = vpack.c.b16 %v1150, %v1054
    %v1535 = vpack.c.b16 %v1151, %v1055
    %v1536 = vpack.c.b16 %v1152, %v1056
    %v1537 = vpack.c.b16 %v1153, %v1057
    %v1538 = vpack.c.b16 %v1154, %v1058
    %v1539 = vpack.c.b16 %v1155, %v1059
    %v1540 = vpack.c.b16 %v1156, %v1060
    %v1541 = vpack.c.b16 %v1157, %v1061
    %v1542 = vpack.c.b16 %v1158, %v1062
    %v1543 = vpack.c.b16 %v1159, %v1063
    %v1544 = vpack.c.b16 %v1160, %v1064
    %v1545 = vpack.c.b16 %v1161, %v1065
    %v1546 = vpack.c.b16 %v1162, %v1066
    %v1547 = vpack.c.b16 %v1163, %v1067
    %v1548 = vpack.c.b16 %v1164, %v1068
    %v1549 = vpack.c.b16 %v1165, %v1069
    %v1550 = vpack.c.b16 %v1166, %v1070
    %v1551 = vpack.c.b16 %v1167, %v1071
    %v1552 = vpack.c.b16 %v1168, %v1072
    %v1553 = vpack.c.b16 %v1169, %v1073
    %v1554 = vpack.c.b16 %v1170, %v1074
    %v1555 = vpack.c.b16 %v1171, %v1075
    %v1556 = vpack.c.b16 %v1172, %v1076
    %v1557 = vpack.c.b16 %v1173, %v1077
    %v1558 = vpack.c.b16 %v1174, %v1078
    %v1559 = vpack.c.b16 %v1175, %v1079
    %v1560 = vpack.c.b16 %v1176, %v1080
    %v1561 = vpack.c.b16 %v1177, %v1081
    %v1562 = vpack.c.b16 %v1178, %v1082
    %v1563 = vpack.c.b16 %v1179, %v1083
    %v1564 = vpack.c.b16 %v1180, %v1084
    %v1565 = vpack.c.b16 %v1181, %v1085
    %v1566 = vpack.c.b16 %v1182, %v1086
    %v1567 = vpack.c.b16 %v1183, %v1087
    %v1568 = vpack.c.b16 %v1184, %v1088
    %v1569 = vpack.c.b16 %v1185, %v1089
    %v1570 = vpack.c.b16 %v1186, %v1090
    %v1571 = vpack.c.b16 %v1187, %v1091
    %v1572 = vpack.c.b16 %v1188, %v1092
    %v1573 = vpack.c.b16 %v1189, %v1093
    %v1574 = vpack.c.b16 %v1190, %v1094
    %v1575 = vpack.c.b16 %v1191, %v1095
    %v1576 = vpack.c.b16 %v1192, %v1096
    %v1577 = vpack.c.b16 %v1193, %v1097
    %v1578 = vpack.c.b16 %v1194, %v1098
    %v1579 = vpack.c.b16 %v1195, %v1099
    %v1580 = vpack.c.b16 %v1196, %v1100
    %v1581 = vpack.c.b16 %v1197, %v1101
    %v1582 = vpack.c.b16 %v1198, %v1102
    %v1583 = vpack.c.b16 %v1199, %v1103
    %v1584 = vpack.c.b16 %v1200, %v1104
    %v1585 = vpack.c.b16 %v1201, %v1105
    %v1586 = vpack.c.b16 %v1202, %v1106
    %v1587 = vpack.c.b16 %v1203, %v1107
    %v1588 = vpack.c.b16 %v1204, %v1108
    %v1589 = vpack.c.b16 %v1205, %v1109
    %v1590 = vpack.c.b16 %v1206, %v1110
    %v1591 = vpack.c.b16 %v1207, %v1111
    %v1592 = vpack.c.b16 %v1208, %v1112
    %v1593 = vpack.c.b16 %v1209, %v1113
    %v1594 = vpack.c.b16 %v1210, %v1114
    %v1595 = vpack.c.b16 %v1211, %v1115
    %v1596 = vpack.c.b16 %v1212, %v1116
    %v1597 = vpack.c.b16 %v1309, %v1213
    %v1598 = vpack.c.b16 %v1310, %v1214
    %v1599 = vpack.c.b16 %v1311, %v1215
    %v1600 = vpack.c.b16 %v1312, %v1216
    %v1601 = vpack.c.b16 %v1313, %v1217
    %v1602 = vpack.c.b16 %v1314, %v1218
    %v1603 = vpack.c.b16 %v1315, %v1219
    %v1604 = vpack.c.b16 %v1316, %v1220
    %v1605 = vpack.c.b16 %v1317, %v1221
    %v1606 = vpack.c.b16 %v1318, %v1222
    %v1607 = vpack.c.b16 %v1319, %v1223
    %v1608 = vpack.c.b16 %v1320, %v1224
    %v1609 = vpack.c.b16 %v1321, %v1225
    %v1610 = vpack.c.b16 %v1322, %v1226
    %v1611 = vpack.c.b16 %v1323, %v1227
    %v1612 = vpack.c.b16 %v1324, %v1228
    %v1613 = vpack.c.b16 %v1325, %v1229
    %v1614 = vpack.c.b16 %v1326, %v1230
    %v1615 = vpack.c.b16 %v1327, %v1231
    %v1616 = vpack.c.b16 %v1328, %v1232
    %v1617 = vpack.c.b16 %v1329, %v1233
    %v1618 = vpack.c.b16 %v1330, %v1234
    %v1619 = vpack.c.b16 %v1331, %v1235
    %v1620 = vpack.c.b16 %v1332, %v1236
    %v1621 = vpack.c.b16 %v1333, %v1237
    %v1622 = vpack.c.b16 %v1334, %v1238
    %v1623 = vpack.c.b16 %v1335, %v1239
    %v1624 = vpack.c.b16 %v1336, %v1240
    %v1625 = vpack.c.b16 %v1337, %v1241
    %v1626 = vpack.c.b16 %v1338, %v1242
    %v1627 = vpack.c.b16 %v1339, %v1243
    %v1628 = vpack.c.b16 %v1340, %v1244
    %v1629 = vpack.c.b16 %v1341, %v1245
    %v1630 = vpack.c.b16 %v1342, %v1246
    %v1631 = vpack.c.b16 %v1343, %v1247
    %v1632 = vpack.c.b16 %v1344, %v1248
    %v1633 = vpack.c.b16 %v1345, %v1249
    %v1634 = vpack.c.b16 %v1346, %v1250
    %v1635 = vpack.c.b16 %v1347, %v1251
    %v1636 = vpack.c.b16 %v1348, %v1252
    %v1637 = vpack.c.b16 %v1349, %v1253
    %v1638 = vpack.c.b16 %v1350, %v1254
    %v1639 = vpack.c.b16 %v1351, %v1255
    %v1640 = vpack.c.b16 %v1352, %v1256
    %v1641 = vpack.c.b16 %v1353, %v1257
    %v1642 = vpack.c.b16 %v1354, %v1258
    %v1643 = vpack.c.b16 %v1355, %v1259
    %v1644 = vpack.c.b16 %v1356, %v1260
    %v1645 = vpack.c.b16 %v1357, %v1261
    %v1646 = vpack.c.b16 %v1358, %v1262
    %v1647 = vpack.c.b16 %v1359, %v1263
    %v1648 = vpack.c.b16 %v1360, %v1264
    %v1649 = vpack.c.b16 %v1361, %v1265
    %v1650 = vpack.c.b16 %v1362, %v1266
    %v1651 = vpack.c.b16 %v1363, %v1267
    %v1652 = vpack.c.b16 %v1364, %v1268
    %v1653 = vpack.c.b16 %v1365, %v1269
    %v1654 = vpack.c.b16 %v1366, %v1270
    %v1655 = vpack.c.b16 %v1367, %v1271
    %v1656 = vpack.c.b16 %v1368, %v1272
    %v1657 = vpack.c.b16 %v1369, %v1273
    %v1658 = vpack.c.b16 %v1370, %v1274
    %v1659 = vpack.c.b16 %v1371, %v1275
    %v1660 = vpack.c.b16 %v1372, %v1276
    %v1661 = vpack.c.b16 %v1373, %v1277
    %v1662 = vpack.c.b16 %v1374, %v1278
    %v1663 = vpack.c.b16 %v1375, %v1279
    %v1664 = vpack.c.b16 %v1376, %v1280
    %v1665 = vpack.c.b16 %v1377, %v1281
    %v1666 = vpack.c.b16 %v1378, %v1282
    %v1667 = vpack.c.b16 %v1379, %v1283
    %v1668 = vpack.c.b16 %v1380, %v1284
    %v1669 = vpack.c.b16 %v1381, %v1285
    %v1670 = vpack.c.b16 %v1382, %v1286
    %v1671 = vpack.c.b16 %v1383, %v1287
    %v1672 = vpack.c.b16 %v1384, %v1288
    %v1673 = vpack.c.b16 %v1385, %v1289
    %v1674 = vpack.c.b16 %v1386, %v1290
    %v1675 = vpack.c.b16 %v1387, %v1291
    %v1676 = vpack.c.b16 %v1388, %v1292
    %v1677 = vpack.c.b16 %v1389, %v1293
    %v1678 = vpack.c.b16 %v1390, %v1294
    %v1679 = vpack.c.b16 %v1391, %v1295
    %v1680 = vpack.c.b16 %v1392, %v1296
    %v1681 = vpack.c.b16 %v1393, %v1297
    %v1682 = vpack.c.b16 %v1394, %v1298
    %v1683 = vpack.c.b16 %v1395, %v1299
    %v1684 = vpack.c.b16 %v1396, %v1300
    %v1685 = vpack.c.b16 %v1397, %v1301
    %v1686 = vpack.c.b16 %v1398, %v1302
    %v1687 = vpack.c.b16 %v1399, %v1303
    %v1688 = vpack.c.b16 %v1400, %v1304
    %v1689 = vpack.c.b16 %v1401, %v1305
    %v1690 = vpack.c.b16 %v1402, %v1306
    %v1691 = vpack.c.b16 %v1403, %v1307
    %v1692 = vpack.c.b16 %v1404, %v1308
    %v2173 = vunpack.c.l.b16 %v342
    %v2174 = vunpack.c.h.b16 %v342
    %v2175 = vunpack.c.l.b16 %v343
    %v2176 = vunpack.c.h.b16 %v343
    %v2177 = vunpack.c.l.b16 %v344
    %v2178 = vunpack.c.h.b16 %v344
    %v2179 = vunpack.c.l.b16 %v345
    %v2180 = vunpack.c.h.b16 %v345
    %v2181 = vunpack.c.l.b16 %v346
    %v2182 = vunpack.c.h.b16 %v346
    %v2183 = vunpack.c.l.b16 %v347
    %v2184 = vunpack.c.h.b16 %v347
    %v2185 = vunpack.c.l.b16 %v348
    %v2186 = vunpack.c.h.b16 %v348
    %v2187 = vunpack.c.l.b16 %v349
    %v2188 = vunpack.c.h.b16 %v349
    %v2189 = vunpack.c.l.b16 %v350
    %v2190 = vunpack.c.h.b16 %v350
    %v2191 = vunpack.c.l.b16 %v351
    %v2192 = vunpack.c.h.b16 %v351
    %v2193 = vunpack.c.l.b16 %v352
    %v2194 = vunpack.c.h.b16 %v352
    %v2195 = vunpack.c.l.b16 %v353
    %v2196 = vunpack.c.h.b16 %v353
    %v2197 = vunpack.c.l.b16 %v354
    %v2198 = vunpack.c.h.b16 %v354
    %v2199 = vunpack.c.l.b16 %v355
    %v2200 = vunpack.c.h.b16 %v355
    %v2201 = vunpack.c.l.b16 %v356
    %v2202 = vunpack.c.h.b16 %v356
    %v2203 = vunpack.c.l.b16 %v357
    %v2204 = vunpack.c.h.b16 %v357
    %v2205 = vunpack.c.l.b16 %v358
    %v2206 = vunpack.c.h.b16 %v358
    %v2207 = vunpack.c.l.b16 %v359
    %v2208 = vunpack.c.h.b16 %v359
    %v2209 = vunpack.c.l.b16 %v360
    %v2210 = vunpack.c.h.b16 %v360
    %v2211 = vunpack.c.l.b16 %v361
    %v2212 = vunpack.c.h.b16 %v361
    %v2213 = vunpack.c.l.b16 %v362
    %v2214 = vunpack.c.h.b16 %v362
    %v2215 = vunpack.c.l.b16 %v363
    %v2216 = vunpack.c.h.b16 %v363
    %v2217 = vunpack.c.l.b16 %v364
    %v2218 = vunpack.c.h.b16 %v364
    %v2219 = vunpack.c.l.b16 %v365
    %v2220 = vunpack.c.h.b16 %v365
    %v2221 = vunpack.c.l.b16 %v366
    %v2222 = vunpack.c.h.b16 %v366
    %v2223 = vunpack.c.l.b16 %v367
    %v2224 = vunpack.c.h.b16 %v367
    %v2225 = vunpack.c.l.b16 %v368
    %v2226 = vunpack.c.h.b16 %v368
    %v2227 = vunpack.c.l.b16 %v369
    %v2228 = vunpack.c.h.b16 %v369
    %v2229 = vunpack.c.l.b16 %v370
    %v2230 = vunpack.c.h.b16 %v370
    %v2231 = vunpack.c.l.b16 %v371
    %v2232 = vunpack.c.h.b16 %v371
    %v2233 = vunpack.c.l.b16 %v372
    %v2234 = vunpack.c.h.b16 %v372
    %v2235 = vunpack.c.l.b16 %v373
    %v2236 = vunpack.c.h.b16 %v373
    %v2237 = vunpack.c.l.b16 %v374
    %v2238 = vunpack.c.h.b16 %v374
    %v2239 = vunpack.c.l.b16 %v375
    %v2240 = vunpack.c.h.b16 %v375
    %v2241 = vunpack.c.l.b16 %v376
    %v2242 = vunpack.c.h.b16 %v376
    %v2243 = vunpack.c.l.b16 %v377
    %v2244 = vunpack.c.h.b16 %v377
    %v2245 = vunpack.c.l.b16 %v378
    %v2246 = vunpack.c.h.b16 %v378
    %v2247 = vunpack.c.l.b16 %v379
    %v2248 = vunpack.c.h.b16 %v379
    %v2249 = vunpack.c.l.b16 %v380
    %v2250 = vunpack.c.h.b16 %v380
    %v2251 = vunpack.c.l.b16 %v381
    %v2252 = vunpack.c.h.b16 %v381
    %v2253 = vunpack.c.l.b16 %v382
    %v2254 = vunpack.c.h.b16 %v382
    %v2255 = vunpack.c.l.b16 %v383
    %v2256 = vunpack.c.h.b16 %v383
    %v2257 = vunpack.c.l.b16 %v384
    %v2258 = vunpack.c.h.b16 %v384
    %v2259 = vunpack.c.l.b16 %v385
    %v2260 = vunpack.c.h.b16 %v385
    %v2261 = vunpack.c.l.b16 %v386
    %v2262 = vunpack.c.h.b16 %v386
    %v2263 = vunpack.c.l.b16 %v387
    %v2264 = vunpack.c.h.b16 %v387
    %v2265 = vunpack.c.l.b16 %v388
    %v2266 = vunpack.c.h.b16 %v388
    %v2267 = vunpack.c.l.b16 %v389
    %v2268 = vunpack.c.h.b16 %v389
    %v2269 = vunpack.c.l.b16 %v390
    %v2270 = vunpack.c.h.b16 %v390
    %v2271 = vunpack.c.l.b16 %v391
    %v2272 = vunpack.c.h.b16 %v391
    %v2273 = vunpack.c.l.b16 %v392
    %v2274 = vunpack.c.h.b16 %v392
    %v2275 = vunpack.c.l.b16 %v393
    %v2276 = vunpack.c.h.b16 %v393
    %v2277 = vunpack.c.l.b16 %v394
    %v2278 = vunpack.c.h.b16 %v394
    %v2279 = vunpack.c.l.b16 %v395
    %v2280 = vunpack.c.h.b16 %v395
    %v2281 = vunpack.c.l.b16 %v396
    %v2282 = vunpack.c.h.b16 %v396
    %v2283 = vunpack.c.l.b16 %v397
    %v2284 = vunpack.c.h.b16 %v397
    %v2285 = vunpack.c.l.b16 %v398
    %v2286 = vunpack.c.h.b16 %v398
    %v2287 = vunpack.c.l.b16 %v399
    %v2288 = vunpack.c.h.b16 %v399
    %v2289 = vunpack.c.l.b16 %v400
    %v2290 = vunpack.c.h.b16 %v400
    %v2291 = vunpack.c.l.b16 %v401
    %v2292 = vunpack.c.h.b16 %v401
    %v2293 = vunpack.c.l.b16 %v402
    %v2294 = vunpack.c.h.b16 %v402
    %v2295 = vunpack.c.l.b16 %v403
    %v2296 = vunpack.c.h.b16 %v403
    %v2297 = vunpack.c.l.b16 %v404
    %v2298 = vunpack.c.h.b16 %v404
    %v2299 = vunpack.c.l.b16 %v405
    %v2300 = vunpack.c.h.b16 %v405
    %v2301 = vunpack.c.l.b16 %v406
    %v2302 = vunpack.c.h.b16 %v406
    %v2303 = vunpack.c.l.b16 %v407
    %v2304 = vunpack.c.h.b16 %v407
    %v2305 = vunpack.c.l.b16 %v408
    %v2306 = vunpack.c.h.b16 %v408
    %v2307 = vunpack.c.l.b16 %v409
    %v2308 = vunpack.c.h.b16 %v409
    %v2309 = vunpack.c.l.b16 %v410
    %v2310 = vunpack.c.h.b16 %v410
    %v2311 = vunpack.c.l.b16 %v411
    %v2312 = vunpack.c.h.b16 %v411
    %v2313 = vunpack.c.l.b16 %v412
    %v2314 = vunpack.c.h.b16 %v412
    %v2315 = vunpack.c.l.b16 %v413
    %v2316 = vunpack.c.h.b16 %v413
    %v2317 = vunpack.c.l.b16 %v414
    %v2318 = vunpack.c.h.b16 %v414
    %v2319 = vunpack.c.l.b16 %v415
    %v2320 = vunpack.c.h.b16 %v415
    %v2321 = vunpack.c.l.b16 %v416
    %v2322 = vunpack.c.h.b16 %v416
    %v2323 = vunpack.c.l.b16 %v417
    %v2324 = vunpack.c.h.b16 %v417
    %v2325 = vunpack.c.l.b16 %v418
    %v2326 = vunpack.c.h.b16 %v418
    %v2327 = vunpack.c.l.b16 %v419
    %v2328 = vunpack.c.h.b16 %v419
    %v2329 = vunpack.c.l.b16 %v420
    %v2330 = vunpack.c.h.b16 %v420
    %v2331 = vunpack.c.l.b16 %v421
    %v2332 = vunpack.c.h.b16 %v421
    %v2333 = vunpack.c.l.b16 %v422
    %v2334 = vunpack.c.h.b16 %v422
    %v2335 = vunpack.c.l.b16 %v423
    %v2336 = vunpack.c.h.b16 %v423
    %v2337 = vunpack.c.l.b16 %v424
    %v2338 = vunpack.c.h.b16 %v424
    %v2339 = vunpack.c.l.b16 %v425
    %v2340 = vunpack.c.h.b16 %v425
    %v2341 = vunpack.c.l.b16 %v426
    %v2342 = vunpack.c.h.b16 %v426
    %v2343 = vunpack.c.l.b16 %v427
    %v2344 = vunpack.c.h.b16 %v427
    %v2345 = vunpack.c.l.b16 %v428
    %v2346 = vunpack.c.h.b16 %v428
    %v2347 = vunpack.c.l.b16 %v429
    %v2348 = vunpack.c.h.b16 %v429
    %v2349 = vunpack.c.l.b16 %v430
    %v2350 = vunpack.c.h.b16 %v430
    %v2351 = vunpack.c.l.b16 %v431
    %v2352 = vunpack.c.h.b16 %v431
    %v2353 = vunpack.c.l.b16 %v432
    %v2354 = vunpack.c.h.b16 %v432
    %v2355 = vunpack.c.l.b16 %v433
    %v2356 = vunpack.c.h.b16 %v433
    %v2357 = vunpack.c.l.b16 %v434
    %v2358 = vunpack.c.h.b16 %v434
    %v2359 = vunpack.c.l.b16 %v435
    %v2360 = vunpack.c.h.b16 %v435
    %v2361 = vunpack.c.l.b16 %v436
    %v2362 = vunpack.c.h.b16 %v436
    %v2363 = vunpack.c.l.b16 %v437
    %v2364 = vunpack.c.h.b16 %v437
    %v2365 = vunpack.c.l.b16 %v438
    %v2366 = vunpack.c.h.b16 %v438
    %v2367 = vunpack.c.l.b16 %v439
    %v2368 = vunpack.c.h.b16 %v439
    %v2369 = vunpack.c.l.b16 %v440
    %v2370 = vunpack.c.h.b16 %v440
    %v2371 = vunpack.c.l.b16 %v441
    %v2372 = vunpack.c.h.b16 %v441
    %v2373 = vunpack.c.l.b16 %v442
    %v2374 = vunpack.c.h.b16 %v442
    %v2375 = vunpack.c.l.b16 %v443
    %v2376 = vunpack.c.h.b16 %v443
    %v2377 = vunpack.c.l.b16 %v444
    %v2378 = vunpack.c.h.b16 %v444
    %v2379 = vunpack.c.l.b16 %v445
    %v2380 = vunpack.c.h.b16 %v445
    %v2381 = vunpack.c.l.b16 %v446
    %v2382 = vunpack.c.h.b16 %v446
    %v2383 = vunpack.c.l.b16 %v447
    %v2384 = vunpack.c.h.b16 %v447
    %v2385 = vunpack.c.l.b16 %v448
    %v2386 = vunpack.c.h.b16 %v448
    %v2387 = vunpack.c.l.b16 %v449
    %v2388 = vunpack.c.h.b16 %v449
    %v2389 = vunpack.c.l.b16 %v450
    %v2390 = vunpack.c.h.b16 %v450
    %v2391 = vunpack.c.l.b16 %v451
    %v2392 = vunpack.c.h.b16 %v451
    %v2393 = vunpack.c.l.b16 %v452
    %v2394 = vunpack.c.h.b16 %v452
    %v2395 = vunpack.c.l.b16 %v453
    %v2396 = vunpack.c.h.b16 %v453
    %v2397 = vunpack.c.l.b16 %v454
    %v2398 = vunpack.c.h.b16 %v454
    %v2399 = vunpack.c.l.b16 %v455
    %v2400 = vunpack.c.h.b16 %v455
    %v2401 = vunpack.c.l.b16 %v456
    %v2402 = vunpack.c.h.b16 %v456
    %v2403 = vunpack.c.l.b16 %v457
    %v2404 = vunpack.c.h.b16 %v457
    %v2405 = vunpack.c.l.b16 %v458
    %v2406 = vunpack.c.h.b16 %v458
    %v2407 = vunpack.c.l.b16 %v459
    %v2408 = vunpack.c.h.b16 %v459
    %v2409 = vunpack.c.l.b16 %v460
    %v2410 = vunpack.c.h.b16 %v460
    %v2411 = vunpack.c.l.b16 %v461
    %v2412 = vunpack.c.h.b16 %v461
    %v2413 = vunpack.c.l.b16 %v462
    %v2414 = vunpack.c.h.b16 %v462
    %v2415 = vunpack.c.l.b16 %v463
    %v2416 = vunpack.c.h.b16 %v463
    %v2417 = vunpack.c.l.b16 %v464
    %v2418 = vunpack.c.h.b16 %v464
    %v2419 = vunpack.c.l.b16 %v465
    %v2420 = vunpack.c.h.b16 %v465
    %v2421 = vunpack.c.l.b16 %v466
    %v2422 = vunpack.c.h.b16 %v466
    %v2423 = vunpack.c.l.b16 %v467
    %v2424 = vunpack.c.h.b16 %v467
    %v2425 = vunpack.c.l.b16 %v468
    %v2426 = vunpack.c.h.b16 %v468
    %v2427 = vunpack.c.l.b16 %v469
    %v2428 = vunpack.c.h.b16 %v469
    %v2429 = vunpack.c.l.b16 %v470
    %v2430 = vunpack.c.h.b16 %v470
    %v2431 = vunpack.c.l.b16 %v471
    %v2432 = vunpack.c.h.b16 %v471
    %v2433 = vunpack.c.l.b16 %v472
    %v2434 = vunpack.c.h.b16 %v472
    %v2435 = vunpack.c.l.b16 %v473
    %v2436 = vunpack.c.h.b16 %v473
    %v2437 = vunpack.c.l.b16 %v474
    %v2438 = vunpack.c.h.b16 %v474
    %v2439 = vunpack.c.l.b16 %v475
    %v2440 = vunpack.c.h.b16 %v475
    %v2441 = vunpack.c.l.b16 %v476
    %v2442 = vunpack.c.h.b16 %v476
    %v2443 = vunpack.c.l.b16 %v477
    %v2444 = vunpack.c.h.b16 %v477
    %v2445 = vunpack.c.l.b16 %v478
    %v2446 = vunpack.c.h.b16 %v478
    %v2447 = vunpack.c.l.b16 %v479
    %v2448 = vunpack.c.h.b16 %v479
    %v2449 = vunpack.c.l.b16 %v480
    %v2450 = vunpack.c.h.b16 %v480
    %v2451 = vunpack.c.l.b16 %v481
    %v2452 = vunpack.c.h.b16 %v481
    %v2453 = vunpack.c.l.b16 %v482
    %v2454 = vunpack.c.h.b16 %v482
    %v2455 = vunpack.c.l.b16 %v483
    %v2456 = vunpack.c.h.b16 %v483
    %v2457 = vunpack.c.l.b16 %v484
    %v2458 = vunpack.c.h.b16 %v484
    %v2459 = vunpack.c.l.b16 %v485
    %v2460 = vunpack.c.h.b16 %v485
    %v2461 = vunpack.c.l.b16 %v486
    %v2462 = vunpack.c.h.b16 %v486
    %v2463 = vunpack.c.l.b16 %v487
    %v2464 = vunpack.c.h.b16 %v487
    %v2465 = vunpack.c.l.b16 %v488
    %v2466 = vunpack.c.h.b16 %v488
    %v2467 = vunpack.c.l.b16 %v489
    %v2468 = vunpack.c.h.b16 %v489
    %v2469 = vunpack.c.l.b16 %v490
    %v2470 = vunpack.c.h.b16 %v490
    %v2471 = vunpack.c.l.b16 %v491
    %v2472 = vunpack.c.h.b16 %v491
    %v2473 = vunpack.c.l.b16 %v492
    %v2474 = vunpack.c.h.b16 %v492
    %v2475 = vunpack.c.l.b16 %v493
    %v2476 = vunpack.c.h.b16 %v493
    %v2477 = vunpack.c.l.b16 %v494
    %v2478 = vunpack.c.h.b16 %v494
    %v2479 = vunpack.c.l.b16 %v495
    %v2480 = vunpack.c.h.b16 %v495
    %v2481 = vunpack.c.l.b16 %v496
    %v2482 = vunpack.c.h.b16 %v496
    %v2483 = vunpack.c.l.b16 %v497
    %v2484 = vunpack.c.h.b16 %v497
    %v2485 = vunpack.c.l.b16 %v498
    %v2486 = vunpack.c.h.b16 %v498
    %v2487 = vunpack.c.l.b16 %v499
    %v2488 = vunpack.c.h.b16 %v499
    %v2489 = vunpack.c.l.b16 %v500
    %v2490 = vunpack.c.h.b16 %v500
    %v2491 = vunpack.c.l.b16 %v501
    %v2492 = vunpack.c.h.b16 %v501
    %v2493 = vunpack.c.l.b16 %v502
    %v2494 = vunpack.c.h.b16 %v502
    %v2495 = vunpack.c.l.b16 %v503
    %v2496 = vunpack.c.h.b16 %v503
    %v2497 = vunpack.c.l.b16 %v504
    %v2498 = vunpack.c.h.b16 %v504
    %v2499 = vunpack.c.l.b16 %v505
    %v2500 = vunpack.c.h.b16 %v505
    %v2501 = vunpack.c.l.b16 %v506
    %v2502 = vunpack.c.h.b16 %v506
    %v2503 = vunpack.c.l.b16 %v507
    %v2504 = vunpack.c.h.b16 %v507
    %v2505 = vunpack.c.l.b16 %v508
    %v2506 = vunpack.c.h.b16 %v508
    %v2507 = vunpack.c.l.b16 %v509
    %v2508 = vunpack.c.h.b16 %v509
    %v2509 = vunpack.c.l.b16 %v510
    %v2510 = vunpack.c.h.b16 %v510
    %v2511 = vunpack.c.l.b16 %v511
    %v2512 = vunpack.c.h.b16 %v511
    %v2513 = vunpack.c.l.b16 %v512
    %v2514 = vunpack.c.h.b16 %v512
    %v2515 = vunpack.c.l.b16 %v513
    %v2516 = vunpack.c.h.b16 %v513
    %v2517 = vunpack.c.l.b16 %v514
    %v2518 = vunpack.c.h.b16 %v514
    %v2519 = vunpack.c.l.b16 %v515
    %v2520 = vunpack.c.h.b16 %v515
    %v2521 = vunpack.c.l.b16 %v516
    %v2522 = vunpack.c.h.b16 %v516
    %v2523 = vunpack.c.l.b16 %v517
    %v2524 = vunpack.c.h.b16 %v517
    %v2525 = vunpack.c.l.b16 %v518
    %v2526 = vunpack.c.h.b16 %v518
    %v2527 = vunpack.c.l.b16 %v519
    %v2528 = vunpack.c.h.b16 %v519
    %v2529 = vunpack.c.l.b16 %v520
    %v2530 = vunpack.c.h.b16 %v520
    %v2531 = vunpack.c.l.b16 %v521
    %v2532 = vunpack.c.h.b16 %v521
    %v2533 = vunpack.c.l.b16 %v522
    %v2534 = vunpack.c.h.b16 %v522
    %v2535 = vunpack.c.l.b16 %v523
    %v2536 = vunpack.c.h.b16 %v523
    %v2537 = vunpack.c.l.b16 %v524
    %v2538 = vunpack.c.h.b16 %v524
    %v2539 = vunpack.c.l.b16 %v525
    %v2540 = vunpack.c.h.b16 %v525
    %v2541 = vunpack.c.l.b16 %v526
    %v2542 = vunpack.c.h.b16 %v526
    %v2543 = vunpack.c.l.b16 %v527
    %v2544 = vunpack.c.h.b16 %v527
    %v2545 = vunpack.c.l.b16 %v528
    %v2546 = vunpack.c.h.b16 %v528
    %v2547 = vunpack.c.l.b16 %v529
    %v2548 = vunpack.c.h.b16 %v529
    %v2549 = vunpack.c.l.b16 %v530
    %v2550 = vunpack.c.h.b16 %v530
    %v2551 = vunpack.c.l.b16 %v531
    %v2552 = vunpack.c.h.b16 %v531
    %v2553 = vunpack.c.l.b16 %v532
    %v2554 = vunpack.c.h.b16 %v532
    %v2555 = vunpack.c.l.b16 %v533
    %v2556 = vunpack.c.h.b16 %v533
    %v2557 = vpack.c.b16 %v2269, %v2173
    %v2558 = vpack.c.b16 %v2270, %v2174
    %v2559 = vpack.c.b16 %v2271, %v2175
    %v2560 = vpack.c.b16 %v2272, %v2176
    %v2561 = vpack.c.b16 %v2273, %v2177
    %v2562 = vpack.c.b16 %v2274, %v2178
    %v2563 = vpack.c.b16 %v2275, %v2179
    %v2564 = vpack.c.b16 %v2276, %v2180
    %v2565 = vpack.c.b16 %v2277, %v2181
    %v2566 = vpack.c.b16 %v2278, %v2182
    %v2567 = vpack.c.b16 %v2279, %v2183
    %v2568 = vpack.c.b16 %v2280, %v2184
    %v2569 = vpack.c.b16 %v2281, %v2185
    %v2570 = vpack.c.b16 %v2282, %v2186
    %v2571 = vpack.c.b16 %v2283, %v2187
    %v2572 = vpack.c.b16 %v2284, %v2188
    %v2573 = vpack.c.b16 %v2285, %v2189
    %v2574 = vpack.c.b16 %v2286, %v2190
    %v2575 = vpack.c.b16 %v2287, %v2191
    %v2576 = vpack.c.b16 %v2288, %v2192
    %v2577 = vpack.c.b16 %v2289, %v2193
    %v2578 = vpack.c.b16 %v2290, %v2194
    %v2579 = vpack.c.b16 %v2291, %v2195
    %v2580 = vpack.c.b16 %v2292, %v2196
    %v2581 = vpack.c.b16 %v2293, %v2197
    %v2582 = vpack.c.b16 %v2294, %v2198
    %v2583 = vpack.c.b16 %v2295, %v2199
    %v2584 = vpack.c.b16 %v2296, %v2200
    %v2585 = vpack.c.b16 %v2297, %v2201
    %v2586 = vpack.c.b16 %v2298, %v2202
    %v2587 = vpack.c.b16 %v2299, %v2203
    %v2588 = vpack.c.b16 %v2300, %v2204
    %v2589 = vpack.c.b16 %v2301, %v2205
    %v2590 = vpack.c.b16 %v2302, %v2206
    %v2591 = vpack.c.b16 %v2303, %v2207
    %v2592 = vpack.c.b16 %v2304, %v2208
    %v2593 = vpack.c.b16 %v2305, %v2209
    %v2594 = vpack.c.b16 %v2306, %v2210
    %v2595 = vpack.c.b16 %v2307, %v2211
    %v2596 = vpack.c.b16 %v2308, %v2212
    %v2597 = vpack.c.b16 %v2309, %v2213
    %v2598 = vpack.c.b16 %v2310, %v2214
    %v2599 = vpack.c.b16 %v2311, %v2215
    %v2600 = vpack.c.b16 %v2312, %v2216
    %v2601 = vpack.c.b16 %v2313, %v2217
    %v2602 = vpack.c.b16 %v2314, %v2218
    %v2603 = vpack.c.b16 %v2315, %v2219
    %v2604 = vpack.c.b16 %v2316, %v2220
    %v2605 = vpack.c.b16 %v2317, %v2221
    %v2606 = vpack.c.b16 %v2318, %v2222
    %v2607 = vpack.c.b16 %v2319, %v2223
    %v2608 = vpack.c.b16 %v2320, %v2224
    %v2609 = vpack.c.b16 %v2321, %v2225
    %v2610 = vpack.c.b16 %v2322, %v2226
    %v2611 = vpack.c.b16 %v2323, %v2227
    %v2612 = vpack.c.b16 %v2324, %v2228
    %v2613 = vpack.c.b16 %v2325, %v2229
    %v2614 = vpack.c.b16 %v2326, %v2230
    %v2615 = vpack.c.b16 %v2327, %v2231
    %v2616 = vpack.c.b16 %v2328, %v2232
    %v2617 = vpack.c.b16 %v2329, %v2233
    %v2618 = vpack.c.b16 %v2330, %v2234
    %v2619 = vpack.c.b16 %v2331, %v2235
    %v2620 = vpack.c.b16 %v2332, %v2236
    %v2621 = vpack.c.b16 %v2333, %v2237
    %v2622 = vpack.c.b16 %v2334, %v2238
    %v2623 = vpack.c.b16 %v2335, %v2239
    %v2624 = vpack.c.b16 %v2336, %v2240
    %v2625 = vpack.c.b16 %v2337, %v2241
    %v2626 = vpack.c.b16 %v2338, %v2242
    %v2627 = vpack.c.b16 %v2339, %v2243
    %v2628 = vpack.c.b16 %v2340, %v2244
    %v2629 = vpack.c.b16 %v2341, %v2245
    %v2630 = vpack.c.b16 %v2342, %v2246
    %v2631 = vpack.c.b16 %v2343, %v2247
    %v2632 = vpack.c.b16 %v2344, %v2248
    %v2633 = vpack.c.b16 %v2345, %v2249
    %v2634 = vpack.c.b16 %v2346, %v2250
    %v2635 = vpack.c.b16 %v2347, %v2251
    %v2636 = vpack.c.b16 %v2348, %v2252
    %v2637 = vpack.c.b16 %v2349, %v2253
    %v2638 = vpack.c.b16 %v2350, %v2254
    %v2639 = vpack.c.b16 %v2351, %v2255
    %v2640 = vpack.c.b16 %v2352, %v2256
    %v2641 = vpack.c.b16 %v2353, %v2257
    %v2642 = vpack.c.b16 %v2354, %v2258
    %v2643 = vpack.c.b16 %v2355, %v2259
    %v2644 = vpack.c.b16 %v2356, %v2260
    %v2645 = vpack.c.b16 %v2357, %v2261
    %v2646 = vpack.c.b16 %v2358, %v2262
    %v2647 = vpack.c.b16 %v2359, %v2263
    %v2648 = vpack.c.b16 %v2360, %v2264
    %v2649 = vpack.c.b16 %v2361, %v2265
    %v2650 = vpack.c.b16 %v2362, %v2266
    %v2651 = vpack.c.b16 %v2363, %v2267
    %v2652 = vpack.c.b16 %v2364, %v2268
    %v2653 = vpack.c.b16 %v2461, %v2365
    %v2654 = vpack.c.b16 %v2462, %v2366
    %v2655 = vpack.c.b16 %v2463, %v2367
    %v2656 = vpack.c.b16 %v2464, %v2368
    %v2657 = vpack.c.b16 %v2465, %v2369
    %v2658 = vpack.c.b16 %v2466, %v2370
    %v2659 = vpack.c.b16 %v2467, %v2371
    %v2660 = vpack.c.b16 %v2468, %v2372
    %v2661 = vpack.c.b16 %v2469, %v2373
    %v2662 = vpack.c.b16 %v2470, %v2374
    %v2663 = vpack.c.b16 %v2471, %v2375
    %v2664 = vpack.c.b16 %v2472, %v2376
    %v2665 = vpack.c.b16 %v2473, %v2377
    %v2666 = vpack.c.b16 %v2474, %v2378
    %v2667 = vpack.c.b16 %v2475, %v2379
    %v2668 = vpack.c.b16 %v2476, %v2380
    %v2669 = vpack.c.b16 %v2477, %v2381
    %v2670 = vpack.c.b16 %v2478, %v2382
    %v2671 = vpack.c.b16 %v2479, %v2383
    %v2672 = vpack.c.b16 %v2480, %v2384
    %v2673 = vpack.c.b16 %v2481, %v2385
    %v2674 = vpack.c.b16 %v2482, %v2386
    %v2675 = vpack.c.b16 %v2483, %v2387
    %v2676 = vpack.c.b16 %v2484, %v2388
    %v2677 = vpack.c.b16 %v2485, %v2389
    %v2678 = vpack.c.b16 %v2486, %v2390
    %v2679 = vpack.c.b16 %v2487, %v2391
    %v2680 = vpack.c.b16 %v2488, %v2392
    %v2681 = vpack.c.b16 %v2489, %v2393
    %v2682 = vpack.c.b16 %v2490, %v2394
    %v2683 = vpack.c.b16 %v2491, %v2395
    %v2684 = vpack.c.b16 %v2492, %v2396
    %v2685 = vpack.c.b16 %v2493, %v2397
    %v2686 = vpack.c.b16 %v2494, %v2398
    %v2687 = vpack.c.b16 %v2495, %v2399
    %v2688 = vpack.c.b16 %v2496, %v2400
    %v2689 = vpack.c.b16 %v2497, %v2401
    %v2690 = vpack.c.b16 %v2498, %v2402
    %v2691 = vpack.c.b16 %v2499, %v2403
    %v2692 = vpack.c.b16 %v2500, %v2404
    %v2693 = vpack.c.b16 %v2501, %v2405
    %v2694 = vpack.c.b16 %v2502, %v2406
    %v2695 = vpack.c.b16 %v2503, %v2407
    %v2696 = vpack.c.b16 %v2504, %v2408
    %v2697 = vpack.c.b16 %v2505, %v2409
    %v2698 = vpack.c.b16 %v2506, %v2410
    %v2699 = vpack.c.b16 %v2507, %v2411
    %v2700 = vpack.c.b16 %v2508, %v2412
    %v2701 = vpack.c.b16 %v2509, %v2413
    %v2702 = vpack.c.b16 %v2510, %v2414
    %v2703 = vpack.c.b16 %v2511, %v2415
    %v2704 = vpack.c.b16 %v2512, %v2416
    %v2705 = vpack.c.b16 %v2513, %v2417
    %v2706 = vpack.c.b16 %v2514, %v2418
    %v2707 = vpack.c.b16 %v2515, %v2419
    %v2708 = vpack.c.b16 %v2516, %v2420
    %v2709 = vpack.c.b16 %v2517, %v2421
    %v2710 = vpack.c.b16 %v2518, %v2422
    %v2711 = vpack.c.b16 %v2519, %v2423
    %v2712 = vpack.c.b16 %v2520, %v2424
    %v2713 = vpack.c.b16 %v2521, %v2425
    %v2714 = vpack.c.b16 %v2522, %v2426
    %v2715 = vpack.c.b16 %v2523, %v2427
    %v2716 = vpack.c.b16 %v2524, %v2428
    %v2717 = vpack.c.b16 %v2525, %v2429
    %v2718 = vpack.c.b16 %v2526, %v2430
    %v2719 = vpack.c.b16 %v2527, %v2431
    %v2720 = vpack.c.b16 %v2528, %v2432
    %v2721 = vpack.c.b16 %v2529, %v2433
    %v2722 = vpack.c.b16 %v2530, %v2434
    %v2723 = vpack.c.b16 %v2531, %v2435
    %v2724 = vpack.c.b16 %v2532, %v2436
    %v2725 = vpack.c.b16 %v2533, %v2437
    %v2726 = vpack.c.b16 %v2534, %v2438
    %v2727 = vpack.c.b16 %v2535, %v2439
    %v2728 = vpack.c.b16 %v2536, %v2440
    %v2729 = vpack.c.b16 %v2537, %v2441
    %v2730 = vpack.c.b16 %v2538, %v2442
    %v2731 = vpack.c.b16 %v2539, %v2443
    %v2732 = vpack.c.b16 %v2540, %v2444
    %v2733 = vpack.c.b16 %v2541, %v2445
    %v2734 = vpack.c.b16 %v2542, %v2446
    %v2735 = vpack.c.b16 %v2543, %v2447
    %v2736 = vpack.c.b16 %v2544, %v2448
    %v2737 = vpack.c.b16 %v2545, %v2449
    %v2738 = vpack.c.b16 %v2546, %v2450
    %v2739 = vpack.c.b16 %v2547, %v2451
    %v2740 = vpack.c.b16 %v2548, %v2452
    %v2741 = vpack.c.b16 %v2549, %v2453
    %v2742 = vpack.c.b16 %v2550, %v2454
    %v2743 = vpack.c.b16 %v2551, %v2455
    %v2744 = vpack.c.b16 %v2552, %v2456
    %v2745 = vpack.c.b16 %v2553, %v2457
    %v2746 = vpack.c.b16 %v2554, %v2458
    %v2747 = vpack.c.b16 %v2555, %v2459
    %v2748 = vpack.c.b16 %v2556, %v2460
    %2941 = vmatprep.subr.bf16.mxu0 %v2558
    %2942 = vmatpush1.bf16.xpose.msra.mxu0 %v2557
    %2943 = vmatprep.subr.bf16.mxu0 %v2654
    %2944 = vmatpush1.bf16.xpose.msra.mxu0 %v2653
    %2945 = vmatprep.subr.bf16.mxu0 0
    %2946 = vmatpush1.bf16.xpose.msra.mxu0 0
    %2947 = vmatprep.subr.bf16.mxu0 0
    %2948 = vmatpush1.bf16.xpose.msra.mxu0 0
    %2949 = vmatprep.subr.bf16.mxu0 0
    %2950 = vmatpush1.bf16.xpose.msra.mxu0 0
    %2951 = vmatprep.subr.bf16.mxu0 0
    %2952 = vmatpush1.bf16.xpose.msra.mxu0 0
    %2953 = vmatprep.subr.bf16.mxu0 0
    %2954 = vmatpush1.bf16.xpose.msra.mxu0 0
    %2955 = vmatprep.subr.bf16.mxu0 0
    %2956 = vmatpush1.bf16.xpose.msra.mxu0 0
    %2957 = vmatprep.subr.bf16.mxu0 0
    %2958 = vmatpush1.bf16.xpose.msra.mxu0 0
    %2959 = vmatprep.subr.bf16.mxu0 0
    %2960 = vmatpush1.bf16.xpose.msra.mxu0 0
    %2961 = vmatprep.subr.bf16.mxu0 0
    %2962 = vmatpush1.bf16.xpose.msra.mxu0 0
    %2963 = vmatprep.subr.bf16.mxu0 0
    %2964 = vmatpush1.bf16.xpose.msra.mxu0 0
    %2965 = vmatprep.subr.bf16.mxu0 0
    %2966 = vmatpush1.bf16.xpose.msra.mxu0 0
    %2967 = vmatprep.subr.bf16.mxu0 0
    %2968 = vmatpush1.bf16.xpose.msra.mxu0 0
    %2969 = vmatprep.subr.bf16.mxu0 0
    %2970 = vmatpush1.bf16.xpose.msra.mxu0 0
    %2971 = vmatprep.subr.bf16.mxu0 0
    %2972 = vmatpush1.bf16.xpose.msra.mxu0 0
    %2973 = vmatprep.mubr.bf16.mxu0 %v1406
    %2974 = vmatmul.mubr.bf16.gmra.mrb[0].mxu0 %v1405
    %v2975 = vpop.f32.mrb[0].mxu0
    %v2976 = vadd.f32 %v539, %v2975
    %v2977 = vpop.f32.mrb[0].mxu0
    %v2978 = vpop.f32.mrb[0].mxu0
    %v2979 = vadd.f32 %v539, %v2978
    %v2980 = vpop.f32.mrb[0].mxu0
    %2981 = vmatprep.mubr.bf16.mxu0 %v1502
    %2982 = vmatmul.mubr.bf16.gmra.mrb[0].mxu0 %v1501
    %v2983 = vpop.f32.mrb[0].mxu0
    %v2984 = vadd.f32 %v539, %v2983
    %v2985 = vpop.f32.mrb[0].mxu0
    %v2986 = vpop.f32.mrb[0].mxu0
    %v2987 = vadd.f32 %v539, %v2986
    %v2988 = vpop.f32.mrb[0].mxu0
    %2989 = vmatprep.mubr.bf16.mxu0 %v1598
    %2990 = vmatmul.mubr.bf16.gmra.mrb[0].mxu0 %v1597
    %v2991 = vpop.f32.mrb[0].mxu0
    %v2992 = vadd.f32 %v539, %v2991
    %v2993 = vpop.f32.mrb[0].mxu0
    %v2994 = vpop.f32.mrb[0].mxu0
    %v2995 = vadd.f32 %v539, %v2994
    %v2996 = vpop.f32.mrb[0].mxu0
    %2997 = vdwg.mxu0
    %2998 = vmatprep.subr.bf16.mxu0 %v2560
    %2999 = vmatpush1.bf16.xpose.msra.mxu0 %v2559
    %3000 = vmatprep.subr.bf16.mxu0 %v2656
    %3001 = vmatpush1.bf16.xpose.msra.mxu0 %v2655
    %3002 = vmatprep.subr.bf16.mxu0 0
    %3003 = vmatpush1.bf16.xpose.msra.mxu0 0
    %3004 = vmatprep.subr.bf16.mxu0 0
    %3005 = vmatpush1.bf16.xpose.msra.mxu0 0
    %3006 = vmatprep.subr.bf16.mxu0 0
    %3007 = vmatpush1.bf16.xpose.msra.mxu0 0
    %3008 = vmatprep.subr.bf16.mxu0 0
    %3009 = vmatpush1.bf16.xpose.msra.mxu0 0
    %3010 = vmatprep.subr.bf16.mxu0 0
    %3011 = vmatpush1.bf16.xpose.msra.mxu0 0
    %3012 = vmatprep.subr.bf16.mxu0 0
    %3013 = vmatpush1.bf16.xpose.msra.mxu0 0
    %3014 = vmatprep.subr.bf16.mxu0 0
    %3015 = vmatpush1.bf16.xpose.msra.mxu0 0
    %3016 = vmatprep.subr.bf16.mxu0 0
    %3017 = vmatpush1.bf16.xpose.msra.mxu0 0
    %3018 = vmatprep.subr.bf16.mxu0 0
    %3019 = vmatpush1.bf16.xpose.msra.mxu0 0
    %3020 = vmatprep.subr.bf16.mxu0 0
    %3021 = vmatpush1.bf16.xpose.msra.mxu0 0
    %3022 = vmatprep.subr.bf16.mxu0 0
    %3023 = vmatpush1.bf16.xpose.msra.mxu0 0
    %3024 = vmatprep.subr.bf16.mxu0 0
    %3025 = vmatpush1.bf16.xpose.msra.mxu0 0
    %3026 = vmatprep.subr.bf16.mxu0 0
    %3027 = vmatpush1.bf16.xpose.msra.mxu0 0
    %3028 = vmatprep.subr.bf16.mxu0 0
    %3029 = vmatpush1.bf16.xpose.msra.mxu0 0
    %3030 = vmatprep.mubr.bf16.mxu0 %v1408
    %3031 = vmatmul.mubr.bf16.gmra.mrb[0].mxu0 %v1407
    %v3032 = vpop.f32.mrb[0].mxu0
    %v3033 = vadd.f32 %v2976, %v3032
    %v3034 = vpop.f32.mrb[0].mxu0
    %v3035 = vpop.f32.mrb[0].mxu0
    %v3036 = vadd.f32 %v2979, %v3035
    %v3037 = vpop.f32.mrb[0].mxu0
    %3038 = vmatprep.mubr.bf16.mxu0 %v1504
    %3039 = vmatmul.mubr.bf16.gmra.mrb[0].mxu0 %v1503
    %v3040 = vpop.f32.mrb[0].mxu0
    %v3041 = vadd.f32 %v2984, %v3040
    %v3042 = vpop.f32.mrb[0].mxu0
    %v3043 = vpop.f32.mrb[0].mxu0
    %v3044 = vadd.f32 %v2987, %v3043
    %v3045 = vpop.f32.mrb[0].mxu0
    %3046 = vmatprep.mubr.bf16.mxu0 %v1600
    %3047 = vmatmul.mubr.bf16.gmra.mrb[0].mxu0 %v1599
    %v3048 = vpop.f32.mrb[0].mxu0
    %v3049 = vadd.f32 %v2992, %v3048
    %v3050 = vpop.f32.mrb[0].mxu0
    %v3051 = vpop.f32.mrb[0].mxu0
    %v3052 = vadd.f32 %v2995, %v3051
    %v3053 = vpop.f32.mrb[0].mxu0
    %3054 = vdwg.mxu0
    %3055 = vmatprep.subr.bf16.mxu0 %v2562
    %3056 = vmatpush1.bf16.xpose.msra.mxu0 %v2561
    %3057 = vmatprep.subr.bf16.mxu0 %v2658
    %3058 = vmatpush1.bf16.xpose.msra.mxu0 %v2657
    %3059 = vmatprep.subr.bf16.mxu0 0
    %3060 = vmatpush1.bf16.xpose.msra.mxu0 0
    %3061 = vmatprep.subr.bf16.mxu0 0
    %3062 = vmatpush1.bf16.xpose.msra.mxu0 0
    %3063 = vmatprep.subr.bf16.mxu0 0
    %3064 = vmatpush1.bf16.xpose.msra.mxu0 0
    %3065 = vmatprep.subr.bf16.mxu0 0
    %3066 = vmatpush1.bf16.xpose.msra.mxu0 0
    %3067 = vmatprep.subr.bf16.mxu0 0
    %3068 = vmatpush1.bf16.xpose.msra.mxu0 0
    %3069 = vmatprep.subr.bf16.mxu0 0
    %3070 = vmatpush1.bf16.xpose.msra.mxu0 0
    %3071 = vmatprep.subr.bf16.mxu0 0
    %3072 = vmatpush1.bf16.xpose.msra.mxu0 0
    %3073 = vmatprep.subr.bf16.mxu0 0
    %3074 = vmatpush1.bf16.xpose.msra.mxu0 0
    %3075 = vmatprep.subr.bf16.mxu0 0
    %3076 = vmatpush1.bf16.xpose.msra.mxu0 0
    %3077 = vmatprep.subr.bf16.mxu0 0
    %3078 = vmatpush1.bf16.xpose.msra.mxu0 0
    %3079 = vmatprep.subr.bf16.mxu0 0
    %3080 = vmatpush1.bf16.xpose.msra.mxu0 0
    %3081 = vmatprep.subr.bf16.mxu0 0
    %3082 = vmatpush1.bf16.xpose.msra.mxu0 0
    %3083 = vmatprep.subr.bf16.mxu0 0
    %3084 = vmatpush1.bf16.xpose.msra.mxu0 0
    %3085 = vmatprep.subr.bf16.mxu0 0
    %3086 = vmatpush1.bf16.xpose.msra.mxu0 0
    %3087 = vmatprep.mubr.bf16.mxu0 %v1410
    %3088 = vmatmul.mubr.bf16.gmra.mrb[0].mxu0 %v1409
    %v3089 = vpop.f32.mrb[0].mxu0
    %v3090 = vadd.f32 %v3033, %v3089
    %v3091 = vpop.f32.mrb[0].mxu0
    %v3092 = vpop.f32.mrb[0].mxu0
    %v3093 = vadd.f32 %v3036, %v3092
    %v3094 = vpop.f32.mrb[0].mxu0
    %3095 = vmatprep.mubr.bf16.mxu0 %v1506
    %3096 = vmatmul.mubr.bf16.gmra.mrb[0].mxu0 %v1505
    %v3097 = vpop.f32.mrb[0].mxu0
    %v3098 = vadd.f32 %v3041, %v3097
    %v3099 = vpop.f32.mrb[0].mxu0
    %v3100 = vpop.f32.mrb[0].mxu0
    %v3101 = vadd.f32 %v3044, %v3100
    %v3102 = vpop.f32.mrb[0].mxu0
    %3103 = vmatprep.mubr.bf16.mxu0 %v1602
    %3104 = vmatmul.mubr.bf16.gmra.mrb[0].mxu0 %v1601
    %v3105 = vpop.f32.mrb[0].mxu0
    %v3106 = vadd.f32 %v3049, %v3105
    %v3107 = vpop.f32.mrb[0].mxu0
    %v3108 = vpop.f32.mrb[0].mxu0
    %v3109 = vadd.f32 %v3052, %v3108
    %v3110 = vpop.f32.mrb[0].mxu0
    %3111 = vdwg.mxu0
    %3112 = vmatprep.subr.bf16.mxu0 %v2564
    %3113 = vmatpush1.bf16.xpose.msra.mxu0 %v2563
    %3114 = vmatprep.subr.bf16.mxu0 %v2660
    %3115 = vmatpush1.bf16.xpose.msra.mxu0 %v2659
    %3116 = vmatprep.subr.bf16.mxu0 0
    %3117 = vmatpush1.bf16.xpose.msra.mxu0 0
    %3118 = vmatprep.subr.bf16.mxu0 0
    %3119 = vmatpush1.bf16.xpose.msra.mxu0 0
    %3120 = vmatprep.subr.bf16.mxu0 0
    %3121 = vmatpush1.bf16.xpose.msra.mxu0 0
    %3122 = vmatprep.subr.bf16.mxu0 0
    %3123 = vmatpush1.bf16.xpose.msra.mxu0 0
    %3124 = vmatprep.subr.bf16.mxu0 0
    %3125 = vmatpush1.bf16.xpose.msra.mxu0 0
    %3126 = vmatprep.subr.bf16.mxu0 0
    %3127 = vmatpush1.bf16.xpose.msra.mxu0 0
    %3128 = vmatprep.subr.bf16.mxu0 0
    %3129 = vmatpush1.bf16.xpose.msra.mxu0 0
    %3130 = vmatprep.subr.bf16.mxu0 0
    %3131 = vmatpush1.bf16.xpose.msra.mxu0 0
    %3132 = vmatprep.subr.bf16.mxu0 0
    %3133 = vmatpush1.bf16.xpose.msra.mxu0 0
    %3134 = vmatprep.subr.bf16.mxu0 0
    %3135 = vmatpush1.bf16.xpose.msra.mxu0 0
    %3136 = vmatprep.subr.bf16.mxu0 0
    %3137 = vmatpush1.bf16.xpose.msra.mxu0 0
    %3138 = vmatprep.subr.bf16.mxu0 0
    %3139 = vmatpush1.bf16.xpose.msra.mxu0 0
    %3140 = vmatprep.subr.bf16.mxu0 0
    %3141 = vmatpush1.bf16.xpose.msra.mxu0 0
    %3142 = vmatprep.subr.bf16.mxu0 0
    %3143 = vmatpush1.bf16.xpose.msra.mxu0 0
    %3144 = vmatprep.mubr.bf16.mxu0 %v1412
    %3145 = vmatmul.mubr.bf16.gmra.mrb[0].mxu0 %v1411
    %v3146 = vpop.f32.mrb[0].mxu0
    %v3147 = vadd.f32 %v3090, %v3146
    %v3148 = vpop.f32.mrb[0].mxu0
    %v3149 = vpop.f32.mrb[0].mxu0
    %v3150 = vadd.f32 %v3093, %v3149
    %v3151 = vpop.f32.mrb[0].mxu0
    %3152 = vmatprep.mubr.bf16.mxu0 %v1508
    %3153 = vmatmul.mubr.bf16.gmra.mrb[0].mxu0 %v1507
    %v3154 = vpop.f32.mrb[0].mxu0
    %v3155 = vadd.f32 %v3098, %v3154
    %v3156 = vpop.f32.mrb[0].mxu0
    %v3157 = vpop.f32.mrb[0].mxu0
    %v3158 = vadd.f32 %v3101, %v3157
    %v3159 = vpop.f32.mrb[0].mxu0
    %3160 = vmatprep.mubr.bf16.mxu0 %v1604
    %3161 = vmatmul.mubr.bf16.gmra.mrb[0].mxu0 %v1603
    %v3162 = vpop.f32.mrb[0].mxu0
    %v3163 = vadd.f32 %v3106, %v3162
    %v3164 = vpop.f32.mrb[0].mxu0
    %v3165 = vpop.f32.mrb[0].mxu0
    %v3166 = vadd.f32 %v3109, %v3165
    %v3167 = vpop.f32.mrb[0].mxu0
    %3168 = vdwg.mxu0
    %3169 = vmatprep.subr.bf16.mxu0 %v2566
    %3170 = vmatpush1.bf16.xpose.msra.mxu0 %v2565
    %3171 = vmatprep.subr.bf16.mxu0 %v2662
    %3172 = vmatpush1.bf16.xpose.msra.mxu0 %v2661
    %3173 = vmatprep.subr.bf16.mxu0 0
    %3174 = vmatpush1.bf16.xpose.msra.mxu0 0
    %3175 = vmatprep.subr.bf16.mxu0 0
    %3176 = vmatpush1.bf16.xpose.msra.mxu0 0
    %3177 = vmatprep.subr.bf16.mxu0 0
    %3178 = vmatpush1.bf16.xpose.msra.mxu0 0
    %3179 = vmatprep.subr.bf16.mxu0 0
    %3180 = vmatpush1.bf16.xpose.msra.mxu0 0
    %3181 = vmatprep.subr.bf16.mxu0 0
    %3182 = vmatpush1.bf16.xpose.msra.mxu0 0
    %3183 = vmatprep.subr.bf16.mxu0 0
    %3184 = vmatpush1.bf16.xpose.msra.mxu0 0
    %3185 = vmatprep.subr.bf16.mxu0 0
    %3186 = vmatpush1.bf16.xpose.msra.mxu0 0
    %3187 = vmatprep.subr.bf16.mxu0 0
    %3188 = vmatpush1.bf16.xpose.msra.mxu0 0
    %3189 = vmatprep.subr.bf16.mxu0 0
    %3190 = vmatpush1.bf16.xpose.msra.mxu0 0
    %3191 = vmatprep.subr.bf16.mxu0 0
    %3192 = vmatpush1.bf16.xpose.msra.mxu0 0
    %3193 = vmatprep.subr.bf16.mxu0 0
    %3194 = vmatpush1.bf16.xpose.msra.mxu0 0
    %3195 = vmatprep.subr.bf16.mxu0 0
    %3196 = vmatpush1.bf16.xpose.msra.mxu0 0
    %3197 = vmatprep.subr.bf16.mxu0 0
    %3198 = vmatpush1.bf16.xpose.msra.mxu0 0
    %3199 = vmatprep.subr.bf16.mxu0 0
    %3200 = vmatpush1.bf16.xpose.msra.mxu0 0
    %3201 = vmatprep.mubr.bf16.mxu0 %v1414
    %3202 = vmatmul.mubr.bf16.gmra.mrb[0].mxu0 %v1413
    %v3203 = vpop.f32.mrb[0].mxu0
    %v3204 = vadd.f32 %v3147, %v3203
    %v3205 = vpop.f32.mrb[0].mxu0
    %v3206 = vpop.f32.mrb[0].mxu0
    %v3207 = vadd.f32 %v3150, %v3206
    %v3208 = vpop.f32.mrb[0].mxu0
    %3209 = vmatprep.mubr.bf16.mxu0 %v1510
    %3210 = vmatmul.mubr.bf16.gmra.mrb[0].mxu0 %v1509
    %v3211 = vpop.f32.mrb[0].mxu0
    %v3212 = vadd.f32 %v3155, %v3211
    %v3213 = vpop.f32.mrb[0].mxu0
    %v3214 = vpop.f32.mrb[0].mxu0
    %v3215 = vadd.f32 %v3158, %v3214
    %v3216 = vpop.f32.mrb[0].mxu0
    %3217 = vmatprep.mubr.bf16.mxu0 %v1606
    %3218 = vmatmul.mubr.bf16.gmra.mrb[0].mxu0 %v1605
    %v3219 = vpop.f32.mrb[0].mxu0
    %v3220 = vadd.f32 %v3163, %v3219
    %v3221 = vpop.f32.mrb[0].mxu0
    %v3222 = vpop.f32.mrb[0].mxu0
    %v3223 = vadd.f32 %v3166, %v3222
    %v3224 = vpop.f32.mrb[0].mxu0
    %3225 = vdwg.mxu0
    %3226 = vmatprep.subr.bf16.mxu0 %v2568
    %3227 = vmatpush1.bf16.xpose.msra.mxu0 %v2567
    %3228 = vmatprep.subr.bf16.mxu0 %v2664
    %3229 = vmatpush1.bf16.xpose.msra.mxu0 %v2663
    %3230 = vmatprep.subr.bf16.mxu0 0
    %3231 = vmatpush1.bf16.xpose.msra.mxu0 0
    %3232 = vmatprep.subr.bf16.mxu0 0
    %3233 = vmatpush1.bf16.xpose.msra.mxu0 0
    %3234 = vmatprep.subr.bf16.mxu0 0
    %3235 = vmatpush1.bf16.xpose.msra.mxu0 0
    %3236 = vmatprep.subr.bf16.mxu0 0
    %3237 = vmatpush1.bf16.xpose.msra.mxu0 0
    %3238 = vmatprep.subr.bf16.mxu0 0
    %3239 = vmatpush1.bf16.xpose.msra.mxu0 0
    %3240 = vmatprep.subr.bf16.mxu0 0
    %3241 = vmatpush1.bf16.xpose.msra.mxu0 0
    %3242 = vmatprep.subr.bf16.mxu0 0
    %3243 = vmatpush1.bf16.xpose.msra.mxu0 0
    %3244 = vmatprep.subr.bf16.mxu0 0
    %3245 = vmatpush1.bf16.xpose.msra.mxu0 0
    %3246 = vmatprep.subr.bf16.mxu0 0
    %3247 = vmatpush1.bf16.xpose.msra.mxu0 0
    %3248 = vmatprep.subr.bf16.mxu0 0
    %3249 = vmatpush1.bf16.xpose.msra.mxu0 0
    %3250 = vmatprep.subr.bf16.mxu0 0
    %3251 = vmatpush1.bf16.xpose.msra.mxu0 0
    %3252 = vmatprep.subr.bf16.mxu0 0
    %3253 = vmatpush1.bf16.xpose.msra.mxu0 0
    %3254 = vmatprep.subr.bf16.mxu0 0
    %3255 = vmatpush1.bf16.xpose.msra.mxu0 0
    %3256 = vmatprep.subr.bf16.mxu0 0
    %3257 = vmatpush1.bf16.xpose.msra.mxu0 0
    %3258 = vmatprep.mubr.bf16.mxu0 %v1416
    %3259 = vmatmul.mubr.bf16.gmra.mrb[0].mxu0 %v1415
    %v3260 = vpop.f32.mrb[0].mxu0
    %v3261 = vadd.f32 %v3204, %v3260
    %v3262 = vpop.f32.mrb[0].mxu0
    %v3263 = vpop.f32.mrb[0].mxu0
    %v3264 = vadd.f32 %v3207, %v3263
    %v3265 = vpop.f32.mrb[0].mxu0
    %3266 = vmatprep.mubr.bf16.mxu0 %v1512
    %3267 = vmatmul.mubr.bf16.gmra.mrb[0].mxu0 %v1511
    %v3268 = vpop.f32.mrb[0].mxu0
    %v3269 = vadd.f32 %v3212, %v3268
    %v3270 = vpop.f32.mrb[0].mxu0
    %v3271 = vpop.f32.mrb[0].mxu0
    %v3272 = vadd.f32 %v3215, %v3271
    %v3273 = vpop.f32.mrb[0].mxu0
    %3274 = vmatprep.mubr.bf16.mxu0 %v1608
    %3275 = vmatmul.mubr.bf16.gmra.mrb[0].mxu0 %v1607
    %v3276 = vpop.f32.mrb[0].mxu0
    %v3277 = vadd.f32 %v3220, %v3276
    %v3278 = vpop.f32.mrb[0].mxu0
    %v3279 = vpop.f32.mrb[0].mxu0
    %v3280 = vadd.f32 %v3223, %v3279
    %v3281 = vpop.f32.mrb[0].mxu0
    %3282 = vdwg.mxu0
    %3283 = vmatprep.subr.bf16.mxu0 %v2570
    %3284 = vmatpush1.bf16.xpose.msra.mxu0 %v2569
    %3285 = vmatprep.subr.bf16.mxu0 %v2666
    %3286 = vmatpush1.bf16.xpose.msra.mxu0 %v2665
    %3287 = vmatprep.subr.bf16.mxu0 0
    %3288 = vmatpush1.bf16.xpose.msra.mxu0 0
    %3289 = vmatprep.subr.bf16.mxu0 0
    %3290 = vmatpush1.bf16.xpose.msra.mxu0 0
    %3291 = vmatprep.subr.bf16.mxu0 0
    %3292 = vmatpush1.bf16.xpose.msra.mxu0 0
    %3293 = vmatprep.subr.bf16.mxu0 0
    %3294 = vmatpush1.bf16.xpose.msra.mxu0 0
    %3295 = vmatprep.subr.bf16.mxu0 0
    %3296 = vmatpush1.bf16.xpose.msra.mxu0 0
    %3297 = vmatprep.subr.bf16.mxu0 0
    %3298 = vmatpush1.bf16.xpose.msra.mxu0 0
    %3299 = vmatprep.subr.bf16.mxu0 0
    %3300 = vmatpush1.bf16.xpose.msra.mxu0 0
    %3301 = vmatprep.subr.bf16.mxu0 0
    %3302 = vmatpush1.bf16.xpose.msra.mxu0 0
    %3303 = vmatprep.subr.bf16.mxu0 0
    %3304 = vmatpush1.bf16.xpose.msra.mxu0 0
    %3305 = vmatprep.subr.bf16.mxu0 0
    %3306 = vmatpush1.bf16.xpose.msra.mxu0 0
    %3307 = vmatprep.subr.bf16.mxu0 0
    %3308 = vmatpush1.bf16.xpose.msra.mxu0 0
    %3309 = vmatprep.subr.bf16.mxu0 0
    %3310 = vmatpush1.bf16.xpose.msra.mxu0 0
    %3311 = vmatprep.subr.bf16.mxu0 0
    %3312 = vmatpush1.bf16.xpose.msra.mxu0 0
    %3313 = vmatprep.subr.bf16.mxu0 0
    %3314 = vmatpush1.bf16.xpose.msra.mxu0 0
    %3315 = vmatprep.mubr.bf16.mxu0 %v1418
    %3316 = vmatmul.mubr.bf16.gmra.mrb[0].mxu0 %v1417
    %v3317 = vpop.f32.mrb[0].mxu0
    %v3318 = vadd.f32 %v3261, %v3317
    %v3319 = vpop.f32.mrb[0].mxu0
    %v3320 = vpop.f32.mrb[0].mxu0
    %v3321 = vadd.f32 %v3264, %v3320
    %v3322 = vpop.f32.mrb[0].mxu0
    %3323 = vmatprep.mubr.bf16.mxu0 %v1514
    %3324 = vmatmul.mubr.bf16.gmra.mrb[0].mxu0 %v1513
    %v3325 = vpop.f32.mrb[0].mxu0
    %v3326 = vadd.f32 %v3269, %v3325
    %v3327 = vpop.f32.mrb[0].mxu0
    %v3328 = vpop.f32.mrb[0].mxu0
    %v3329 = vadd.f32 %v3272, %v3328
    %v3330 = vpop.f32.mrb[0].mxu0
    %3331 = vmatprep.mubr.bf16.mxu0 %v1610
    %3332 = vmatmul.mubr.bf16.gmra.mrb[0].mxu0 %v1609
    %v3333 = vpop.f32.mrb[0].mxu0
    %v3334 = vadd.f32 %v3277, %v3333
    %v3335 = vpop.f32.mrb[0].mxu0
    %v3336 = vpop.f32.mrb[0].mxu0
    %v3337 = vadd.f32 %v3280, %v3336
    %v3338 = vpop.f32.mrb[0].mxu0
    %3339 = vdwg.mxu0
    %3340 = vmatprep.subr.bf16.mxu0 %v2572
    %3341 = vmatpush1.bf16.xpose.msra.mxu0 %v2571
    %3342 = vmatprep.subr.bf16.mxu0 %v2668
    %3343 = vmatpush1.bf16.xpose.msra.mxu0 %v2667
    %3344 = vmatprep.subr.bf16.mxu0 0
    %3345 = vmatpush1.bf16.xpose.msra.mxu0 0
    %3346 = vmatprep.subr.bf16.mxu0 0
    %3347 = vmatpush1.bf16.xpose.msra.mxu0 0
    %3348 = vmatprep.subr.bf16.mxu0 0
    %3349 = vmatpush1.bf16.xpose.msra.mxu0 0
    %3350 = vmatprep.subr.bf16.mxu0 0
    %3351 = vmatpush1.bf16.xpose.msra.mxu0 0
    %3352 = vmatprep.subr.bf16.mxu0 0
    %3353 = vmatpush1.bf16.xpose.msra.mxu0 0
    %3354 = vmatprep.subr.bf16.mxu0 0
    %3355 = vmatpush1.bf16.xpose.msra.mxu0 0
    %3356 = vmatprep.subr.bf16.mxu0 0
    %3357 = vmatpush1.bf16.xpose.msra.mxu0 0
    %3358 = vmatprep.subr.bf16.mxu0 0
    %3359 = vmatpush1.bf16.xpose.msra.mxu0 0
    %3360 = vmatprep.subr.bf16.mxu0 0
    %3361 = vmatpush1.bf16.xpose.msra.mxu0 0
    %3362 = vmatprep.subr.bf16.mxu0 0
    %3363 = vmatpush1.bf16.xpose.msra.mxu0 0
    %3364 = vmatprep.subr.bf16.mxu0 0
    %3365 = vmatpush1.bf16.xpose.msra.mxu0 0
    %3366 = vmatprep.subr.bf16.mxu0 0
    %3367 = vmatpush1.bf16.xpose.msra.mxu0 0
    %3368 = vmatprep.subr.bf16.mxu0 0
    %3369 = vmatpush1.bf16.xpose.msra.mxu0 0
    %3370 = vmatprep.subr.bf16.mxu0 0
    %3371 = vmatpush1.bf16.xpose.msra.mxu0 0
    %3372 = vmatprep.mubr.bf16.mxu0 %v1420
    %3373 = vmatmul.mubr.bf16.gmra.mrb[0].mxu0 %v1419
    %v3374 = vpop.f32.mrb[0].mxu0
    %v3375 = vadd.f32 %v3318, %v3374
    %v3376 = vpop.f32.mrb[0].mxu0
    %v3377 = vpop.f32.mrb[0].mxu0
    %v3378 = vadd.f32 %v3321, %v3377
    %v3379 = vpop.f32.mrb[0].mxu0
    %3380 = vmatprep.mubr.bf16.mxu0 %v1516
    %3381 = vmatmul.mubr.bf16.gmra.mrb[0].mxu0 %v1515
    %v3382 = vpop.f32.mrb[0].mxu0
    %v3383 = vadd.f32 %v3326, %v3382
    %v3384 = vpop.f32.mrb[0].mxu0
    %v3385 = vpop.f32.mrb[0].mxu0
    %v3386 = vadd.f32 %v3329, %v3385
    %v3387 = vpop.f32.mrb[0].mxu0
    %3388 = vmatprep.mubr.bf16.mxu0 %v1612
    %3389 = vmatmul.mubr.bf16.gmra.mrb[0].mxu0 %v1611
    %v3390 = vpop.f32.mrb[0].mxu0
    %v3391 = vadd.f32 %v3334, %v3390
    %v3392 = vpop.f32.mrb[0].mxu0
    %v3393 = vpop.f32.mrb[0].mxu0
    %v3394 = vadd.f32 %v3337, %v3393
    %v3395 = vpop.f32.mrb[0].mxu0
    %3396 = vdwg.mxu0
    %3397 = vmatprep.subr.bf16.mxu0 %v2574
    %3398 = vmatpush1.bf16.xpose.msra.mxu0 %v2573
    %3399 = vmatprep.subr.bf16.mxu0 %v2670
    %3400 = vmatpush1.bf16.xpose.msra.mxu0 %v2669
    %3401 = vmatprep.subr.bf16.mxu0 0
    %3402 = vmatpush1.bf16.xpose.msra.mxu0 0
    %3403 = vmatprep.subr.bf16.mxu0 0
    %3404 = vmatpush1.bf16.xpose.msra.mxu0 0
    %3405 = vmatprep.subr.bf16.mxu0 0
    %3406 = vmatpush1.bf16.xpose.msra.mxu0 0
    %3407 = vmatprep.subr.bf16.mxu0 0
    %3408 = vmatpush1.bf16.xpose.msra.mxu0 0
    %3409 = vmatprep.subr.bf16.mxu0 0
    %3410 = vmatpush1.bf16.xpose.msra.mxu0 0
    %3411 = vmatprep.subr.bf16.mxu0 0
    %3412 = vmatpush1.bf16.xpose.msra.mxu0 0
    %3413 = vmatprep.subr.bf16.mxu0 0
    %3414 = vmatpush1.bf16.xpose.msra.mxu0 0
    %3415 = vmatprep.subr.bf16.mxu0 0
    %3416 = vmatpush1.bf16.xpose.msra.mxu0 0
    %3417 = vmatprep.subr.bf16.mxu0 0
    %3418 = vmatpush1.bf16.xpose.msra.mxu0 0
    %3419 = vmatprep.subr.bf16.mxu0 0
    %3420 = vmatpush1.bf16.xpose.msra.mxu0 0
    %3421 = vmatprep.subr.bf16.mxu0 0
    %3422 = vmatpush1.bf16.xpose.msra.mxu0 0
    %3423 = vmatprep.subr.bf16.mxu0 0
    %3424 = vmatpush1.bf16.xpose.msra.mxu0 0
    %3425 = vmatprep.subr.bf16.mxu0 0
    %3426 = vmatpush1.bf16.xpose.msra.mxu0 0
    %3427 = vmatprep.subr.bf16.mxu0 0
    %3428 = vmatpush1.bf16.xpose.msra.mxu0 0
    %3429 = vmatprep.mubr.bf16.mxu0 %v1422
    %3430 = vmatmul.mubr.bf16.gmra.mrb[0].mxu0 %v1421
    %v3431 = vpop.f32.mrb[0].mxu0
    %v3432 = vadd.f32 %v3375, %v3431
    %v3433 = vpop.f32.mrb[0].mxu0
    %v3434 = vpop.f32.mrb[0].mxu0
    %v3435 = vadd.f32 %v3378, %v3434
    %v3436 = vpop.f32.mrb[0].mxu0
    %3437 = vmatprep.mubr.bf16.mxu0 %v1518
    %3438 = vmatmul.mubr.bf16.gmra.mrb[0].mxu0 %v1517
    %v3439 = vpop.f32.mrb[0].mxu0
    %v3440 = vadd.f32 %v3383, %v3439
    %v3441 = vpop.f32.mrb[0].mxu0
    %v3442 = vpop.f32.mrb[0].mxu0
    %v3443 = vadd.f32 %v3386, %v3442
    %v3444 = vpop.f32.mrb[0].mxu0
    %3445 = vmatprep.mubr.bf16.mxu0 %v1614
    %3446 = vmatmul.mubr.bf16.gmra.mrb[0].mxu0 %v1613
    %v3447 = vpop.f32.mrb[0].mxu0
    %v3448 = vadd.f32 %v3391, %v3447
    %v3449 = vpop.f32.mrb[0].mxu0
    %v3450 = vpop.f32.mrb[0].mxu0
    %v3451 = vadd.f32 %v3394, %v3450
    %v3452 = vpop.f32.mrb[0].mxu0
    %3453 = vdwg.mxu0
    %3454 = vmatprep.subr.bf16.mxu0 %v2576
    %3455 = vmatpush1.bf16.xpose.msra.mxu0 %v2575
    %3456 = vmatprep.subr.bf16.mxu0 %v2672
    %3457 = vmatpush1.bf16.xpose.msra.mxu0 %v2671
    %3458 = vmatprep.subr.bf16.mxu0 0
    %3459 = vmatpush1.bf16.xpose.msra.mxu0 0
    %3460 = vmatprep.subr.bf16.mxu0 0
    %3461 = vmatpush1.bf16.xpose.msra.mxu0 0
    %3462 = vmatprep.subr.bf16.mxu0 0
    %3463 = vmatpush1.bf16.xpose.msra.mxu0 0
    %3464 = vmatprep.subr.bf16.mxu0 0
    %3465 = vmatpush1.bf16.xpose.msra.mxu0 0
    %3466 = vmatprep.subr.bf16.mxu0 0
    %3467 = vmatpush1.bf16.xpose.msra.mxu0 0
    %3468 = vmatprep.subr.bf16.mxu0 0
    %3469 = vmatpush1.bf16.xpose.msra.mxu0 0
    %3470 = vmatprep.subr.bf16.mxu0 0
    %3471 = vmatpush1.bf16.xpose.msra.mxu0 0
    %3472 = vmatprep.subr.bf16.mxu0 0
    %3473 = vmatpush1.bf16.xpose.msra.mxu0 0
    %3474 = vmatprep.subr.bf16.mxu0 0
    %3475 = vmatpush1.bf16.xpose.msra.mxu0 0
    %3476 = vmatprep.subr.bf16.mxu0 0
    %3477 = vmatpush1.bf16.xpose.msra.mxu0 0
    %3478 = vmatprep.subr.bf16.mxu0 0
    %3479 = vmatpush1.bf16.xpose.msra.mxu0 0
    %3480 = vmatprep.subr.bf16.mxu0 0
    %3481 = vmatpush1.bf16.xpose.msra.mxu0 0
    %3482 = vmatprep.subr.bf16.mxu0 0
    %3483 = vmatpush1.bf16.xpose.msra.mxu0 0
    %3484 = vmatprep.subr.bf16.mxu0 0
    %3485 = vmatpush1.bf16.xpose.msra.mxu0 0
    %3486 = vmatprep.mubr.bf16.mxu0 %v1424
    %3487 = vmatmul.mubr.bf16.gmra.mrb[0].mxu0 %v1423
    %v3488 = vpop.f32.mrb[0].mxu0
    %v3489 = vadd.f32 %v3432, %v3488
    %v3490 = vpop.f32.mrb[0].mxu0
    %v3491 = vpop.f32.mrb[0].mxu0
    %v3492 = vadd.f32 %v3435, %v3491
    %v3493 = vpop.f32.mrb[0].mxu0
    %3494 = vmatprep.mubr.bf16.mxu0 %v1520
    %3495 = vmatmul.mubr.bf16.gmra.mrb[0].mxu0 %v1519
    %v3496 = vpop.f32.mrb[0].mxu0
    %v3497 = vadd.f32 %v3440, %v3496
    %v3498 = vpop.f32.mrb[0].mxu0
    %v3499 = vpop.f32.mrb[0].mxu0
    %v3500 = vadd.f32 %v3443, %v3499
    %v3501 = vpop.f32.mrb[0].mxu0
    %3502 = vmatprep.mubr.bf16.mxu0 %v1616
    %3503 = vmatmul.mubr.bf16.gmra.mrb[0].mxu0 %v1615
    %v3504 = vpop.f32.mrb[0].mxu0
    %v3505 = vadd.f32 %v3448, %v3504
    %v3506 = vpop.f32.mrb[0].mxu0
    %v3507 = vpop.f32.mrb[0].mxu0
    %v3508 = vadd.f32 %v3451, %v3507
    %v3509 = vpop.f32.mrb[0].mxu0
    %3510 = vdwg.mxu0
    %3511 = vmatprep.subr.bf16.mxu0 %v2578
    %3512 = vmatpush1.bf16.xpose.msra.mxu0 %v2577
    %3513 = vmatprep.subr.bf16.mxu0 %v2674
    %3514 = vmatpush1.bf16.xpose.msra.mxu0 %v2673
    %3515 = vmatprep.subr.bf16.mxu0 0
    %3516 = vmatpush1.bf16.xpose.msra.mxu0 0
    %3517 = vmatprep.subr.bf16.mxu0 0
    %3518 = vmatpush1.bf16.xpose.msra.mxu0 0
    %3519 = vmatprep.subr.bf16.mxu0 0
    %3520 = vmatpush1.bf16.xpose.msra.mxu0 0
    %3521 = vmatprep.subr.bf16.mxu0 0
    %3522 = vmatpush1.bf16.xpose.msra.mxu0 0
    %3523 = vmatprep.subr.bf16.mxu0 0
    %3524 = vmatpush1.bf16.xpose.msra.mxu0 0
    %3525 = vmatprep.subr.bf16.mxu0 0
    %3526 = vmatpush1.bf16.xpose.msra.mxu0 0
    %3527 = vmatprep.subr.bf16.mxu0 0
    %3528 = vmatpush1.bf16.xpose.msra.mxu0 0
    %3529 = vmatprep.subr.bf16.mxu0 0
    %3530 = vmatpush1.bf16.xpose.msra.mxu0 0
    %3531 = vmatprep.subr.bf16.mxu0 0
    %3532 = vmatpush1.bf16.xpose.msra.mxu0 0
    %3533 = vmatprep.subr.bf16.mxu0 0
    %3534 = vmatpush1.bf16.xpose.msra.mxu0 0
    %3535 = vmatprep.subr.bf16.mxu0 0
    %3536 = vmatpush1.bf16.xpose.msra.mxu0 0
    %3537 = vmatprep.subr.bf16.mxu0 0
    %3538 = vmatpush1.bf16.xpose.msra.mxu0 0
    %3539 = vmatprep.subr.bf16.mxu0 0
    %3540 = vmatpush1.bf16.xpose.msra.mxu0 0
    %3541 = vmatprep.subr.bf16.mxu0 0
    %3542 = vmatpush1.bf16.xpose.msra.mxu0 0
    %3543 = vmatprep.mubr.bf16.mxu0 %v1426
    %3544 = vmatmul.mubr.bf16.gmra.mrb[0].mxu0 %v1425
    %v3545 = vpop.f32.mrb[0].mxu0
    %v3546 = vadd.f32 %v3489, %v3545
    %v3547 = vpop.f32.mrb[0].mxu0
    %v3548 = vpop.f32.mrb[0].mxu0
    %v3549 = vadd.f32 %v3492, %v3548
    %v3550 = vpop.f32.mrb[0].mxu0
    %3551 = vmatprep.mubr.bf16.mxu0 %v1522
    %3552 = vmatmul.mubr.bf16.gmra.mrb[0].mxu0 %v1521
    %v3553 = vpop.f32.mrb[0].mxu0
    %v3554 = vadd.f32 %v3497, %v3553
    %v3555 = vpop.f32.mrb[0].mxu0
    %v3556 = vpop.f32.mrb[0].mxu0
    %v3557 = vadd.f32 %v3500, %v3556
    %v3558 = vpop.f32.mrb[0].mxu0
    %3559 = vmatprep.mubr.bf16.mxu0 %v1618
    %3560 = vmatmul.mubr.bf16.gmra.mrb[0].mxu0 %v1617
    %v3561 = vpop.f32.mrb[0].mxu0
    %v3562 = vadd.f32 %v3505, %v3561
    %v3563 = vpop.f32.mrb[0].mxu0
    %v3564 = vpop.f32.mrb[0].mxu0
    %v3565 = vadd.f32 %v3508, %v3564
    %v3566 = vpop.f32.mrb[0].mxu0
    %3567 = vdwg.mxu0
    %3568 = vmatprep.subr.bf16.mxu0 %v2580
    %3569 = vmatpush1.bf16.xpose.msra.mxu0 %v2579
    %3570 = vmatprep.subr.bf16.mxu0 %v2676
    %3571 = vmatpush1.bf16.xpose.msra.mxu0 %v2675
    %3572 = vmatprep.subr.bf16.mxu0 0
    %3573 = vmatpush1.bf16.xpose.msra.mxu0 0
    %3574 = vmatprep.subr.bf16.mxu0 0
    %3575 = vmatpush1.bf16.xpose.msra.mxu0 0
    %3576 = vmatprep.subr.bf16.mxu0 0
    %3577 = vmatpush1.bf16.xpose.msra.mxu0 0
    %3578 = vmatprep.subr.bf16.mxu0 0
    %3579 = vmatpush1.bf16.xpose.msra.mxu0 0
    %3580 = vmatprep.subr.bf16.mxu0 0
    %3581 = vmatpush1.bf16.xpose.msra.mxu0 0
    %3582 = vmatprep.subr.bf16.mxu0 0
    %3583 = vmatpush1.bf16.xpose.msra.mxu0 0
    %3584 = vmatprep.subr.bf16.mxu0 0
    %3585 = vmatpush1.bf16.xpose.msra.mxu0 0
    %3586 = vmatprep.subr.bf16.mxu0 0
    %3587 = vmatpush1.bf16.xpose.msra.mxu0 0
    %3588 = vmatprep.subr.bf16.mxu0 0
    %3589 = vmatpush1.bf16.xpose.msra.mxu0 0
    %3590 = vmatprep.subr.bf16.mxu0 0
    %3591 = vmatpush1.bf16.xpose.msra.mxu0 0
    %3592 = vmatprep.subr.bf16.mxu0 0
    %3593 = vmatpush1.bf16.xpose.msra.mxu0 0
    %3594 = vmatprep.subr.bf16.mxu0 0
    %3595 = vmatpush1.bf16.xpose.msra.mxu0 0
    %3596 = vmatprep.subr.bf16.mxu0 0
    %3597 = vmatpush1.bf16.xpose.msra.mxu0 0
    %3598 = vmatprep.subr.bf16.mxu0 0
    %3599 = vmatpush1.bf16.xpose.msra.mxu0 0
    %3600 = vmatprep.mubr.bf16.mxu0 %v1428
    %3601 = vmatmul.mubr.bf16.gmra.mrb[0].mxu0 %v1427
    %v3602 = vpop.f32.mrb[0].mxu0
    %v3603 = vadd.f32 %v3546, %v3602
    %v3604 = vpop.f32.mrb[0].mxu0
    %v3605 = vpop.f32.mrb[0].mxu0
    %v3606 = vadd.f32 %v3549, %v3605
    %v3607 = vpop.f32.mrb[0].mxu0
    %3608 = vmatprep.mubr.bf16.mxu0 %v1524
    %3609 = vmatmul.mubr.bf16.gmra.mrb[0].mxu0 %v1523
    %v3610 = vpop.f32.mrb[0].mxu0
    %v3611 = vadd.f32 %v3554, %v3610
    %v3612 = vpop.f32.mrb[0].mxu0
    %v3613 = vpop.f32.mrb[0].mxu0
    %v3614 = vadd.f32 %v3557, %v3613
    %v3615 = vpop.f32.mrb[0].mxu0
    %3616 = vmatprep.mubr.bf16.mxu0 %v1620
    %3617 = vmatmul.mubr.bf16.gmra.mrb[0].mxu0 %v1619
    %v3618 = vpop.f32.mrb[0].mxu0
    %v3619 = vadd.f32 %v3562, %v3618
    %v3620 = vpop.f32.mrb[0].mxu0
    %v3621 = vpop.f32.mrb[0].mxu0
    %v3622 = vadd.f32 %v3565, %v3621
    %v3623 = vpop.f32.mrb[0].mxu0
    %3624 = vdwg.mxu0
    %3625 = vmatprep.subr.bf16.mxu0 %v2582
    %3626 = vmatpush1.bf16.xpose.msra.mxu0 %v2581
    %3627 = vmatprep.subr.bf16.mxu0 %v2678
    %3628 = vmatpush1.bf16.xpose.msra.mxu0 %v2677
    %3629 = vmatprep.subr.bf16.mxu0 0
    %3630 = vmatpush1.bf16.xpose.msra.mxu0 0
    %3631 = vmatprep.subr.bf16.mxu0 0
    %3632 = vmatpush1.bf16.xpose.msra.mxu0 0
    %3633 = vmatprep.subr.bf16.mxu0 0
    %3634 = vmatpush1.bf16.xpose.msra.mxu0 0
    %3635 = vmatprep.subr.bf16.mxu0 0
    %3636 = vmatpush1.bf16.xpose.msra.mxu0 0
    %3637 = vmatprep.subr.bf16.mxu0 0
    %3638 = vmatpush1.bf16.xpose.msra.mxu0 0
    %3639 = vmatprep.subr.bf16.mxu0 0
    %3640 = vmatpush1.bf16.xpose.msra.mxu0 0
    %3641 = vmatprep.subr.bf16.mxu0 0
    %3642 = vmatpush1.bf16.xpose.msra.mxu0 0
    %3643 = vmatprep.subr.bf16.mxu0 0
    %3644 = vmatpush1.bf16.xpose.msra.mxu0 0
    %3645 = vmatprep.subr.bf16.mxu0 0
    %3646 = vmatpush1.bf16.xpose.msra.mxu0 0
    %3647 = vmatprep.subr.bf16.mxu0 0
    %3648 = vmatpush1.bf16.xpose.msra.mxu0 0
    %3649 = vmatprep.subr.bf16.mxu0 0
    %3650 = vmatpush1.bf16.xpose.msra.mxu0 0
    %3651 = vmatprep.subr.bf16.mxu0 0
    %3652 = vmatpush1.bf16.xpose.msra.mxu0 0
    %3653 = vmatprep.subr.bf16.mxu0 0
    %3654 = vmatpush1.bf16.xpose.msra.mxu0 0
    %3655 = vmatprep.subr.bf16.mxu0 0
    %3656 = vmatpush1.bf16.xpose.msra.mxu0 0
    %3657 = vmatprep.mubr.bf16.mxu0 %v1430
    %3658 = vmatmul.mubr.bf16.gmra.mrb[0].mxu0 %v1429
    %v3659 = vpop.f32.mrb[0].mxu0
    %v3660 = vadd.f32 %v3603, %v3659
    %v3661 = vpop.f32.mrb[0].mxu0
    %v3662 = vpop.f32.mrb[0].mxu0
    %v3663 = vadd.f32 %v3606, %v3662
    %v3664 = vpop.f32.mrb[0].mxu0
    %3665 = vmatprep.mubr.bf16.mxu0 %v1526
    %3666 = vmatmul.mubr.bf16.gmra.mrb[0].mxu0 %v1525
    %v3667 = vpop.f32.mrb[0].mxu0
    %v3668 = vadd.f32 %v3611, %v3667
    %v3669 = vpop.f32.mrb[0].mxu0
    %v3670 = vpop.f32.mrb[0].mxu0
    %v3671 = vadd.f32 %v3614, %v3670
    %v3672 = vpop.f32.mrb[0].mxu0
    %3673 = vmatprep.mubr.bf16.mxu0 %v1622
    %3674 = vmatmul.mubr.bf16.gmra.mrb[0].mxu0 %v1621
    %v3675 = vpop.f32.mrb[0].mxu0
    %v3676 = vadd.f32 %v3619, %v3675
    %v3677 = vpop.f32.mrb[0].mxu0
    %v3678 = vpop.f32.mrb[0].mxu0
    %v3679 = vadd.f32 %v3622, %v3678
    %v3680 = vpop.f32.mrb[0].mxu0
    %3681 = vdwg.mxu0
    %3682 = vmatprep.subr.bf16.mxu0 %v2584
    %3683 = vmatpush1.bf16.xpose.msra.mxu0 %v2583
    %3684 = vmatprep.subr.bf16.mxu0 %v2680
    %3685 = vmatpush1.bf16.xpose.msra.mxu0 %v2679
    %3686 = vmatprep.subr.bf16.mxu0 0
    %3687 = vmatpush1.bf16.xpose.msra.mxu0 0
    %3688 = vmatprep.subr.bf16.mxu0 0
    %3689 = vmatpush1.bf16.xpose.msra.mxu0 0
    %3690 = vmatprep.subr.bf16.mxu0 0
    %3691 = vmatpush1.bf16.xpose.msra.mxu0 0
    %3692 = vmatprep.subr.bf16.mxu0 0
    %3693 = vmatpush1.bf16.xpose.msra.mxu0 0
    %3694 = vmatprep.subr.bf16.mxu0 0
    %3695 = vmatpush1.bf16.xpose.msra.mxu0 0
    %3696 = vmatprep.subr.bf16.mxu0 0
    %3697 = vmatpush1.bf16.xpose.msra.mxu0 0
    %3698 = vmatprep.subr.bf16.mxu0 0
    %3699 = vmatpush1.bf16.xpose.msra.mxu0 0
    %3700 = vmatprep.subr.bf16.mxu0 0
    %3701 = vmatpush1.bf16.xpose.msra.mxu0 0
    %3702 = vmatprep.subr.bf16.mxu0 0
    %3703 = vmatpush1.bf16.xpose.msra.mxu0 0
    %3704 = vmatprep.subr.bf16.mxu0 0
    %3705 = vmatpush1.bf16.xpose.msra.mxu0 0
    %3706 = vmatprep.subr.bf16.mxu0 0
    %3707 = vmatpush1.bf16.xpose.msra.mxu0 0
    %3708 = vmatprep.subr.bf16.mxu0 0
    %3709 = vmatpush1.bf16.xpose.msra.mxu0 0
    %3710 = vmatprep.subr.bf16.mxu0 0
    %3711 = vmatpush1.bf16.xpose.msra.mxu0 0
    %3712 = vmatprep.subr.bf16.mxu0 0
    %3713 = vmatpush1.bf16.xpose.msra.mxu0 0
    %3714 = vmatprep.mubr.bf16.mxu0 %v1432
    %3715 = vmatmul.mubr.bf16.gmra.mrb[0].mxu0 %v1431
    %v3716 = vpop.f32.mrb[0].mxu0
    %v3717 = vadd.f32 %v3660, %v3716
    %v3718 = vpop.f32.mrb[0].mxu0
    %v3719 = vpop.f32.mrb[0].mxu0
    %v3720 = vadd.f32 %v3663, %v3719
    %v3721 = vpop.f32.mrb[0].mxu0
    %3722 = vmatprep.mubr.bf16.mxu0 %v1528
    %3723 = vmatmul.mubr.bf16.gmra.mrb[0].mxu0 %v1527
    %v3724 = vpop.f32.mrb[0].mxu0
    %v3725 = vadd.f32 %v3668, %v3724
    %v3726 = vpop.f32.mrb[0].mxu0
    %v3727 = vpop.f32.mrb[0].mxu0
    %v3728 = vadd.f32 %v3671, %v3727
    %v3729 = vpop.f32.mrb[0].mxu0
    %3730 = vmatprep.mubr.bf16.mxu0 %v1624
    %3731 = vmatmul.mubr.bf16.gmra.mrb[0].mxu0 %v1623
    %v3732 = vpop.f32.mrb[0].mxu0
    %v3733 = vadd.f32 %v3676, %v3732
    %v3734 = vpop.f32.mrb[0].mxu0
    %v3735 = vpop.f32.mrb[0].mxu0
    %v3736 = vadd.f32 %v3679, %v3735
    %v3737 = vpop.f32.mrb[0].mxu0
    %3738 = vdwg.mxu0
    %3739 = vmatprep.subr.bf16.mxu0 %v2586
    %3740 = vmatpush1.bf16.xpose.msra.mxu0 %v2585
    %3741 = vmatprep.subr.bf16.mxu0 %v2682
    %3742 = vmatpush1.bf16.xpose.msra.mxu0 %v2681
    %3743 = vmatprep.subr.bf16.mxu0 0
    %3744 = vmatpush1.bf16.xpose.msra.mxu0 0
    %3745 = vmatprep.subr.bf16.mxu0 0
    %3746 = vmatpush1.bf16.xpose.msra.mxu0 0
    %3747 = vmatprep.subr.bf16.mxu0 0
    %3748 = vmatpush1.bf16.xpose.msra.mxu0 0
    %3749 = vmatprep.subr.bf16.mxu0 0
    %3750 = vmatpush1.bf16.xpose.msra.mxu0 0
    %3751 = vmatprep.subr.bf16.mxu0 0
    %3752 = vmatpush1.bf16.xpose.msra.mxu0 0
    %3753 = vmatprep.subr.bf16.mxu0 0
    %3754 = vmatpush1.bf16.xpose.msra.mxu0 0
    %3755 = vmatprep.subr.bf16.mxu0 0
    %3756 = vmatpush1.bf16.xpose.msra.mxu0 0
    %3757 = vmatprep.subr.bf16.mxu0 0
    %3758 = vmatpush1.bf16.xpose.msra.mxu0 0
    %3759 = vmatprep.subr.bf16.mxu0 0
    %3760 = vmatpush1.bf16.xpose.msra.mxu0 0
    %3761 = vmatprep.subr.bf16.mxu0 0
    %3762 = vmatpush1.bf16.xpose.msra.mxu0 0
    %3763 = vmatprep.subr.bf16.mxu0 0
    %3764 = vmatpush1.bf16.xpose.msra.mxu0 0
    %3765 = vmatprep.subr.bf16.mxu0 0
    %3766 = vmatpush1.bf16.xpose.msra.mxu0 0
    %3767 = vmatprep.subr.bf16.mxu0 0
    %3768 = vmatpush1.bf16.xpose.msra.mxu0 0
    %3769 = vmatprep.subr.bf16.mxu0 0
    %3770 = vmatpush1.bf16.xpose.msra.mxu0 0
    %3771 = vmatprep.mubr.bf16.mxu0 %v1434
    %3772 = vmatmul.mubr.bf16.gmra.mrb[0].mxu0 %v1433
    %v3773 = vpop.f32.mrb[0].mxu0
    %v3774 = vadd.f32 %v3717, %v3773
    %v3775 = vpop.f32.mrb[0].mxu0
    %v3776 = vpop.f32.mrb[0].mxu0
    %v3777 = vadd.f32 %v3720, %v3776
    %v3778 = vpop.f32.mrb[0].mxu0
    %3779 = vmatprep.mubr.bf16.mxu0 %v1530
    %3780 = vmatmul.mubr.bf16.gmra.mrb[0].mxu0 %v1529
    %v3781 = vpop.f32.mrb[0].mxu0
    %v3782 = vadd.f32 %v3725, %v3781
    %v3783 = vpop.f32.mrb[0].mxu0
    %v3784 = vpop.f32.mrb[0].mxu0
    %v3785 = vadd.f32 %v3728, %v3784
    %v3786 = vpop.f32.mrb[0].mxu0
    %3787 = vmatprep.mubr.bf16.mxu0 %v1626
    %3788 = vmatmul.mubr.bf16.gmra.mrb[0].mxu0 %v1625
    %v3789 = vpop.f32.mrb[0].mxu0
    %v3790 = vadd.f32 %v3733, %v3789
    %v3791 = vpop.f32.mrb[0].mxu0
    %v3792 = vpop.f32.mrb[0].mxu0
    %v3793 = vadd.f32 %v3736, %v3792
    %v3794 = vpop.f32.mrb[0].mxu0
    %3795 = vdwg.mxu0
    %3796 = vmatprep.subr.bf16.mxu0 %v2588
    %3797 = vmatpush1.bf16.xpose.msra.mxu0 %v2587
    %3798 = vmatprep.subr.bf16.mxu0 %v2684
    %3799 = vmatpush1.bf16.xpose.msra.mxu0 %v2683
    %3800 = vmatprep.subr.bf16.mxu0 0
    %3801 = vmatpush1.bf16.xpose.msra.mxu0 0
    %3802 = vmatprep.subr.bf16.mxu0 0
    %3803 = vmatpush1.bf16.xpose.msra.mxu0 0
    %3804 = vmatprep.subr.bf16.mxu0 0
    %3805 = vmatpush1.bf16.xpose.msra.mxu0 0
    %3806 = vmatprep.subr.bf16.mxu0 0
    %3807 = vmatpush1.bf16.xpose.msra.mxu0 0
    %3808 = vmatprep.subr.bf16.mxu0 0
    %3809 = vmatpush1.bf16.xpose.msra.mxu0 0
    %3810 = vmatprep.subr.bf16.mxu0 0
    %3811 = vmatpush1.bf16.xpose.msra.mxu0 0
    %3812 = vmatprep.subr.bf16.mxu0 0
    %3813 = vmatpush1.bf16.xpose.msra.mxu0 0
    %3814 = vmatprep.subr.bf16.mxu0 0
    %3815 = vmatpush1.bf16.xpose.msra.mxu0 0
    %3816 = vmatprep.subr.bf16.mxu0 0
    %3817 = vmatpush1.bf16.xpose.msra.mxu0 0
    %3818 = vmatprep.subr.bf16.mxu0 0
    %3819 = vmatpush1.bf16.xpose.msra.mxu0 0
    %3820 = vmatprep.subr.bf16.mxu0 0
    %3821 = vmatpush1.bf16.xpose.msra.mxu0 0
    %3822 = vmatprep.subr.bf16.mxu0 0
    %3823 = vmatpush1.bf16.xpose.msra.mxu0 0
    %3824 = vmatprep.subr.bf16.mxu0 0
    %3825 = vmatpush1.bf16.xpose.msra.mxu0 0
    %3826 = vmatprep.subr.bf16.mxu0 0
    %3827 = vmatpush1.bf16.xpose.msra.mxu0 0
    %3828 = vmatprep.mubr.bf16.mxu0 %v1436
    %3829 = vmatmul.mubr.bf16.gmra.mrb[0].mxu0 %v1435
    %v3830 = vpop.f32.mrb[0].mxu0
    %v3831 = vadd.f32 %v3774, %v3830
    %v3832 = vpop.f32.mrb[0].mxu0
    %v3833 = vpop.f32.mrb[0].mxu0
    %v3834 = vadd.f32 %v3777, %v3833
    %v3835 = vpop.f32.mrb[0].mxu0
    %3836 = vmatprep.mubr.bf16.mxu0 %v1532
    %3837 = vmatmul.mubr.bf16.gmra.mrb[0].mxu0 %v1531
    %v3838 = vpop.f32.mrb[0].mxu0
    %v3839 = vadd.f32 %v3782, %v3838
    %v3840 = vpop.f32.mrb[0].mxu0
    %v3841 = vpop.f32.mrb[0].mxu0
    %v3842 = vadd.f32 %v3785, %v3841
    %v3843 = vpop.f32.mrb[0].mxu0
    %3844 = vmatprep.mubr.bf16.mxu0 %v1628
    %3845 = vmatmul.mubr.bf16.gmra.mrb[0].mxu0 %v1627
    %v3846 = vpop.f32.mrb[0].mxu0
    %v3847 = vadd.f32 %v3790, %v3846
    %v3848 = vpop.f32.mrb[0].mxu0
    %v3849 = vpop.f32.mrb[0].mxu0
    %v3850 = vadd.f32 %v3793, %v3849
    %v3851 = vpop.f32.mrb[0].mxu0
    %3852 = vdwg.mxu0
    %3853 = vmatprep.subr.bf16.mxu0 %v2590
    %3854 = vmatpush1.bf16.xpose.msra.mxu0 %v2589
    %3855 = vmatprep.subr.bf16.mxu0 %v2686
    %3856 = vmatpush1.bf16.xpose.msra.mxu0 %v2685
    %3857 = vmatprep.subr.bf16.mxu0 0
    %3858 = vmatpush1.bf16.xpose.msra.mxu0 0
    %3859 = vmatprep.subr.bf16.mxu0 0
    %3860 = vmatpush1.bf16.xpose.msra.mxu0 0
    %3861 = vmatprep.subr.bf16.mxu0 0
    %3862 = vmatpush1.bf16.xpose.msra.mxu0 0
    %3863 = vmatprep.subr.bf16.mxu0 0
    %3864 = vmatpush1.bf16.xpose.msra.mxu0 0
    %3865 = vmatprep.subr.bf16.mxu0 0
    %3866 = vmatpush1.bf16.xpose.msra.mxu0 0
    %3867 = vmatprep.subr.bf16.mxu0 0
    %3868 = vmatpush1.bf16.xpose.msra.mxu0 0
    %3869 = vmatprep.subr.bf16.mxu0 0
    %3870 = vmatpush1.bf16.xpose.msra.mxu0 0
    %3871 = vmatprep.subr.bf16.mxu0 0
    %3872 = vmatpush1.bf16.xpose.msra.mxu0 0
    %3873 = vmatprep.subr.bf16.mxu0 0
    %3874 = vmatpush1.bf16.xpose.msra.mxu0 0
    %3875 = vmatprep.subr.bf16.mxu0 0
    %3876 = vmatpush1.bf16.xpose.msra.mxu0 0
    %3877 = vmatprep.subr.bf16.mxu0 0
    %3878 = vmatpush1.bf16.xpose.msra.mxu0 0
    %3879 = vmatprep.subr.bf16.mxu0 0
    %3880 = vmatpush1.bf16.xpose.msra.mxu0 0
    %3881 = vmatprep.subr.bf16.mxu0 0
    %3882 = vmatpush1.bf16.xpose.msra.mxu0 0
    %3883 = vmatprep.subr.bf16.mxu0 0
    %3884 = vmatpush1.bf16.xpose.msra.mxu0 0
    %3885 = vmatprep.mubr.bf16.mxu0 %v1438
    %3886 = vmatmul.mubr.bf16.gmra.mrb[0].mxu0 %v1437
    %v3887 = vpop.f32.mrb[0].mxu0
    %v3888 = vadd.f32 %v3831, %v3887
    %v3889 = vpop.f32.mrb[0].mxu0
    %v3890 = vpop.f32.mrb[0].mxu0
    %v3891 = vadd.f32 %v3834, %v3890
    %v3892 = vpop.f32.mrb[0].mxu0
    %3893 = vmatprep.mubr.bf16.mxu0 %v1534
    %3894 = vmatmul.mubr.bf16.gmra.mrb[0].mxu0 %v1533
    %v3895 = vpop.f32.mrb[0].mxu0
    %v3896 = vadd.f32 %v3839, %v3895
    %v3897 = vpop.f32.mrb[0].mxu0
    %v3898 = vpop.f32.mrb[0].mxu0
    %v3899 = vadd.f32 %v3842, %v3898
    %v3900 = vpop.f32.mrb[0].mxu0
    %3901 = vmatprep.mubr.bf16.mxu0 %v1630
    %3902 = vmatmul.mubr.bf16.gmra.mrb[0].mxu0 %v1629
    %v3903 = vpop.f32.mrb[0].mxu0
    %v3904 = vadd.f32 %v3847, %v3903
    %v3905 = vpop.f32.mrb[0].mxu0
    %v3906 = vpop.f32.mrb[0].mxu0
    %v3907 = vadd.f32 %v3850, %v3906
    %v3908 = vpop.f32.mrb[0].mxu0
    %3909 = vdwg.mxu0
    %3910 = vmatprep.subr.bf16.mxu0 %v2592
    %3911 = vmatpush1.bf16.xpose.msra.mxu0 %v2591
    %3912 = vmatprep.subr.bf16.mxu0 %v2688
    %3913 = vmatpush1.bf16.xpose.msra.mxu0 %v2687
    %3914 = vmatprep.subr.bf16.mxu0 0
    %3915 = vmatpush1.bf16.xpose.msra.mxu0 0
    %3916 = vmatprep.subr.bf16.mxu0 0
    %3917 = vmatpush1.bf16.xpose.msra.mxu0 0
    %3918 = vmatprep.subr.bf16.mxu0 0
    %3919 = vmatpush1.bf16.xpose.msra.mxu0 0
    %3920 = vmatprep.subr.bf16.mxu0 0
    %3921 = vmatpush1.bf16.xpose.msra.mxu0 0
    %3922 = vmatprep.subr.bf16.mxu0 0
    %3923 = vmatpush1.bf16.xpose.msra.mxu0 0
    %3924 = vmatprep.subr.bf16.mxu0 0
    %3925 = vmatpush1.bf16.xpose.msra.mxu0 0
    %3926 = vmatprep.subr.bf16.mxu0 0
    %3927 = vmatpush1.bf16.xpose.msra.mxu0 0
    %3928 = vmatprep.subr.bf16.mxu0 0
    %3929 = vmatpush1.bf16.xpose.msra.mxu0 0
    %3930 = vmatprep.subr.bf16.mxu0 0
    %3931 = vmatpush1.bf16.xpose.msra.mxu0 0
    %3932 = vmatprep.subr.bf16.mxu0 0
    %3933 = vmatpush1.bf16.xpose.msra.mxu0 0
    %3934 = vmatprep.subr.bf16.mxu0 0
    %3935 = vmatpush1.bf16.xpose.msra.mxu0 0
    %3936 = vmatprep.subr.bf16.mxu0 0
    %3937 = vmatpush1.bf16.xpose.msra.mxu0 0
    %3938 = vmatprep.subr.bf16.mxu0 0
    %3939 = vmatpush1.bf16.xpose.msra.mxu0 0
    %3940 = vmatprep.subr.bf16.mxu0 0
    %3941 = vmatpush1.bf16.xpose.msra.mxu0 0
    %3942 = vmatprep.mubr.bf16.mxu0 %v1440
    %3943 = vmatmul.mubr.bf16.gmra.mrb[0].mxu0 %v1439
    %v3944 = vpop.f32.mrb[0].mxu0
    %v3945 = vadd.f32 %v3888, %v3944
    %v3946 = vpop.f32.mrb[0].mxu0
    %v3947 = vpop.f32.mrb[0].mxu0
    %v3948 = vadd.f32 %v3891, %v3947
    %v3949 = vpop.f32.mrb[0].mxu0
    %3950 = vmatprep.mubr.bf16.mxu0 %v1536
    %3951 = vmatmul.mubr.bf16.gmra.mrb[0].mxu0 %v1535
    %v3952 = vpop.f32.mrb[0].mxu0
    %v3953 = vadd.f32 %v3896, %v3952
    %v3954 = vpop.f32.mrb[0].mxu0
    %v3955 = vpop.f32.mrb[0].mxu0
    %v3956 = vadd.f32 %v3899, %v3955
    %v3957 = vpop.f32.mrb[0].mxu0
    %3958 = vmatprep.mubr.bf16.mxu0 %v1632
    %3959 = vmatmul.mubr.bf16.gmra.mrb[0].mxu0 %v1631
    %v3960 = vpop.f32.mrb[0].mxu0
    %v3961 = vadd.f32 %v3904, %v3960
    %v3962 = vpop.f32.mrb[0].mxu0
    %v3963 = vpop.f32.mrb[0].mxu0
    %v3964 = vadd.f32 %v3907, %v3963
    %v3965 = vpop.f32.mrb[0].mxu0
    %3966 = vdwg.mxu0
    %3967 = vmatprep.subr.bf16.mxu0 %v2594
    %3968 = vmatpush1.bf16.xpose.msra.mxu0 %v2593
    %3969 = vmatprep.subr.bf16.mxu0 %v2690
    %3970 = vmatpush1.bf16.xpose.msra.mxu0 %v2689
    %3971 = vmatprep.subr.bf16.mxu0 0
    %3972 = vmatpush1.bf16.xpose.msra.mxu0 0
    %3973 = vmatprep.subr.bf16.mxu0 0
    %3974 = vmatpush1.bf16.xpose.msra.mxu0 0
    %3975 = vmatprep.subr.bf16.mxu0 0
    %3976 = vmatpush1.bf16.xpose.msra.mxu0 0
    %3977 = vmatprep.subr.bf16.mxu0 0
    %3978 = vmatpush1.bf16.xpose.msra.mxu0 0
    %3979 = vmatprep.subr.bf16.mxu0 0
    %3980 = vmatpush1.bf16.xpose.msra.mxu0 0
    %3981 = vmatprep.subr.bf16.mxu0 0
    %3982 = vmatpush1.bf16.xpose.msra.mxu0 0
    %3983 = vmatprep.subr.bf16.mxu0 0
    %3984 = vmatpush1.bf16.xpose.msra.mxu0 0
    %3985 = vmatprep.subr.bf16.mxu0 0
    %3986 = vmatpush1.bf16.xpose.msra.mxu0 0
    %3987 = vmatprep.subr.bf16.mxu0 0
    %3988 = vmatpush1.bf16.xpose.msra.mxu0 0
    %3989 = vmatprep.subr.bf16.mxu0 0
    %3990 = vmatpush1.bf16.xpose.msra.mxu0 0
    %3991 = vmatprep.subr.bf16.mxu0 0
    %3992 = vmatpush1.bf16.xpose.msra.mxu0 0
    %3993 = vmatprep.subr.bf16.mxu0 0
    %3994 = vmatpush1.bf16.xpose.msra.mxu0 0
    %3995 = vmatprep.subr.bf16.mxu0 0
    %3996 = vmatpush1.bf16.xpose.msra.mxu0 0
    %3997 = vmatprep.subr.bf16.mxu0 0
    %3998 = vmatpush1.bf16.xpose.msra.mxu0 0
    %3999 = vmatprep.mubr.bf16.mxu0 %v1442
    %4000 = vmatmul.mubr.bf16.gmra.mrb[0].mxu0 %v1441
    %v4001 = vpop.f32.mrb[0].mxu0
    %v4002 = vadd.f32 %v3945, %v4001
    %v4003 = vpop.f32.mrb[0].mxu0
    %v4004 = vpop.f32.mrb[0].mxu0
    %v4005 = vadd.f32 %v3948, %v4004
    %v4006 = vpop.f32.mrb[0].mxu0
    %4007 = vmatprep.mubr.bf16.mxu0 %v1538
    %4008 = vmatmul.mubr.bf16.gmra.mrb[0].mxu0 %v1537
    %v4009 = vpop.f32.mrb[0].mxu0
    %v4010 = vadd.f32 %v3953, %v4009
    %v4011 = vpop.f32.mrb[0].mxu0
    %v4012 = vpop.f32.mrb[0].mxu0
    %v4013 = vadd.f32 %v3956, %v4012
    %v4014 = vpop.f32.mrb[0].mxu0
    %4015 = vmatprep.mubr.bf16.mxu0 %v1634
    %4016 = vmatmul.mubr.bf16.gmra.mrb[0].mxu0 %v1633
    %v4017 = vpop.f32.mrb[0].mxu0
    %v4018 = vadd.f32 %v3961, %v4017
    %v4019 = vpop.f32.mrb[0].mxu0
    %v4020 = vpop.f32.mrb[0].mxu0
    %v4021 = vadd.f32 %v3964, %v4020
    %v4022 = vpop.f32.mrb[0].mxu0
    %4023 = vdwg.mxu0
    %4024 = vmatprep.subr.bf16.mxu0 %v2596
    %4025 = vmatpush1.bf16.xpose.msra.mxu0 %v2595
    %4026 = vmatprep.subr.bf16.mxu0 %v2692
    %4027 = vmatpush1.bf16.xpose.msra.mxu0 %v2691
    %4028 = vmatprep.subr.bf16.mxu0 0
    %4029 = vmatpush1.bf16.xpose.msra.mxu0 0
    %4030 = vmatprep.subr.bf16.mxu0 0
    %4031 = vmatpush1.bf16.xpose.msra.mxu0 0
    %4032 = vmatprep.subr.bf16.mxu0 0
    %4033 = vmatpush1.bf16.xpose.msra.mxu0 0
    %4034 = vmatprep.subr.bf16.mxu0 0
    %4035 = vmatpush1.bf16.xpose.msra.mxu0 0
    %4036 = vmatprep.subr.bf16.mxu0 0
    %4037 = vmatpush1.bf16.xpose.msra.mxu0 0
    %4038 = vmatprep.subr.bf16.mxu0 0
    %4039 = vmatpush1.bf16.xpose.msra.mxu0 0
    %4040 = vmatprep.subr.bf16.mxu0 0
    %4041 = vmatpush1.bf16.xpose.msra.mxu0 0
    %4042 = vmatprep.subr.bf16.mxu0 0
    %4043 = vmatpush1.bf16.xpose.msra.mxu0 0
    %4044 = vmatprep.subr.bf16.mxu0 0
    %4045 = vmatpush1.bf16.xpose.msra.mxu0 0
    %4046 = vmatprep.subr.bf16.mxu0 0
    %4047 = vmatpush1.bf16.xpose.msra.mxu0 0
    %4048 = vmatprep.subr.bf16.mxu0 0
    %4049 = vmatpush1.bf16.xpose.msra.mxu0 0
    %4050 = vmatprep.subr.bf16.mxu0 0
    %4051 = vmatpush1.bf16.xpose.msra.mxu0 0
    %4052 = vmatprep.subr.bf16.mxu0 0
    %4053 = vmatpush1.bf16.xpose.msra.mxu0 0
    %4054 = vmatprep.subr.bf16.mxu0 0
    %4055 = vmatpush1.bf16.xpose.msra.mxu0 0
    %4056 = vmatprep.mubr.bf16.mxu0 %v1444
    %4057 = vmatmul.mubr.bf16.gmra.mrb[0].mxu0 %v1443
    %v4058 = vpop.f32.mrb[0].mxu0
    %v4059 = vadd.f32 %v4002, %v4058
    %v4060 = vpop.f32.mrb[0].mxu0
    %v4061 = vpop.f32.mrb[0].mxu0
    %v4062 = vadd.f32 %v4005, %v4061
    %v4063 = vpop.f32.mrb[0].mxu0
    %4064 = vmatprep.mubr.bf16.mxu0 %v1540
    %4065 = vmatmul.mubr.bf16.gmra.mrb[0].mxu0 %v1539
    %v4066 = vpop.f32.mrb[0].mxu0
    %v4067 = vadd.f32 %v4010, %v4066
    %v4068 = vpop.f32.mrb[0].mxu0
    %v4069 = vpop.f32.mrb[0].mxu0
    %v4070 = vadd.f32 %v4013, %v4069
    %v4071 = vpop.f32.mrb[0].mxu0
    %4072 = vmatprep.mubr.bf16.mxu0 %v1636
    %4073 = vmatmul.mubr.bf16.gmra.mrb[0].mxu0 %v1635
    %v4074 = vpop.f32.mrb[0].mxu0
    %v4075 = vadd.f32 %v4018, %v4074
    %v4076 = vpop.f32.mrb[0].mxu0
    %v4077 = vpop.f32.mrb[0].mxu0
    %v4078 = vadd.f32 %v4021, %v4077
    %v4079 = vpop.f32.mrb[0].mxu0
    %4080 = vdwg.mxu0
    %4081 = vmatprep.subr.bf16.mxu0 %v2598
    %4082 = vmatpush1.bf16.xpose.msra.mxu0 %v2597
    %4083 = vmatprep.subr.bf16.mxu0 %v2694
    %4084 = vmatpush1.bf16.xpose.msra.mxu0 %v2693
    %4085 = vmatprep.subr.bf16.mxu0 0
    %4086 = vmatpush1.bf16.xpose.msra.mxu0 0
    %4087 = vmatprep.subr.bf16.mxu0 0
    %4088 = vmatpush1.bf16.xpose.msra.mxu0 0
    %4089 = vmatprep.subr.bf16.mxu0 0
    %4090 = vmatpush1.bf16.xpose.msra.mxu0 0
    %4091 = vmatprep.subr.bf16.mxu0 0
    %4092 = vmatpush1.bf16.xpose.msra.mxu0 0
    %4093 = vmatprep.subr.bf16.mxu0 0
    %4094 = vmatpush1.bf16.xpose.msra.mxu0 0
    %4095 = vmatprep.subr.bf16.mxu0 0
    %4096 = vmatpush1.bf16.xpose.msra.mxu0 0
    %4097 = vmatprep.subr.bf16.mxu0 0
    %4098 = vmatpush1.bf16.xpose.msra.mxu0 0
    %4099 = vmatprep.subr.bf16.mxu0 0
    %4100 = vmatpush1.bf16.xpose.msra.mxu0 0
    %4101 = vmatprep.subr.bf16.mxu0 0
    %4102 = vmatpush1.bf16.xpose.msra.mxu0 0
    %4103 = vmatprep.subr.bf16.mxu0 0
    %4104 = vmatpush1.bf16.xpose.msra.mxu0 0
    %4105 = vmatprep.subr.bf16.mxu0 0
    %4106 = vmatpush1.bf16.xpose.msra.mxu0 0
    %4107 = vmatprep.subr.bf16.mxu0 0
    %4108 = vmatpush1.bf16.xpose.msra.mxu0 0
    %4109 = vmatprep.subr.bf16.mxu0 0
    %4110 = vmatpush1.bf16.xpose.msra.mxu0 0
    %4111 = vmatprep.subr.bf16.mxu0 0
    %4112 = vmatpush1.bf16.xpose.msra.mxu0 0
    %4113 = vmatprep.mubr.bf16.mxu0 %v1446
    %4114 = vmatmul.mubr.bf16.gmra.mrb[0].mxu0 %v1445
    %v4115 = vpop.f32.mrb[0].mxu0
    %v4116 = vadd.f32 %v4059, %v4115
    %v4117 = vpop.f32.mrb[0].mxu0
    %v4118 = vpop.f32.mrb[0].mxu0
    %v4119 = vadd.f32 %v4062, %v4118
    %v4120 = vpop.f32.mrb[0].mxu0
    %4121 = vmatprep.mubr.bf16.mxu0 %v1542
    %4122 = vmatmul.mubr.bf16.gmra.mrb[0].mxu0 %v1541
    %v4123 = vpop.f32.mrb[0].mxu0
    %v4124 = vadd.f32 %v4067, %v4123
    %v4125 = vpop.f32.mrb[0].mxu0
    %v4126 = vpop.f32.mrb[0].mxu0
    %v4127 = vadd.f32 %v4070, %v4126
    %v4128 = vpop.f32.mrb[0].mxu0
    %4129 = vmatprep.mubr.bf16.mxu0 %v1638
    %4130 = vmatmul.mubr.bf16.gmra.mrb[0].mxu0 %v1637
    %v4131 = vpop.f32.mrb[0].mxu0
    %v4132 = vadd.f32 %v4075, %v4131
    %v4133 = vpop.f32.mrb[0].mxu0
    %v4134 = vpop.f32.mrb[0].mxu0
    %v4135 = vadd.f32 %v4078, %v4134
    %v4136 = vpop.f32.mrb[0].mxu0
    %4137 = vdwg.mxu0
    %4138 = vmatprep.subr.bf16.mxu0 %v2600
    %4139 = vmatpush1.bf16.xpose.msra.mxu0 %v2599
    %4140 = vmatprep.subr.bf16.mxu0 %v2696
    %4141 = vmatpush1.bf16.xpose.msra.mxu0 %v2695
    %4142 = vmatprep.subr.bf16.mxu0 0
    %4143 = vmatpush1.bf16.xpose.msra.mxu0 0
    %4144 = vmatprep.subr.bf16.mxu0 0
    %4145 = vmatpush1.bf16.xpose.msra.mxu0 0
    %4146 = vmatprep.subr.bf16.mxu0 0
    %4147 = vmatpush1.bf16.xpose.msra.mxu0 0
    %4148 = vmatprep.subr.bf16.mxu0 0
    %4149 = vmatpush1.bf16.xpose.msra.mxu0 0
    %4150 = vmatprep.subr.bf16.mxu0 0
    %4151 = vmatpush1.bf16.xpose.msra.mxu0 0
    %4152 = vmatprep.subr.bf16.mxu0 0
    %4153 = vmatpush1.bf16.xpose.msra.mxu0 0
    %4154 = vmatprep.subr.bf16.mxu0 0
    %4155 = vmatpush1.bf16.xpose.msra.mxu0 0
    %4156 = vmatprep.subr.bf16.mxu0 0
    %4157 = vmatpush1.bf16.xpose.msra.mxu0 0
    %4158 = vmatprep.subr.bf16.mxu0 0
    %4159 = vmatpush1.bf16.xpose.msra.mxu0 0
    %4160 = vmatprep.subr.bf16.mxu0 0
    %4161 = vmatpush1.bf16.xpose.msra.mxu0 0
    %4162 = vmatprep.subr.bf16.mxu0 0
    %4163 = vmatpush1.bf16.xpose.msra.mxu0 0
    %4164 = vmatprep.subr.bf16.mxu0 0
    %4165 = vmatpush1.bf16.xpose.msra.mxu0 0
    %4166 = vmatprep.subr.bf16.mxu0 0
    %4167 = vmatpush1.bf16.xpose.msra.mxu0 0
    %4168 = vmatprep.subr.bf16.mxu0 0
    %4169 = vmatpush1.bf16.xpose.msra.mxu0 0
    %4170 = vmatprep.mubr.bf16.mxu0 %v1448
    %4171 = vmatmul.mubr.bf16.gmra.mrb[0].mxu0 %v1447
    %v4172 = vpop.f32.mrb[0].mxu0
    %v4173 = vadd.f32 %v4116, %v4172
    %v4174 = vpop.f32.mrb[0].mxu0
    %v4175 = vpop.f32.mrb[0].mxu0
    %v4176 = vadd.f32 %v4119, %v4175
    %v4177 = vpop.f32.mrb[0].mxu0
    %4178 = vmatprep.mubr.bf16.mxu0 %v1544
    %4179 = vmatmul.mubr.bf16.gmra.mrb[0].mxu0 %v1543
    %v4180 = vpop.f32.mrb[0].mxu0
    %v4181 = vadd.f32 %v4124, %v4180
    %v4182 = vpop.f32.mrb[0].mxu0
    %v4183 = vpop.f32.mrb[0].mxu0
    %v4184 = vadd.f32 %v4127, %v4183
    %v4185 = vpop.f32.mrb[0].mxu0
    %4186 = vmatprep.mubr.bf16.mxu0 %v1640
    %4187 = vmatmul.mubr.bf16.gmra.mrb[0].mxu0 %v1639
    %v4188 = vpop.f32.mrb[0].mxu0
    %v4189 = vadd.f32 %v4132, %v4188
    %v4190 = vpop.f32.mrb[0].mxu0
    %v4191 = vpop.f32.mrb[0].mxu0
    %v4192 = vadd.f32 %v4135, %v4191
    %v4193 = vpop.f32.mrb[0].mxu0
    %4194 = vdwg.mxu0
    %4195 = vmatprep.subr.bf16.mxu0 %v2602
    %4196 = vmatpush1.bf16.xpose.msra.mxu0 %v2601
    %4197 = vmatprep.subr.bf16.mxu0 %v2698
    %4198 = vmatpush1.bf16.xpose.msra.mxu0 %v2697
    %4199 = vmatprep.subr.bf16.mxu0 0
    %4200 = vmatpush1.bf16.xpose.msra.mxu0 0
    %4201 = vmatprep.subr.bf16.mxu0 0
    %4202 = vmatpush1.bf16.xpose.msra.mxu0 0
    %4203 = vmatprep.subr.bf16.mxu0 0
    %4204 = vmatpush1.bf16.xpose.msra.mxu0 0
    %4205 = vmatprep.subr.bf16.mxu0 0
    %4206 = vmatpush1.bf16.xpose.msra.mxu0 0
    %4207 = vmatprep.subr.bf16.mxu0 0
    %4208 = vmatpush1.bf16.xpose.msra.mxu0 0
    %4209 = vmatprep.subr.bf16.mxu0 0
    %4210 = vmatpush1.bf16.xpose.msra.mxu0 0
    %4211 = vmatprep.subr.bf16.mxu0 0
    %4212 = vmatpush1.bf16.xpose.msra.mxu0 0
    %4213 = vmatprep.subr.bf16.mxu0 0
    %4214 = vmatpush1.bf16.xpose.msra.mxu0 0
    %4215 = vmatprep.subr.bf16.mxu0 0
    %4216 = vmatpush1.bf16.xpose.msra.mxu0 0
    %4217 = vmatprep.subr.bf16.mxu0 0
    %4218 = vmatpush1.bf16.xpose.msra.mxu0 0
    %4219 = vmatprep.subr.bf16.mxu0 0
    %4220 = vmatpush1.bf16.xpose.msra.mxu0 0
    %4221 = vmatprep.subr.bf16.mxu0 0
    %4222 = vmatpush1.bf16.xpose.msra.mxu0 0
    %4223 = vmatprep.subr.bf16.mxu0 0
    %4224 = vmatpush1.bf16.xpose.msra.mxu0 0
    %4225 = vmatprep.subr.bf16.mxu0 0
    %4226 = vmatpush1.bf16.xpose.msra.mxu0 0
    %4227 = vmatprep.mubr.bf16.mxu0 %v1450
    %4228 = vmatmul.mubr.bf16.gmra.mrb[0].mxu0 %v1449
    %v4229 = vpop.f32.mrb[0].mxu0
    %v4230 = vadd.f32 %v4173, %v4229
    %v4231 = vpop.f32.mrb[0].mxu0
    %v4232 = vpop.f32.mrb[0].mxu0
    %v4233 = vadd.f32 %v4176, %v4232
    %v4234 = vpop.f32.mrb[0].mxu0
    %4235 = vmatprep.mubr.bf16.mxu0 %v1546
    %4236 = vmatmul.mubr.bf16.gmra.mrb[0].mxu0 %v1545
    %v4237 = vpop.f32.mrb[0].mxu0
    %v4238 = vadd.f32 %v4181, %v4237
    %v4239 = vpop.f32.mrb[0].mxu0
    %v4240 = vpop.f32.mrb[0].mxu0
    %v4241 = vadd.f32 %v4184, %v4240
    %v4242 = vpop.f32.mrb[0].mxu0
    %4243 = vmatprep.mubr.bf16.mxu0 %v1642
    %4244 = vmatmul.mubr.bf16.gmra.mrb[0].mxu0 %v1641
    %v4245 = vpop.f32.mrb[0].mxu0
    %v4246 = vadd.f32 %v4189, %v4245
    %v4247 = vpop.f32.mrb[0].mxu0
    %v4248 = vpop.f32.mrb[0].mxu0
    %v4249 = vadd.f32 %v4192, %v4248
    %v4250 = vpop.f32.mrb[0].mxu0
    %4251 = vdwg.mxu0
    %4252 = vmatprep.subr.bf16.mxu0 %v2604
    %4253 = vmatpush1.bf16.xpose.msra.mxu0 %v2603
    %4254 = vmatprep.subr.bf16.mxu0 %v2700
    %4255 = vmatpush1.bf16.xpose.msra.mxu0 %v2699
    %4256 = vmatprep.subr.bf16.mxu0 0
    %4257 = vmatpush1.bf16.xpose.msra.mxu0 0
    %4258 = vmatprep.subr.bf16.mxu0 0
    %4259 = vmatpush1.bf16.xpose.msra.mxu0 0
    %4260 = vmatprep.subr.bf16.mxu0 0
    %4261 = vmatpush1.bf16.xpose.msra.mxu0 0
    %4262 = vmatprep.subr.bf16.mxu0 0
    %4263 = vmatpush1.bf16.xpose.msra.mxu0 0
    %4264 = vmatprep.subr.bf16.mxu0 0
    %4265 = vmatpush1.bf16.xpose.msra.mxu0 0
    %4266 = vmatprep.subr.bf16.mxu0 0
    %4267 = vmatpush1.bf16.xpose.msra.mxu0 0
    %4268 = vmatprep.subr.bf16.mxu0 0
    %4269 = vmatpush1.bf16.xpose.msra.mxu0 0
    %4270 = vmatprep.subr.bf16.mxu0 0
    %4271 = vmatpush1.bf16.xpose.msra.mxu0 0
    %4272 = vmatprep.subr.bf16.mxu0 0
    %4273 = vmatpush1.bf16.xpose.msra.mxu0 0
    %4274 = vmatprep.subr.bf16.mxu0 0
    %4275 = vmatpush1.bf16.xpose.msra.mxu0 0
    %4276 = vmatprep.subr.bf16.mxu0 0
    %4277 = vmatpush1.bf16.xpose.msra.mxu0 0
    %4278 = vmatprep.subr.bf16.mxu0 0
    %4279 = vmatpush1.bf16.xpose.msra.mxu0 0
    %4280 = vmatprep.subr.bf16.mxu0 0
    %4281 = vmatpush1.bf16.xpose.msra.mxu0 0
    %4282 = vmatprep.subr.bf16.mxu0 0
    %4283 = vmatpush1.bf16.xpose.msra.mxu0 0
    %4284 = vmatprep.mubr.bf16.mxu0 %v1452
    %4285 = vmatmul.mubr.bf16.gmra.mrb[0].mxu0 %v1451
    %v4286 = vpop.f32.mrb[0].mxu0
    %v4287 = vadd.f32 %v4230, %v4286
    %v4288 = vpop.f32.mrb[0].mxu0
    %v4289 = vpop.f32.mrb[0].mxu0
    %v4290 = vadd.f32 %v4233, %v4289
    %v4291 = vpop.f32.mrb[0].mxu0
    %4292 = vmatprep.mubr.bf16.mxu0 %v1548
    %4293 = vmatmul.mubr.bf16.gmra.mrb[0].mxu0 %v1547
    %v4294 = vpop.f32.mrb[0].mxu0
    %v4295 = vadd.f32 %v4238, %v4294
    %v4296 = vpop.f32.mrb[0].mxu0
    %v4297 = vpop.f32.mrb[0].mxu0
    %v4298 = vadd.f32 %v4241, %v4297
    %v4299 = vpop.f32.mrb[0].mxu0
    %4300 = vmatprep.mubr.bf16.mxu0 %v1644
    %4301 = vmatmul.mubr.bf16.gmra.mrb[0].mxu0 %v1643
    %v4302 = vpop.f32.mrb[0].mxu0
    %v4303 = vadd.f32 %v4246, %v4302
    %v4304 = vpop.f32.mrb[0].mxu0
    %v4305 = vpop.f32.mrb[0].mxu0
    %v4306 = vadd.f32 %v4249, %v4305
    %v4307 = vpop.f32.mrb[0].mxu0
    %4308 = vdwg.mxu0
    %4309 = vmatprep.subr.bf16.mxu0 %v2606
    %4310 = vmatpush1.bf16.xpose.msra.mxu0 %v2605
    %4311 = vmatprep.subr.bf16.mxu0 %v2702
    %4312 = vmatpush1.bf16.xpose.msra.mxu0 %v2701
    %4313 = vmatprep.subr.bf16.mxu0 0
    %4314 = vmatpush1.bf16.xpose.msra.mxu0 0
    %4315 = vmatprep.subr.bf16.mxu0 0
    %4316 = vmatpush1.bf16.xpose.msra.mxu0 0
    %4317 = vmatprep.subr.bf16.mxu0 0
    %4318 = vmatpush1.bf16.xpose.msra.mxu0 0
    %4319 = vmatprep.subr.bf16.mxu0 0
    %4320 = vmatpush1.bf16.xpose.msra.mxu0 0
    %4321 = vmatprep.subr.bf16.mxu0 0
    %4322 = vmatpush1.bf16.xpose.msra.mxu0 0
    %4323 = vmatprep.subr.bf16.mxu0 0
    %4324 = vmatpush1.bf16.xpose.msra.mxu0 0
    %4325 = vmatprep.subr.bf16.mxu0 0
    %4326 = vmatpush1.bf16.xpose.msra.mxu0 0
    %4327 = vmatprep.subr.bf16.mxu0 0
    %4328 = vmatpush1.bf16.xpose.msra.mxu0 0
    %4329 = vmatprep.subr.bf16.mxu0 0
    %4330 = vmatpush1.bf16.xpose.msra.mxu0 0
    %4331 = vmatprep.subr.bf16.mxu0 0
    %4332 = vmatpush1.bf16.xpose.msra.mxu0 0
    %4333 = vmatprep.subr.bf16.mxu0 0
    %4334 = vmatpush1.bf16.xpose.msra.mxu0 0
    %4335 = vmatprep.subr.bf16.mxu0 0
    %4336 = vmatpush1.bf16.xpose.msra.mxu0 0
    %4337 = vmatprep.subr.bf16.mxu0 0
    %4338 = vmatpush1.bf16.xpose.msra.mxu0 0
    %4339 = vmatprep.subr.bf16.mxu0 0
    %4340 = vmatpush1.bf16.xpose.msra.mxu0 0
    %4341 = vmatprep.mubr.bf16.mxu0 %v1454
    %4342 = vmatmul.mubr.bf16.gmra.mrb[0].mxu0 %v1453
    %v4343 = vpop.f32.mrb[0].mxu0
    %v4344 = vadd.f32 %v4287, %v4343
    %v4345 = vpop.f32.mrb[0].mxu0
    %v4346 = vpop.f32.mrb[0].mxu0
    %v4347 = vadd.f32 %v4290, %v4346
    %v4348 = vpop.f32.mrb[0].mxu0
    %4349 = vmatprep.mubr.bf16.mxu0 %v1550
    %4350 = vmatmul.mubr.bf16.gmra.mrb[0].mxu0 %v1549
    %v4351 = vpop.f32.mrb[0].mxu0
    %v4352 = vadd.f32 %v4295, %v4351
    %v4353 = vpop.f32.mrb[0].mxu0
    %v4354 = vpop.f32.mrb[0].mxu0
    %v4355 = vadd.f32 %v4298, %v4354
    %v4356 = vpop.f32.mrb[0].mxu0
    %4357 = vmatprep.mubr.bf16.mxu0 %v1646
    %4358 = vmatmul.mubr.bf16.gmra.mrb[0].mxu0 %v1645
    %v4359 = vpop.f32.mrb[0].mxu0
    %v4360 = vadd.f32 %v4303, %v4359
    %v4361 = vpop.f32.mrb[0].mxu0
    %v4362 = vpop.f32.mrb[0].mxu0
    %v4363 = vadd.f32 %v4306, %v4362
    %v4364 = vpop.f32.mrb[0].mxu0
    %4365 = vdwg.mxu0
    %4366 = vmatprep.subr.bf16.mxu0 %v2608
    %4367 = vmatpush1.bf16.xpose.msra.mxu0 %v2607
    %4368 = vmatprep.subr.bf16.mxu0 %v2704
    %4369 = vmatpush1.bf16.xpose.msra.mxu0 %v2703
    %4370 = vmatprep.subr.bf16.mxu0 0
    %4371 = vmatpush1.bf16.xpose.msra.mxu0 0
    %4372 = vmatprep.subr.bf16.mxu0 0
    %4373 = vmatpush1.bf16.xpose.msra.mxu0 0
    %4374 = vmatprep.subr.bf16.mxu0 0
    %4375 = vmatpush1.bf16.xpose.msra.mxu0 0
    %4376 = vmatprep.subr.bf16.mxu0 0
    %4377 = vmatpush1.bf16.xpose.msra.mxu0 0
    %4378 = vmatprep.subr.bf16.mxu0 0
    %4379 = vmatpush1.bf16.xpose.msra.mxu0 0
    %4380 = vmatprep.subr.bf16.mxu0 0
    %4381 = vmatpush1.bf16.xpose.msra.mxu0 0
    %4382 = vmatprep.subr.bf16.mxu0 0
    %4383 = vmatpush1.bf16.xpose.msra.mxu0 0
    %4384 = vmatprep.subr.bf16.mxu0 0
    %4385 = vmatpush1.bf16.xpose.msra.mxu0 0
    %4386 = vmatprep.subr.bf16.mxu0 0
    %4387 = vmatpush1.bf16.xpose.msra.mxu0 0
    %4388 = vmatprep.subr.bf16.mxu0 0
    %4389 = vmatpush1.bf16.xpose.msra.mxu0 0
    %4390 = vmatprep.subr.bf16.mxu0 0
    %4391 = vmatpush1.bf16.xpose.msra.mxu0 0
    %4392 = vmatprep.subr.bf16.mxu0 0
    %4393 = vmatpush1.bf16.xpose.msra.mxu0 0
    %4394 = vmatprep.subr.bf16.mxu0 0
    %4395 = vmatpush1.bf16.xpose.msra.mxu0 0
    %4396 = vmatprep.subr.bf16.mxu0 0
    %4397 = vmatpush1.bf16.xpose.msra.mxu0 0
    %4398 = vmatprep.mubr.bf16.mxu0 %v1456
    %4399 = vmatmul.mubr.bf16.gmra.mrb[0].mxu0 %v1455
    %v4400 = vpop.f32.mrb[0].mxu0
    %v4401 = vadd.f32 %v4344, %v4400
    %v4402 = vpop.f32.mrb[0].mxu0
    %v4403 = vpop.f32.mrb[0].mxu0
    %v4404 = vadd.f32 %v4347, %v4403
    %v4405 = vpop.f32.mrb[0].mxu0
    %4406 = vmatprep.mubr.bf16.mxu0 %v1552
    %4407 = vmatmul.mubr.bf16.gmra.mrb[0].mxu0 %v1551
    %v4408 = vpop.f32.mrb[0].mxu0
    %v4409 = vadd.f32 %v4352, %v4408
    %v4410 = vpop.f32.mrb[0].mxu0
    %v4411 = vpop.f32.mrb[0].mxu0
    %v4412 = vadd.f32 %v4355, %v4411
    %v4413 = vpop.f32.mrb[0].mxu0
    %4414 = vmatprep.mubr.bf16.mxu0 %v1648
    %4415 = vmatmul.mubr.bf16.gmra.mrb[0].mxu0 %v1647
    %v4416 = vpop.f32.mrb[0].mxu0
    %v4417 = vadd.f32 %v4360, %v4416
    %v4418 = vpop.f32.mrb[0].mxu0
    %v4419 = vpop.f32.mrb[0].mxu0
    %v4420 = vadd.f32 %v4363, %v4419
    %v4421 = vpop.f32.mrb[0].mxu0
    %4422 = vdwg.mxu0
    %4423 = vmatprep.subr.bf16.mxu0 %v2610
    %4424 = vmatpush1.bf16.xpose.msra.mxu0 %v2609
    %4425 = vmatprep.subr.bf16.mxu0 %v2706
    %4426 = vmatpush1.bf16.xpose.msra.mxu0 %v2705
    %4427 = vmatprep.subr.bf16.mxu0 0
    %4428 = vmatpush1.bf16.xpose.msra.mxu0 0
    %4429 = vmatprep.subr.bf16.mxu0 0
    %4430 = vmatpush1.bf16.xpose.msra.mxu0 0
    %4431 = vmatprep.subr.bf16.mxu0 0
    %4432 = vmatpush1.bf16.xpose.msra.mxu0 0
    %4433 = vmatprep.subr.bf16.mxu0 0
    %4434 = vmatpush1.bf16.xpose.msra.mxu0 0
    %4435 = vmatprep.subr.bf16.mxu0 0
    %4436 = vmatpush1.bf16.xpose.msra.mxu0 0
    %4437 = vmatprep.subr.bf16.mxu0 0
    %4438 = vmatpush1.bf16.xpose.msra.mxu0 0
    %4439 = vmatprep.subr.bf16.mxu0 0
    %4440 = vmatpush1.bf16.xpose.msra.mxu0 0
    %4441 = vmatprep.subr.bf16.mxu0 0
    %4442 = vmatpush1.bf16.xpose.msra.mxu0 0
    %4443 = vmatprep.subr.bf16.mxu0 0
    %4444 = vmatpush1.bf16.xpose.msra.mxu0 0
    %4445 = vmatprep.subr.bf16.mxu0 0
    %4446 = vmatpush1.bf16.xpose.msra.mxu0 0
    %4447 = vmatprep.subr.bf16.mxu0 0
    %4448 = vmatpush1.bf16.xpose.msra.mxu0 0
    %4449 = vmatprep.subr.bf16.mxu0 0
    %4450 = vmatpush1.bf16.xpose.msra.mxu0 0
    %4451 = vmatprep.subr.bf16.mxu0 0
    %4452 = vmatpush1.bf16.xpose.msra.mxu0 0
    %4453 = vmatprep.subr.bf16.mxu0 0
    %4454 = vmatpush1.bf16.xpose.msra.mxu0 0
    %4455 = vmatprep.mubr.bf16.mxu0 %v1458
    %4456 = vmatmul.mubr.bf16.gmra.mrb[0].mxu0 %v1457
    %v4457 = vpop.f32.mrb[0].mxu0
    %v4458 = vadd.f32 %v4401, %v4457
    %v4459 = vpop.f32.mrb[0].mxu0
    %v4460 = vpop.f32.mrb[0].mxu0
    %v4461 = vadd.f32 %v4404, %v4460
    %v4462 = vpop.f32.mrb[0].mxu0
    %4463 = vmatprep.mubr.bf16.mxu0 %v1554
    %4464 = vmatmul.mubr.bf16.gmra.mrb[0].mxu0 %v1553
    %v4465 = vpop.f32.mrb[0].mxu0
    %v4466 = vadd.f32 %v4409, %v4465
    %v4467 = vpop.f32.mrb[0].mxu0
    %v4468 = vpop.f32.mrb[0].mxu0
    %v4469 = vadd.f32 %v4412, %v4468
    %v4470 = vpop.f32.mrb[0].mxu0
    %4471 = vmatprep.mubr.bf16.mxu0 %v1650
    %4472 = vmatmul.mubr.bf16.gmra.mrb[0].mxu0 %v1649
    %v4473 = vpop.f32.mrb[0].mxu0
    %v4474 = vadd.f32 %v4417, %v4473
    %v4475 = vpop.f32.mrb[0].mxu0
    %v4476 = vpop.f32.mrb[0].mxu0
    %v4477 = vadd.f32 %v4420, %v4476
    %v4478 = vpop.f32.mrb[0].mxu0
    %4479 = vdwg.mxu0
    %4480 = vmatprep.subr.bf16.mxu0 %v2612
    %4481 = vmatpush1.bf16.xpose.msra.mxu0 %v2611
    %4482 = vmatprep.subr.bf16.mxu0 %v2708
    %4483 = vmatpush1.bf16.xpose.msra.mxu0 %v2707
    %4484 = vmatprep.subr.bf16.mxu0 0
    %4485 = vmatpush1.bf16.xpose.msra.mxu0 0
    %4486 = vmatprep.subr.bf16.mxu0 0
    %4487 = vmatpush1.bf16.xpose.msra.mxu0 0
    %4488 = vmatprep.subr.bf16.mxu0 0
    %4489 = vmatpush1.bf16.xpose.msra.mxu0 0
    %4490 = vmatprep.subr.bf16.mxu0 0
    %4491 = vmatpush1.bf16.xpose.msra.mxu0 0
    %4492 = vmatprep.subr.bf16.mxu0 0
    %4493 = vmatpush1.bf16.xpose.msra.mxu0 0
    %4494 = vmatprep.subr.bf16.mxu0 0
    %4495 = vmatpush1.bf16.xpose.msra.mxu0 0
    %4496 = vmatprep.subr.bf16.mxu0 0
    %4497 = vmatpush1.bf16.xpose.msra.mxu0 0
    %4498 = vmatprep.subr.bf16.mxu0 0
    %4499 = vmatpush1.bf16.xpose.msra.mxu0 0
    %4500 = vmatprep.subr.bf16.mxu0 0
    %4501 = vmatpush1.bf16.xpose.msra.mxu0 0
    %4502 = vmatprep.subr.bf16.mxu0 0
    %4503 = vmatpush1.bf16.xpose.msra.mxu0 0
    %4504 = vmatprep.subr.bf16.mxu0 0
    %4505 = vmatpush1.bf16.xpose.msra.mxu0 0
    %4506 = vmatprep.subr.bf16.mxu0 0
    %4507 = vmatpush1.bf16.xpose.msra.mxu0 0
    %4508 = vmatprep.subr.bf16.mxu0 0
    %4509 = vmatpush1.bf16.xpose.msra.mxu0 0
    %4510 = vmatprep.subr.bf16.mxu0 0
    %4511 = vmatpush1.bf16.xpose.msra.mxu0 0
    %4512 = vmatprep.mubr.bf16.mxu0 %v1460
    %4513 = vmatmul.mubr.bf16.gmra.mrb[0].mxu0 %v1459
    %v4514 = vpop.f32.mrb[0].mxu0
    %v4515 = vadd.f32 %v4458, %v4514
    %v4516 = vpop.f32.mrb[0].mxu0
    %v4517 = vpop.f32.mrb[0].mxu0
    %v4518 = vadd.f32 %v4461, %v4517
    %v4519 = vpop.f32.mrb[0].mxu0
    %4520 = vmatprep.mubr.bf16.mxu0 %v1556
    %4521 = vmatmul.mubr.bf16.gmra.mrb[0].mxu0 %v1555
    %v4522 = vpop.f32.mrb[0].mxu0
    %v4523 = vadd.f32 %v4466, %v4522
    %v4524 = vpop.f32.mrb[0].mxu0
    %v4525 = vpop.f32.mrb[0].mxu0
    %v4526 = vadd.f32 %v4469, %v4525
    %v4527 = vpop.f32.mrb[0].mxu0
    %4528 = vmatprep.mubr.bf16.mxu0 %v1652
    %4529 = vmatmul.mubr.bf16.gmra.mrb[0].mxu0 %v1651
    %v4530 = vpop.f32.mrb[0].mxu0
    %v4531 = vadd.f32 %v4474, %v4530
    %v4532 = vpop.f32.mrb[0].mxu0
    %v4533 = vpop.f32.mrb[0].mxu0
    %v4534 = vadd.f32 %v4477, %v4533
    %v4535 = vpop.f32.mrb[0].mxu0
    %4536 = vdwg.mxu0
    %4537 = vmatprep.subr.bf16.mxu0 %v2614
    %4538 = vmatpush1.bf16.xpose.msra.mxu0 %v2613
    %4539 = vmatprep.subr.bf16.mxu0 %v2710
    %4540 = vmatpush1.bf16.xpose.msra.mxu0 %v2709
    %4541 = vmatprep.subr.bf16.mxu0 0
    %4542 = vmatpush1.bf16.xpose.msra.mxu0 0
    %4543 = vmatprep.subr.bf16.mxu0 0
    %4544 = vmatpush1.bf16.xpose.msra.mxu0 0
    %4545 = vmatprep.subr.bf16.mxu0 0
    %4546 = vmatpush1.bf16.xpose.msra.mxu0 0
    %4547 = vmatprep.subr.bf16.mxu0 0
    %4548 = vmatpush1.bf16.xpose.msra.mxu0 0
    %4549 = vmatprep.subr.bf16.mxu0 0
    %4550 = vmatpush1.bf16.xpose.msra.mxu0 0
    %4551 = vmatprep.subr.bf16.mxu0 0
    %4552 = vmatpush1.bf16.xpose.msra.mxu0 0
    %4553 = vmatprep.subr.bf16.mxu0 0
    %4554 = vmatpush1.bf16.xpose.msra.mxu0 0
    %4555 = vmatprep.subr.bf16.mxu0 0
    %4556 = vmatpush1.bf16.xpose.msra.mxu0 0
    %4557 = vmatprep.subr.bf16.mxu0 0
    %4558 = vmatpush1.bf16.xpose.msra.mxu0 0
    %4559 = vmatprep.subr.bf16.mxu0 0
    %4560 = vmatpush1.bf16.xpose.msra.mxu0 0
    %4561 = vmatprep.subr.bf16.mxu0 0
    %4562 = vmatpush1.bf16.xpose.msra.mxu0 0
    %4563 = vmatprep.subr.bf16.mxu0 0
    %4564 = vmatpush1.bf16.xpose.msra.mxu0 0
    %4565 = vmatprep.subr.bf16.mxu0 0
    %4566 = vmatpush1.bf16.xpose.msra.mxu0 0
    %4567 = vmatprep.subr.bf16.mxu0 0
    %4568 = vmatpush1.bf16.xpose.msra.mxu0 0
    %4569 = vmatprep.mubr.bf16.mxu0 %v1462
    %4570 = vmatmul.mubr.bf16.gmra.mrb[0].mxu0 %v1461
    %v4571 = vpop.f32.mrb[0].mxu0
    %v4572 = vadd.f32 %v4515, %v4571
    %v4573 = vpop.f32.mrb[0].mxu0
    %v4574 = vpop.f32.mrb[0].mxu0
    %v4575 = vadd.f32 %v4518, %v4574
    %v4576 = vpop.f32.mrb[0].mxu0
    %4577 = vmatprep.mubr.bf16.mxu0 %v1558
    %4578 = vmatmul.mubr.bf16.gmra.mrb[0].mxu0 %v1557
    %v4579 = vpop.f32.mrb[0].mxu0
    %v4580 = vadd.f32 %v4523, %v4579
    %v4581 = vpop.f32.mrb[0].mxu0
    %v4582 = vpop.f32.mrb[0].mxu0
    %v4583 = vadd.f32 %v4526, %v4582
    %v4584 = vpop.f32.mrb[0].mxu0
    %4585 = vmatprep.mubr.bf16.mxu0 %v1654
    %4586 = vmatmul.mubr.bf16.gmra.mrb[0].mxu0 %v1653
    %v4587 = vpop.f32.mrb[0].mxu0
    %v4588 = vadd.f32 %v4531, %v4587
    %v4589 = vpop.f32.mrb[0].mxu0
    %v4590 = vpop.f32.mrb[0].mxu0
    %v4591 = vadd.f32 %v4534, %v4590
    %v4592 = vpop.f32.mrb[0].mxu0
    %4593 = vdwg.mxu0
    %4594 = vmatprep.subr.bf16.mxu0 %v2616
    %4595 = vmatpush1.bf16.xpose.msra.mxu0 %v2615
    %4596 = vmatprep.subr.bf16.mxu0 %v2712
    %4597 = vmatpush1.bf16.xpose.msra.mxu0 %v2711
    %4598 = vmatprep.subr.bf16.mxu0 0
    %4599 = vmatpush1.bf16.xpose.msra.mxu0 0
    %4600 = vmatprep.subr.bf16.mxu0 0
    %4601 = vmatpush1.bf16.xpose.msra.mxu0 0
    %4602 = vmatprep.subr.bf16.mxu0 0
    %4603 = vmatpush1.bf16.xpose.msra.mxu0 0
    %4604 = vmatprep.subr.bf16.mxu0 0
    %4605 = vmatpush1.bf16.xpose.msra.mxu0 0
    %4606 = vmatprep.subr.bf16.mxu0 0
    %4607 = vmatpush1.bf16.xpose.msra.mxu0 0
    %4608 = vmatprep.subr.bf16.mxu0 0
    %4609 = vmatpush1.bf16.xpose.msra.mxu0 0
    %4610 = vmatprep.subr.bf16.mxu0 0
    %4611 = vmatpush1.bf16.xpose.msra.mxu0 0
    %4612 = vmatprep.subr.bf16.mxu0 0
    %4613 = vmatpush1.bf16.xpose.msra.mxu0 0
    %4614 = vmatprep.subr.bf16.mxu0 0
    %4615 = vmatpush1.bf16.xpose.msra.mxu0 0
    %4616 = vmatprep.subr.bf16.mxu0 0
    %4617 = vmatpush1.bf16.xpose.msra.mxu0 0
    %4618 = vmatprep.subr.bf16.mxu0 0
    %4619 = vmatpush1.bf16.xpose.msra.mxu0 0
    %4620 = vmatprep.subr.bf16.mxu0 0
    %4621 = vmatpush1.bf16.xpose.msra.mxu0 0
    %4622 = vmatprep.subr.bf16.mxu0 0
    %4623 = vmatpush1.bf16.xpose.msra.mxu0 0
    %4624 = vmatprep.subr.bf16.mxu0 0
    %4625 = vmatpush1.bf16.xpose.msra.mxu0 0
    %4626 = vmatprep.mubr.bf16.mxu0 %v1464
    %4627 = vmatmul.mubr.bf16.gmra.mrb[0].mxu0 %v1463
    %v4628 = vpop.f32.mrb[0].mxu0
    %v4629 = vadd.f32 %v4572, %v4628
    %v4630 = vpop.f32.mrb[0].mxu0
    %v4631 = vpop.f32.mrb[0].mxu0
    %v4632 = vadd.f32 %v4575, %v4631
    %v4633 = vpop.f32.mrb[0].mxu0
    %4634 = vmatprep.mubr.bf16.mxu0 %v1560
    %4635 = vmatmul.mubr.bf16.gmra.mrb[0].mxu0 %v1559
    %v4636 = vpop.f32.mrb[0].mxu0
    %v4637 = vadd.f32 %v4580, %v4636
    %v4638 = vpop.f32.mrb[0].mxu0
    %v4639 = vpop.f32.mrb[0].mxu0
    %v4640 = vadd.f32 %v4583, %v4639
    %v4641 = vpop.f32.mrb[0].mxu0
    %4642 = vmatprep.mubr.bf16.mxu0 %v1656
    %4643 = vmatmul.mubr.bf16.gmra.mrb[0].mxu0 %v1655
    %v4644 = vpop.f32.mrb[0].mxu0
    %v4645 = vadd.f32 %v4588, %v4644
    %v4646 = vpop.f32.mrb[0].mxu0
    %v4647 = vpop.f32.mrb[0].mxu0
    %v4648 = vadd.f32 %v4591, %v4647
    %v4649 = vpop.f32.mrb[0].mxu0
    %4650 = vdwg.mxu0
    %4651 = vmatprep.subr.bf16.mxu0 %v2618
    %4652 = vmatpush1.bf16.xpose.msra.mxu0 %v2617
    %4653 = vmatprep.subr.bf16.mxu0 %v2714
    %4654 = vmatpush1.bf16.xpose.msra.mxu0 %v2713
    %4655 = vmatprep.subr.bf16.mxu0 0
    %4656 = vmatpush1.bf16.xpose.msra.mxu0 0
    %4657 = vmatprep.subr.bf16.mxu0 0
    %4658 = vmatpush1.bf16.xpose.msra.mxu0 0
    %4659 = vmatprep.subr.bf16.mxu0 0
    %4660 = vmatpush1.bf16.xpose.msra.mxu0 0
    %4661 = vmatprep.subr.bf16.mxu0 0
    %4662 = vmatpush1.bf16.xpose.msra.mxu0 0
    %4663 = vmatprep.subr.bf16.mxu0 0
    %4664 = vmatpush1.bf16.xpose.msra.mxu0 0
    %4665 = vmatprep.subr.bf16.mxu0 0
    %4666 = vmatpush1.bf16.xpose.msra.mxu0 0
    %4667 = vmatprep.subr.bf16.mxu0 0
    %4668 = vmatpush1.bf16.xpose.msra.mxu0 0
    %4669 = vmatprep.subr.bf16.mxu0 0
    %4670 = vmatpush1.bf16.xpose.msra.mxu0 0
    %4671 = vmatprep.subr.bf16.mxu0 0
    %4672 = vmatpush1.bf16.xpose.msra.mxu0 0
    %4673 = vmatprep.subr.bf16.mxu0 0
    %4674 = vmatpush1.bf16.xpose.msra.mxu0 0
    %4675 = vmatprep.subr.bf16.mxu0 0
    %4676 = vmatpush1.bf16.xpose.msra.mxu0 0
    %4677 = vmatprep.subr.bf16.mxu0 0
    %4678 = vmatpush1.bf16.xpose.msra.mxu0 0
    %4679 = vmatprep.subr.bf16.mxu0 0
    %4680 = vmatpush1.bf16.xpose.msra.mxu0 0
    %4681 = vmatprep.subr.bf16.mxu0 0
    %4682 = vmatpush1.bf16.xpose.msra.mxu0 0
    %4683 = vmatprep.mubr.bf16.mxu0 %v1466
    %4684 = vmatmul.mubr.bf16.gmra.mrb[0].mxu0 %v1465
    %v4685 = vpop.f32.mrb[0].mxu0
    %v4686 = vadd.f32 %v4629, %v4685
    %v4687 = vpop.f32.mrb[0].mxu0
    %v4688 = vpop.f32.mrb[0].mxu0
    %v4689 = vadd.f32 %v4632, %v4688
    %v4690 = vpop.f32.mrb[0].mxu0
    %4691 = vmatprep.mubr.bf16.mxu0 %v1562
    %4692 = vmatmul.mubr.bf16.gmra.mrb[0].mxu0 %v1561
    %v4693 = vpop.f32.mrb[0].mxu0
    %v4694 = vadd.f32 %v4637, %v4693
    %v4695 = vpop.f32.mrb[0].mxu0
    %v4696 = vpop.f32.mrb[0].mxu0
    %v4697 = vadd.f32 %v4640, %v4696
    %v4698 = vpop.f32.mrb[0].mxu0
    %4699 = vmatprep.mubr.bf16.mxu0 %v1658
    %4700 = vmatmul.mubr.bf16.gmra.mrb[0].mxu0 %v1657
    %v4701 = vpop.f32.mrb[0].mxu0
    %v4702 = vadd.f32 %v4645, %v4701
    %v4703 = vpop.f32.mrb[0].mxu0
    %v4704 = vpop.f32.mrb[0].mxu0
    %v4705 = vadd.f32 %v4648, %v4704
    %v4706 = vpop.f32.mrb[0].mxu0
    %4707 = vdwg.mxu0
    %4708 = vmatprep.subr.bf16.mxu0 %v2620
    %4709 = vmatpush1.bf16.xpose.msra.mxu0 %v2619
    %4710 = vmatprep.subr.bf16.mxu0 %v2716
    %4711 = vmatpush1.bf16.xpose.msra.mxu0 %v2715
    %4712 = vmatprep.subr.bf16.mxu0 0
    %4713 = vmatpush1.bf16.xpose.msra.mxu0 0
    %4714 = vmatprep.subr.bf16.mxu0 0
    %4715 = vmatpush1.bf16.xpose.msra.mxu0 0
    %4716 = vmatprep.subr.bf16.mxu0 0
    %4717 = vmatpush1.bf16.xpose.msra.mxu0 0
    %4718 = vmatprep.subr.bf16.mxu0 0
    %4719 = vmatpush1.bf16.xpose.msra.mxu0 0
    %4720 = vmatprep.subr.bf16.mxu0 0
    %4721 = vmatpush1.bf16.xpose.msra.mxu0 0
    %4722 = vmatprep.subr.bf16.mxu0 0
    %4723 = vmatpush1.bf16.xpose.msra.mxu0 0
    %4724 = vmatprep.subr.bf16.mxu0 0
    %4725 = vmatpush1.bf16.xpose.msra.mxu0 0
    %4726 = vmatprep.subr.bf16.mxu0 0
    %4727 = vmatpush1.bf16.xpose.msra.mxu0 0
    %4728 = vmatprep.subr.bf16.mxu0 0
    %4729 = vmatpush1.bf16.xpose.msra.mxu0 0
    %4730 = vmatprep.subr.bf16.mxu0 0
    %4731 = vmatpush1.bf16.xpose.msra.mxu0 0
    %4732 = vmatprep.subr.bf16.mxu0 0
    %4733 = vmatpush1.bf16.xpose.msra.mxu0 0
    %4734 = vmatprep.subr.bf16.mxu0 0
    %4735 = vmatpush1.bf16.xpose.msra.mxu0 0
    %4736 = vmatprep.subr.bf16.mxu0 0
    %4737 = vmatpush1.bf16.xpose.msra.mxu0 0
    %4738 = vmatprep.subr.bf16.mxu0 0
    %4739 = vmatpush1.bf16.xpose.msra.mxu0 0
    %4740 = vmatprep.mubr.bf16.mxu0 %v1468
    %4741 = vmatmul.mubr.bf16.gmra.mrb[0].mxu0 %v1467
    %v4742 = vpop.f32.mrb[0].mxu0
    %v4743 = vadd.f32 %v4686, %v4742
    %v4744 = vpop.f32.mrb[0].mxu0
    %v4745 = vpop.f32.mrb[0].mxu0
    %v4746 = vadd.f32 %v4689, %v4745
    %v4747 = vpop.f32.mrb[0].mxu0
    %4748 = vmatprep.mubr.bf16.mxu0 %v1564
    %4749 = vmatmul.mubr.bf16.gmra.mrb[0].mxu0 %v1563
    %v4750 = vpop.f32.mrb[0].mxu0
    %v4751 = vadd.f32 %v4694, %v4750
    %v4752 = vpop.f32.mrb[0].mxu0
    %v4753 = vpop.f32.mrb[0].mxu0
    %v4754 = vadd.f32 %v4697, %v4753
    %v4755 = vpop.f32.mrb[0].mxu0
    %4756 = vmatprep.mubr.bf16.mxu0 %v1660
    %4757 = vmatmul.mubr.bf16.gmra.mrb[0].mxu0 %v1659
    %v4758 = vpop.f32.mrb[0].mxu0
    %v4759 = vadd.f32 %v4702, %v4758
    %v4760 = vpop.f32.mrb[0].mxu0
    %v4761 = vpop.f32.mrb[0].mxu0
    %v4762 = vadd.f32 %v4705, %v4761
    %v4763 = vpop.f32.mrb[0].mxu0
    %4764 = vdwg.mxu0
    %4765 = vmatprep.subr.bf16.mxu0 %v2622
    %4766 = vmatpush1.bf16.xpose.msra.mxu0 %v2621
    %4767 = vmatprep.subr.bf16.mxu0 %v2718
    %4768 = vmatpush1.bf16.xpose.msra.mxu0 %v2717
    %4769 = vmatprep.subr.bf16.mxu0 0
    %4770 = vmatpush1.bf16.xpose.msra.mxu0 0
    %4771 = vmatprep.subr.bf16.mxu0 0
    %4772 = vmatpush1.bf16.xpose.msra.mxu0 0
    %4773 = vmatprep.subr.bf16.mxu0 0
    %4774 = vmatpush1.bf16.xpose.msra.mxu0 0
    %4775 = vmatprep.subr.bf16.mxu0 0
    %4776 = vmatpush1.bf16.xpose.msra.mxu0 0
    %4777 = vmatprep.subr.bf16.mxu0 0
    %4778 = vmatpush1.bf16.xpose.msra.mxu0 0
    %4779 = vmatprep.subr.bf16.mxu0 0
    %4780 = vmatpush1.bf16.xpose.msra.mxu0 0
    %4781 = vmatprep.subr.bf16.mxu0 0
    %4782 = vmatpush1.bf16.xpose.msra.mxu0 0
    %4783 = vmatprep.subr.bf16.mxu0 0
    %4784 = vmatpush1.bf16.xpose.msra.mxu0 0
    %4785 = vmatprep.subr.bf16.mxu0 0
    %4786 = vmatpush1.bf16.xpose.msra.mxu0 0
    %4787 = vmatprep.subr.bf16.mxu0 0
    %4788 = vmatpush1.bf16.xpose.msra.mxu0 0
    %4789 = vmatprep.subr.bf16.mxu0 0
    %4790 = vmatpush1.bf16.xpose.msra.mxu0 0
    %4791 = vmatprep.subr.bf16.mxu0 0
    %4792 = vmatpush1.bf16.xpose.msra.mxu0 0
    %4793 = vmatprep.subr.bf16.mxu0 0
    %4794 = vmatpush1.bf16.xpose.msra.mxu0 0
    %4795 = vmatprep.subr.bf16.mxu0 0
    %4796 = vmatpush1.bf16.xpose.msra.mxu0 0
    %4797 = vmatprep.mubr.bf16.mxu0 %v1470
    %4798 = vmatmul.mubr.bf16.gmra.mrb[0].mxu0 %v1469
    %v4799 = vpop.f32.mrb[0].mxu0
    %v4800 = vadd.f32 %v4743, %v4799
    %v4801 = vpop.f32.mrb[0].mxu0
    %v4802 = vpop.f32.mrb[0].mxu0
    %v4803 = vadd.f32 %v4746, %v4802
    %v4804 = vpop.f32.mrb[0].mxu0
    %4805 = vmatprep.mubr.bf16.mxu0 %v1566
    %4806 = vmatmul.mubr.bf16.gmra.mrb[0].mxu0 %v1565
    %v4807 = vpop.f32.mrb[0].mxu0
    %v4808 = vadd.f32 %v4751, %v4807
    %v4809 = vpop.f32.mrb[0].mxu0
    %v4810 = vpop.f32.mrb[0].mxu0
    %v4811 = vadd.f32 %v4754, %v4810
    %v4812 = vpop.f32.mrb[0].mxu0
    %4813 = vmatprep.mubr.bf16.mxu0 %v1662
    %4814 = vmatmul.mubr.bf16.gmra.mrb[0].mxu0 %v1661
    %v4815 = vpop.f32.mrb[0].mxu0
    %v4816 = vadd.f32 %v4759, %v4815
    %v4817 = vpop.f32.mrb[0].mxu0
    %v4818 = vpop.f32.mrb[0].mxu0
    %v4819 = vadd.f32 %v4762, %v4818
    %v4820 = vpop.f32.mrb[0].mxu0
    %4821 = vdwg.mxu0
    %4822 = vmatprep.subr.bf16.mxu0 %v2624
    %4823 = vmatpush1.bf16.xpose.msra.mxu0 %v2623
    %4824 = vmatprep.subr.bf16.mxu0 %v2720
    %4825 = vmatpush1.bf16.xpose.msra.mxu0 %v2719
    %4826 = vmatprep.subr.bf16.mxu0 0
    %4827 = vmatpush1.bf16.xpose.msra.mxu0 0
    %4828 = vmatprep.subr.bf16.mxu0 0
    %4829 = vmatpush1.bf16.xpose.msra.mxu0 0
    %4830 = vmatprep.subr.bf16.mxu0 0
    %4831 = vmatpush1.bf16.xpose.msra.mxu0 0
    %4832 = vmatprep.subr.bf16.mxu0 0
    %4833 = vmatpush1.bf16.xpose.msra.mxu0 0
    %4834 = vmatprep.subr.bf16.mxu0 0
    %4835 = vmatpush1.bf16.xpose.msra.mxu0 0
    %4836 = vmatprep.subr.bf16.mxu0 0
    %4837 = vmatpush1.bf16.xpose.msra.mxu0 0
    %4838 = vmatprep.subr.bf16.mxu0 0
    %4839 = vmatpush1.bf16.xpose.msra.mxu0 0
    %4840 = vmatprep.subr.bf16.mxu0 0
    %4841 = vmatpush1.bf16.xpose.msra.mxu0 0
    %4842 = vmatprep.subr.bf16.mxu0 0
    %4843 = vmatpush1.bf16.xpose.msra.mxu0 0
    %4844 = vmatprep.subr.bf16.mxu0 0
    %4845 = vmatpush1.bf16.xpose.msra.mxu0 0
    %4846 = vmatprep.subr.bf16.mxu0 0
    %4847 = vmatpush1.bf16.xpose.msra.mxu0 0
    %4848 = vmatprep.subr.bf16.mxu0 0
    %4849 = vmatpush1.bf16.xpose.msra.mxu0 0
    %4850 = vmatprep.subr.bf16.mxu0 0
    %4851 = vmatpush1.bf16.xpose.msra.mxu0 0
    %4852 = vmatprep.subr.bf16.mxu0 0
    %4853 = vmatpush1.bf16.xpose.msra.mxu0 0
    %4854 = vmatprep.mubr.bf16.mxu0 %v1472
    %4855 = vmatmul.mubr.bf16.gmra.mrb[0].mxu0 %v1471
    %v4856 = vpop.f32.mrb[0].mxu0
    %v4857 = vadd.f32 %v4800, %v4856
    %v4858 = vpop.f32.mrb[0].mxu0
    %v4859 = vpop.f32.mrb[0].mxu0
    %v4860 = vadd.f32 %v4803, %v4859
    %v4861 = vpop.f32.mrb[0].mxu0
    %4862 = vmatprep.mubr.bf16.mxu0 %v1568
    %4863 = vmatmul.mubr.bf16.gmra.mrb[0].mxu0 %v1567
    %v4864 = vpop.f32.mrb[0].mxu0
    %v4865 = vadd.f32 %v4808, %v4864
    %v4866 = vpop.f32.mrb[0].mxu0
    %v4867 = vpop.f32.mrb[0].mxu0
    %v4868 = vadd.f32 %v4811, %v4867
    %v4869 = vpop.f32.mrb[0].mxu0
    %4870 = vmatprep.mubr.bf16.mxu0 %v1664
    %4871 = vmatmul.mubr.bf16.gmra.mrb[0].mxu0 %v1663
    %v4872 = vpop.f32.mrb[0].mxu0
    %v4873 = vadd.f32 %v4816, %v4872
    %v4874 = vpop.f32.mrb[0].mxu0
    %v4875 = vpop.f32.mrb[0].mxu0
    %v4876 = vadd.f32 %v4819, %v4875
    %v4877 = vpop.f32.mrb[0].mxu0
    %4878 = vdwg.mxu0
    %4879 = vmatprep.subr.bf16.mxu0 %v2626
    %4880 = vmatpush1.bf16.xpose.msra.mxu0 %v2625
    %4881 = vmatprep.subr.bf16.mxu0 %v2722
    %4882 = vmatpush1.bf16.xpose.msra.mxu0 %v2721
    %4883 = vmatprep.subr.bf16.mxu0 0
    %4884 = vmatpush1.bf16.xpose.msra.mxu0 0
    %4885 = vmatprep.subr.bf16.mxu0 0
    %4886 = vmatpush1.bf16.xpose.msra.mxu0 0
    %4887 = vmatprep.subr.bf16.mxu0 0
    %4888 = vmatpush1.bf16.xpose.msra.mxu0 0
    %4889 = vmatprep.subr.bf16.mxu0 0
    %4890 = vmatpush1.bf16.xpose.msra.mxu0 0
    %4891 = vmatprep.subr.bf16.mxu0 0
    %4892 = vmatpush1.bf16.xpose.msra.mxu0 0
    %4893 = vmatprep.subr.bf16.mxu0 0
    %4894 = vmatpush1.bf16.xpose.msra.mxu0 0
    %4895 = vmatprep.subr.bf16.mxu0 0
    %4896 = vmatpush1.bf16.xpose.msra.mxu0 0
    %4897 = vmatprep.subr.bf16.mxu0 0
    %4898 = vmatpush1.bf16.xpose.msra.mxu0 0
    %4899 = vmatprep.subr.bf16.mxu0 0
    %4900 = vmatpush1.bf16.xpose.msra.mxu0 0
    %4901 = vmatprep.subr.bf16.mxu0 0
    %4902 = vmatpush1.bf16.xpose.msra.mxu0 0
    %4903 = vmatprep.subr.bf16.mxu0 0
    %4904 = vmatpush1.bf16.xpose.msra.mxu0 0
    %4905 = vmatprep.subr.bf16.mxu0 0
    %4906 = vmatpush1.bf16.xpose.msra.mxu0 0
    %4907 = vmatprep.subr.bf16.mxu0 0
    %4908 = vmatpush1.bf16.xpose.msra.mxu0 0
    %4909 = vmatprep.subr.bf16.mxu0 0
    %4910 = vmatpush1.bf16.xpose.msra.mxu0 0
    %4911 = vmatprep.mubr.bf16.mxu0 %v1474
    %4912 = vmatmul.mubr.bf16.gmra.mrb[0].mxu0 %v1473
    %v4913 = vpop.f32.mrb[0].mxu0
    %v4914 = vadd.f32 %v4857, %v4913
    %v4915 = vpop.f32.mrb[0].mxu0
    %v4916 = vpop.f32.mrb[0].mxu0
    %v4917 = vadd.f32 %v4860, %v4916
    %v4918 = vpop.f32.mrb[0].mxu0
    %4919 = vmatprep.mubr.bf16.mxu0 %v1570
    %4920 = vmatmul.mubr.bf16.gmra.mrb[0].mxu0 %v1569
    %v4921 = vpop.f32.mrb[0].mxu0
    %v4922 = vadd.f32 %v4865, %v4921
    %v4923 = vpop.f32.mrb[0].mxu0
    %v4924 = vpop.f32.mrb[0].mxu0
    %v4925 = vadd.f32 %v4868, %v4924
    %v4926 = vpop.f32.mrb[0].mxu0
    %4927 = vmatprep.mubr.bf16.mxu0 %v1666
    %4928 = vmatmul.mubr.bf16.gmra.mrb[0].mxu0 %v1665
    %v4929 = vpop.f32.mrb[0].mxu0
    %v4930 = vadd.f32 %v4873, %v4929
    %v4931 = vpop.f32.mrb[0].mxu0
    %v4932 = vpop.f32.mrb[0].mxu0
    %v4933 = vadd.f32 %v4876, %v4932
    %v4934 = vpop.f32.mrb[0].mxu0
    %4935 = vdwg.mxu0
    %4936 = vmatprep.subr.bf16.mxu0 %v2628
    %4937 = vmatpush1.bf16.xpose.msra.mxu0 %v2627
    %4938 = vmatprep.subr.bf16.mxu0 %v2724
    %4939 = vmatpush1.bf16.xpose.msra.mxu0 %v2723
    %4940 = vmatprep.subr.bf16.mxu0 0
    %4941 = vmatpush1.bf16.xpose.msra.mxu0 0
    %4942 = vmatprep.subr.bf16.mxu0 0
    %4943 = vmatpush1.bf16.xpose.msra.mxu0 0
    %4944 = vmatprep.subr.bf16.mxu0 0
    %4945 = vmatpush1.bf16.xpose.msra.mxu0 0
    %4946 = vmatprep.subr.bf16.mxu0 0
    %4947 = vmatpush1.bf16.xpose.msra.mxu0 0
    %4948 = vmatprep.subr.bf16.mxu0 0
    %4949 = vmatpush1.bf16.xpose.msra.mxu0 0
    %4950 = vmatprep.subr.bf16.mxu0 0
    %4951 = vmatpush1.bf16.xpose.msra.mxu0 0
    %4952 = vmatprep.subr.bf16.mxu0 0
    %4953 = vmatpush1.bf16.xpose.msra.mxu0 0
    %4954 = vmatprep.subr.bf16.mxu0 0
    %4955 = vmatpush1.bf16.xpose.msra.mxu0 0
    %4956 = vmatprep.subr.bf16.mxu0 0
    %4957 = vmatpush1.bf16.xpose.msra.mxu0 0
    %4958 = vmatprep.subr.bf16.mxu0 0
    %4959 = vmatpush1.bf16.xpose.msra.mxu0 0
    %4960 = vmatprep.subr.bf16.mxu0 0
    %4961 = vmatpush1.bf16.xpose.msra.mxu0 0
    %4962 = vmatprep.subr.bf16.mxu0 0
    %4963 = vmatpush1.bf16.xpose.msra.mxu0 0
    %4964 = vmatprep.subr.bf16.mxu0 0
    %4965 = vmatpush1.bf16.xpose.msra.mxu0 0
    %4966 = vmatprep.subr.bf16.mxu0 0
    %4967 = vmatpush1.bf16.xpose.msra.mxu0 0
    %4968 = vmatprep.mubr.bf16.mxu0 %v1476
    %4969 = vmatmul.mubr.bf16.gmra.mrb[0].mxu0 %v1475
    %v4970 = vpop.f32.mrb[0].mxu0
    %v4971 = vadd.f32 %v4914, %v4970
    %v4972 = vpop.f32.mrb[0].mxu0
    %v4973 = vpop.f32.mrb[0].mxu0
    %v4974 = vadd.f32 %v4917, %v4973
    %v4975 = vpop.f32.mrb[0].mxu0
    %4976 = vmatprep.mubr.bf16.mxu0 %v1572
    %4977 = vmatmul.mubr.bf16.gmra.mrb[0].mxu0 %v1571
    %v4978 = vpop.f32.mrb[0].mxu0
    %v4979 = vadd.f32 %v4922, %v4978
    %v4980 = vpop.f32.mrb[0].mxu0
    %v4981 = vpop.f32.mrb[0].mxu0
    %v4982 = vadd.f32 %v4925, %v4981
    %v4983 = vpop.f32.mrb[0].mxu0
    %4984 = vmatprep.mubr.bf16.mxu0 %v1668
    %4985 = vmatmul.mubr.bf16.gmra.mrb[0].mxu0 %v1667
    %v4986 = vpop.f32.mrb[0].mxu0
    %v4987 = vadd.f32 %v4930, %v4986
    %v4988 = vpop.f32.mrb[0].mxu0
    %v4989 = vpop.f32.mrb[0].mxu0
    %v4990 = vadd.f32 %v4933, %v4989
    %v4991 = vpop.f32.mrb[0].mxu0
    %4992 = vdwg.mxu0
    %4993 = vmatprep.subr.bf16.mxu0 %v2630
    %4994 = vmatpush1.bf16.xpose.msra.mxu0 %v2629
    %4995 = vmatprep.subr.bf16.mxu0 %v2726
    %4996 = vmatpush1.bf16.xpose.msra.mxu0 %v2725
    %4997 = vmatprep.subr.bf16.mxu0 0
    %4998 = vmatpush1.bf16.xpose.msra.mxu0 0
    %4999 = vmatprep.subr.bf16.mxu0 0
    %5000 = vmatpush1.bf16.xpose.msra.mxu0 0
    %5001 = vmatprep.subr.bf16.mxu0 0
    %5002 = vmatpush1.bf16.xpose.msra.mxu0 0
    %5003 = vmatprep.subr.bf16.mxu0 0
    %5004 = vmatpush1.bf16.xpose.msra.mxu0 0
    %5005 = vmatprep.subr.bf16.mxu0 0
    %5006 = vmatpush1.bf16.xpose.msra.mxu0 0
    %5007 = vmatprep.subr.bf16.mxu0 0
    %5008 = vmatpush1.bf16.xpose.msra.mxu0 0
    %5009 = vmatprep.subr.bf16.mxu0 0
    %5010 = vmatpush1.bf16.xpose.msra.mxu0 0
    %5011 = vmatprep.subr.bf16.mxu0 0
    %5012 = vmatpush1.bf16.xpose.msra.mxu0 0
    %5013 = vmatprep.subr.bf16.mxu0 0
    %5014 = vmatpush1.bf16.xpose.msra.mxu0 0
    %5015 = vmatprep.subr.bf16.mxu0 0
    %5016 = vmatpush1.bf16.xpose.msra.mxu0 0
    %5017 = vmatprep.subr.bf16.mxu0 0
    %5018 = vmatpush1.bf16.xpose.msra.mxu0 0
    %5019 = vmatprep.subr.bf16.mxu0 0
    %5020 = vmatpush1.bf16.xpose.msra.mxu0 0
    %5021 = vmatprep.subr.bf16.mxu0 0
    %5022 = vmatpush1.bf16.xpose.msra.mxu0 0
    %5023 = vmatprep.subr.bf16.mxu0 0
    %5024 = vmatpush1.bf16.xpose.msra.mxu0 0
    %5025 = vmatprep.mubr.bf16.mxu0 %v1478
    %5026 = vmatmul.mubr.bf16.gmra.mrb[0].mxu0 %v1477
    %v5027 = vpop.f32.mrb[0].mxu0
    %v5028 = vadd.f32 %v4971, %v5027
    %v5029 = vpop.f32.mrb[0].mxu0
    %v5030 = vpop.f32.mrb[0].mxu0
    %v5031 = vadd.f32 %v4974, %v5030
    %v5032 = vpop.f32.mrb[0].mxu0
    %5033 = vmatprep.mubr.bf16.mxu0 %v1574
    %5034 = vmatmul.mubr.bf16.gmra.mrb[0].mxu0 %v1573
    %v5035 = vpop.f32.mrb[0].mxu0
    %v5036 = vadd.f32 %v4979, %v5035
    %v5037 = vpop.f32.mrb[0].mxu0
    %v5038 = vpop.f32.mrb[0].mxu0
    %v5039 = vadd.f32 %v4982, %v5038
    %v5040 = vpop.f32.mrb[0].mxu0
    %5041 = vmatprep.mubr.bf16.mxu0 %v1670
    %5042 = vmatmul.mubr.bf16.gmra.mrb[0].mxu0 %v1669
    %v5043 = vpop.f32.mrb[0].mxu0
    %v5044 = vadd.f32 %v4987, %v5043
    %v5045 = vpop.f32.mrb[0].mxu0
    %v5046 = vpop.f32.mrb[0].mxu0
    %v5047 = vadd.f32 %v4990, %v5046
    %v5048 = vpop.f32.mrb[0].mxu0
    %5049 = vdwg.mxu0
    %5050 = vmatprep.subr.bf16.mxu0 %v2632
    %5051 = vmatpush1.bf16.xpose.msra.mxu0 %v2631
    %5052 = vmatprep.subr.bf16.mxu0 %v2728
    %5053 = vmatpush1.bf16.xpose.msra.mxu0 %v2727
    %5054 = vmatprep.subr.bf16.mxu0 0
    %5055 = vmatpush1.bf16.xpose.msra.mxu0 0
    %5056 = vmatprep.subr.bf16.mxu0 0
    %5057 = vmatpush1.bf16.xpose.msra.mxu0 0
    %5058 = vmatprep.subr.bf16.mxu0 0
    %5059 = vmatpush1.bf16.xpose.msra.mxu0 0
    %5060 = vmatprep.subr.bf16.mxu0 0
    %5061 = vmatpush1.bf16.xpose.msra.mxu0 0
    %5062 = vmatprep.subr.bf16.mxu0 0
    %5063 = vmatpush1.bf16.xpose.msra.mxu0 0
    %5064 = vmatprep.subr.bf16.mxu0 0
    %5065 = vmatpush1.bf16.xpose.msra.mxu0 0
    %5066 = vmatprep.subr.bf16.mxu0 0
    %5067 = vmatpush1.bf16.xpose.msra.mxu0 0
    %5068 = vmatprep.subr.bf16.mxu0 0
    %5069 = vmatpush1.bf16.xpose.msra.mxu0 0
    %5070 = vmatprep.subr.bf16.mxu0 0
    %5071 = vmatpush1.bf16.xpose.msra.mxu0 0
    %5072 = vmatprep.subr.bf16.mxu0 0
    %5073 = vmatpush1.bf16.xpose.msra.mxu0 0
    %5074 = vmatprep.subr.bf16.mxu0 0
    %5075 = vmatpush1.bf16.xpose.msra.mxu0 0
    %5076 = vmatprep.subr.bf16.mxu0 0
    %5077 = vmatpush1.bf16.xpose.msra.mxu0 0
    %5078 = vmatprep.subr.bf16.mxu0 0
    %5079 = vmatpush1.bf16.xpose.msra.mxu0 0
    %5080 = vmatprep.subr.bf16.mxu0 0
    %5081 = vmatpush1.bf16.xpose.msra.mxu0 0
    %5082 = vmatprep.mubr.bf16.mxu0 %v1480
    %5083 = vmatmul.mubr.bf16.gmra.mrb[0].mxu0 %v1479
    %v5084 = vpop.f32.mrb[0].mxu0
    %v5085 = vadd.f32 %v5028, %v5084
    %v5086 = vpop.f32.mrb[0].mxu0
    %v5087 = vpop.f32.mrb[0].mxu0
    %v5088 = vadd.f32 %v5031, %v5087
    %v5089 = vpop.f32.mrb[0].mxu0
    %5090 = vmatprep.mubr.bf16.mxu0 %v1576
    %5091 = vmatmul.mubr.bf16.gmra.mrb[0].mxu0 %v1575
    %v5092 = vpop.f32.mrb[0].mxu0
    %v5093 = vadd.f32 %v5036, %v5092
    %v5094 = vpop.f32.mrb[0].mxu0
    %v5095 = vpop.f32.mrb[0].mxu0
    %v5096 = vadd.f32 %v5039, %v5095
    %v5097 = vpop.f32.mrb[0].mxu0
    %5098 = vmatprep.mubr.bf16.mxu0 %v1672
    %5099 = vmatmul.mubr.bf16.gmra.mrb[0].mxu0 %v1671
    %v5100 = vpop.f32.mrb[0].mxu0
    %v5101 = vadd.f32 %v5044, %v5100
    %v5102 = vpop.f32.mrb[0].mxu0
    %v5103 = vpop.f32.mrb[0].mxu0
    %v5104 = vadd.f32 %v5047, %v5103
    %v5105 = vpop.f32.mrb[0].mxu0
    %5106 = vdwg.mxu0
    %5107 = vmatprep.subr.bf16.mxu0 %v2634
    %5108 = vmatpush1.bf16.xpose.msra.mxu0 %v2633
    %5109 = vmatprep.subr.bf16.mxu0 %v2730
    %5110 = vmatpush1.bf16.xpose.msra.mxu0 %v2729
    %5111 = vmatprep.subr.bf16.mxu0 0
    %5112 = vmatpush1.bf16.xpose.msra.mxu0 0
    %5113 = vmatprep.subr.bf16.mxu0 0
    %5114 = vmatpush1.bf16.xpose.msra.mxu0 0
    %5115 = vmatprep.subr.bf16.mxu0 0
    %5116 = vmatpush1.bf16.xpose.msra.mxu0 0
    %5117 = vmatprep.subr.bf16.mxu0 0
    %5118 = vmatpush1.bf16.xpose.msra.mxu0 0
    %5119 = vmatprep.subr.bf16.mxu0 0
    %5120 = vmatpush1.bf16.xpose.msra.mxu0 0
    %5121 = vmatprep.subr.bf16.mxu0 0
    %5122 = vmatpush1.bf16.xpose.msra.mxu0 0
    %5123 = vmatprep.subr.bf16.mxu0 0
    %5124 = vmatpush1.bf16.xpose.msra.mxu0 0
    %5125 = vmatprep.subr.bf16.mxu0 0
    %5126 = vmatpush1.bf16.xpose.msra.mxu0 0
    %5127 = vmatprep.subr.bf16.mxu0 0
    %5128 = vmatpush1.bf16.xpose.msra.mxu0 0
    %5129 = vmatprep.subr.bf16.mxu0 0
    %5130 = vmatpush1.bf16.xpose.msra.mxu0 0
    %5131 = vmatprep.subr.bf16.mxu0 0
    %5132 = vmatpush1.bf16.xpose.msra.mxu0 0
    %5133 = vmatprep.subr.bf16.mxu0 0
    %5134 = vmatpush1.bf16.xpose.msra.mxu0 0
    %5135 = vmatprep.subr.bf16.mxu0 0
    %5136 = vmatpush1.bf16.xpose.msra.mxu0 0
    %5137 = vmatprep.subr.bf16.mxu0 0
    %5138 = vmatpush1.bf16.xpose.msra.mxu0 0
    %5139 = vmatprep.mubr.bf16.mxu0 %v1482
    %5140 = vmatmul.mubr.bf16.gmra.mrb[0].mxu0 %v1481
    %v5141 = vpop.f32.mrb[0].mxu0
    %v5142 = vadd.f32 %v5085, %v5141
    %v5143 = vpop.f32.mrb[0].mxu0
    %v5144 = vpop.f32.mrb[0].mxu0
    %v5145 = vadd.f32 %v5088, %v5144
    %v5146 = vpop.f32.mrb[0].mxu0
    %5147 = vmatprep.mubr.bf16.mxu0 %v1578
    %5148 = vmatmul.mubr.bf16.gmra.mrb[0].mxu0 %v1577
    %v5149 = vpop.f32.mrb[0].mxu0
    %v5150 = vadd.f32 %v5093, %v5149
    %v5151 = vpop.f32.mrb[0].mxu0
    %v5152 = vpop.f32.mrb[0].mxu0
    %v5153 = vadd.f32 %v5096, %v5152
    %v5154 = vpop.f32.mrb[0].mxu0
    %5155 = vmatprep.mubr.bf16.mxu0 %v1674
    %5156 = vmatmul.mubr.bf16.gmra.mrb[0].mxu0 %v1673
    %v5157 = vpop.f32.mrb[0].mxu0
    %v5158 = vadd.f32 %v5101, %v5157
    %v5159 = vpop.f32.mrb[0].mxu0
    %v5160 = vpop.f32.mrb[0].mxu0
    %v5161 = vadd.f32 %v5104, %v5160
    %v5162 = vpop.f32.mrb[0].mxu0
    %5163 = vdwg.mxu0
    %5164 = vmatprep.subr.bf16.mxu0 %v2636
    %5165 = vmatpush1.bf16.xpose.msra.mxu0 %v2635
    %5166 = vmatprep.subr.bf16.mxu0 %v2732
    %5167 = vmatpush1.bf16.xpose.msra.mxu0 %v2731
    %5168 = vmatprep.subr.bf16.mxu0 0
    %5169 = vmatpush1.bf16.xpose.msra.mxu0 0
    %5170 = vmatprep.subr.bf16.mxu0 0
    %5171 = vmatpush1.bf16.xpose.msra.mxu0 0
    %5172 = vmatprep.subr.bf16.mxu0 0
    %5173 = vmatpush1.bf16.xpose.msra.mxu0 0
    %5174 = vmatprep.subr.bf16.mxu0 0
    %5175 = vmatpush1.bf16.xpose.msra.mxu0 0
    %5176 = vmatprep.subr.bf16.mxu0 0
    %5177 = vmatpush1.bf16.xpose.msra.mxu0 0
    %5178 = vmatprep.subr.bf16.mxu0 0
    %5179 = vmatpush1.bf16.xpose.msra.mxu0 0
    %5180 = vmatprep.subr.bf16.mxu0 0
    %5181 = vmatpush1.bf16.xpose.msra.mxu0 0
    %5182 = vmatprep.subr.bf16.mxu0 0
    %5183 = vmatpush1.bf16.xpose.msra.mxu0 0
    %5184 = vmatprep.subr.bf16.mxu0 0
    %5185 = vmatpush1.bf16.xpose.msra.mxu0 0
    %5186 = vmatprep.subr.bf16.mxu0 0
    %5187 = vmatpush1.bf16.xpose.msra.mxu0 0
    %5188 = vmatprep.subr.bf16.mxu0 0
    %5189 = vmatpush1.bf16.xpose.msra.mxu0 0
    %5190 = vmatprep.subr.bf16.mxu0 0
    %5191 = vmatpush1.bf16.xpose.msra.mxu0 0
    %5192 = vmatprep.subr.bf16.mxu0 0
    %5193 = vmatpush1.bf16.xpose.msra.mxu0 0
    %5194 = vmatprep.subr.bf16.mxu0 0
    %5195 = vmatpush1.bf16.xpose.msra.mxu0 0
    %5196 = vmatprep.mubr.bf16.mxu0 %v1484
    %5197 = vmatmul.mubr.bf16.gmra.mrb[0].mxu0 %v1483
    %v5198 = vpop.f32.mrb[0].mxu0
    %v5199 = vadd.f32 %v5142, %v5198
    %v5200 = vpop.f32.mrb[0].mxu0
    %v5201 = vpop.f32.mrb[0].mxu0
    %v5202 = vadd.f32 %v5145, %v5201
    %v5203 = vpop.f32.mrb[0].mxu0
    %5204 = vmatprep.mubr.bf16.mxu0 %v1580
    %5205 = vmatmul.mubr.bf16.gmra.mrb[0].mxu0 %v1579
    %v5206 = vpop.f32.mrb[0].mxu0
    %v5207 = vadd.f32 %v5150, %v5206
    %v5208 = vpop.f32.mrb[0].mxu0
    %v5209 = vpop.f32.mrb[0].mxu0
    %v5210 = vadd.f32 %v5153, %v5209
    %v5211 = vpop.f32.mrb[0].mxu0
    %5212 = vmatprep.mubr.bf16.mxu0 %v1676
    %5213 = vmatmul.mubr.bf16.gmra.mrb[0].mxu0 %v1675
    %v5214 = vpop.f32.mrb[0].mxu0
    %v5215 = vadd.f32 %v5158, %v5214
    %v5216 = vpop.f32.mrb[0].mxu0
    %v5217 = vpop.f32.mrb[0].mxu0
    %v5218 = vadd.f32 %v5161, %v5217
    %v5219 = vpop.f32.mrb[0].mxu0
    %5220 = vdwg.mxu0
    %5221 = vmatprep.subr.bf16.mxu0 %v2638
    %5222 = vmatpush1.bf16.xpose.msra.mxu0 %v2637
    %5223 = vmatprep.subr.bf16.mxu0 %v2734
    %5224 = vmatpush1.bf16.xpose.msra.mxu0 %v2733
    %5225 = vmatprep.subr.bf16.mxu0 0
    %5226 = vmatpush1.bf16.xpose.msra.mxu0 0
    %5227 = vmatprep.subr.bf16.mxu0 0
    %5228 = vmatpush1.bf16.xpose.msra.mxu0 0
    %5229 = vmatprep.subr.bf16.mxu0 0
    %5230 = vmatpush1.bf16.xpose.msra.mxu0 0
    %5231 = vmatprep.subr.bf16.mxu0 0
    %5232 = vmatpush1.bf16.xpose.msra.mxu0 0
    %5233 = vmatprep.subr.bf16.mxu0 0
    %5234 = vmatpush1.bf16.xpose.msra.mxu0 0
    %5235 = vmatprep.subr.bf16.mxu0 0
    %5236 = vmatpush1.bf16.xpose.msra.mxu0 0
    %5237 = vmatprep.subr.bf16.mxu0 0
    %5238 = vmatpush1.bf16.xpose.msra.mxu0 0
    %5239 = vmatprep.subr.bf16.mxu0 0
    %5240 = vmatpush1.bf16.xpose.msra.mxu0 0
    %5241 = vmatprep.subr.bf16.mxu0 0
    %5242 = vmatpush1.bf16.xpose.msra.mxu0 0
    %5243 = vmatprep.subr.bf16.mxu0 0
    %5244 = vmatpush1.bf16.xpose.msra.mxu0 0
    %5245 = vmatprep.subr.bf16.mxu0 0
    %5246 = vmatpush1.bf16.xpose.msra.mxu0 0
    %5247 = vmatprep.subr.bf16.mxu0 0
    %5248 = vmatpush1.bf16.xpose.msra.mxu0 0
    %5249 = vmatprep.subr.bf16.mxu0 0
    %5250 = vmatpush1.bf16.xpose.msra.mxu0 0
    %5251 = vmatprep.subr.bf16.mxu0 0
    %5252 = vmatpush1.bf16.xpose.msra.mxu0 0
    %5253 = vmatprep.mubr.bf16.mxu0 %v1486
    %5254 = vmatmul.mubr.bf16.gmra.mrb[0].mxu0 %v1485
    %v5255 = vpop.f32.mrb[0].mxu0
    %v5256 = vadd.f32 %v5199, %v5255
    %v5257 = vpop.f32.mrb[0].mxu0
    %v5258 = vpop.f32.mrb[0].mxu0
    %v5259 = vadd.f32 %v5202, %v5258
    %v5260 = vpop.f32.mrb[0].mxu0
    %5261 = vmatprep.mubr.bf16.mxu0 %v1582
    %5262 = vmatmul.mubr.bf16.gmra.mrb[0].mxu0 %v1581
    %v5263 = vpop.f32.mrb[0].mxu0
    %v5264 = vadd.f32 %v5207, %v5263
    %v5265 = vpop.f32.mrb[0].mxu0
    %v5266 = vpop.f32.mrb[0].mxu0
    %v5267 = vadd.f32 %v5210, %v5266
    %v5268 = vpop.f32.mrb[0].mxu0
    %5269 = vmatprep.mubr.bf16.mxu0 %v1678
    %5270 = vmatmul.mubr.bf16.gmra.mrb[0].mxu0 %v1677
    %v5271 = vpop.f32.mrb[0].mxu0
    %v5272 = vadd.f32 %v5215, %v5271
    %v5273 = vpop.f32.mrb[0].mxu0
    %v5274 = vpop.f32.mrb[0].mxu0
    %v5275 = vadd.f32 %v5218, %v5274
    %v5276 = vpop.f32.mrb[0].mxu0
    %5277 = vdwg.mxu0
    %5278 = vmatprep.subr.bf16.mxu0 %v2640
    %5279 = vmatpush1.bf16.xpose.msra.mxu0 %v2639
    %5280 = vmatprep.subr.bf16.mxu0 %v2736
    %5281 = vmatpush1.bf16.xpose.msra.mxu0 %v2735
    %5282 = vmatprep.subr.bf16.mxu0 0
    %5283 = vmatpush1.bf16.xpose.msra.mxu0 0
    %5284 = vmatprep.subr.bf16.mxu0 0
    %5285 = vmatpush1.bf16.xpose.msra.mxu0 0
    %5286 = vmatprep.subr.bf16.mxu0 0
    %5287 = vmatpush1.bf16.xpose.msra.mxu0 0
    %5288 = vmatprep.subr.bf16.mxu0 0
    %5289 = vmatpush1.bf16.xpose.msra.mxu0 0
    %5290 = vmatprep.subr.bf16.mxu0 0
    %5291 = vmatpush1.bf16.xpose.msra.mxu0 0
    %5292 = vmatprep.subr.bf16.mxu0 0
    %5293 = vmatpush1.bf16.xpose.msra.mxu0 0
    %5294 = vmatprep.subr.bf16.mxu0 0
    %5295 = vmatpush1.bf16.xpose.msra.mxu0 0
    %5296 = vmatprep.subr.bf16.mxu0 0
    %5297 = vmatpush1.bf16.xpose.msra.mxu0 0
    %5298 = vmatprep.subr.bf16.mxu0 0
    %5299 = vmatpush1.bf16.xpose.msra.mxu0 0
    %5300 = vmatprep.subr.bf16.mxu0 0
    %5301 = vmatpush1.bf16.xpose.msra.mxu0 0
    %5302 = vmatprep.subr.bf16.mxu0 0
    %5303 = vmatpush1.bf16.xpose.msra.mxu0 0
    %5304 = vmatprep.subr.bf16.mxu0 0
    %5305 = vmatpush1.bf16.xpose.msra.mxu0 0
    %5306 = vmatprep.subr.bf16.mxu0 0
    %5307 = vmatpush1.bf16.xpose.msra.mxu0 0
    %5308 = vmatprep.subr.bf16.mxu0 0
    %5309 = vmatpush1.bf16.xpose.msra.mxu0 0
    %5310 = vmatprep.mubr.bf16.mxu0 %v1488
    %5311 = vmatmul.mubr.bf16.gmra.mrb[0].mxu0 %v1487
    %v5312 = vpop.f32.mrb[0].mxu0
    %v5313 = vadd.f32 %v5256, %v5312
    %v5314 = vpop.f32.mrb[0].mxu0
    %v5315 = vpop.f32.mrb[0].mxu0
    %v5316 = vadd.f32 %v5259, %v5315
    %v5317 = vpop.f32.mrb[0].mxu0
    %5318 = vmatprep.mubr.bf16.mxu0 %v1584
    %5319 = vmatmul.mubr.bf16.gmra.mrb[0].mxu0 %v1583
    %v5320 = vpop.f32.mrb[0].mxu0
    %v5321 = vadd.f32 %v5264, %v5320
    %v5322 = vpop.f32.mrb[0].mxu0
    %v5323 = vpop.f32.mrb[0].mxu0
    %v5324 = vadd.f32 %v5267, %v5323
    %v5325 = vpop.f32.mrb[0].mxu0
    %5326 = vmatprep.mubr.bf16.mxu0 %v1680
    %5327 = vmatmul.mubr.bf16.gmra.mrb[0].mxu0 %v1679
    %v5328 = vpop.f32.mrb[0].mxu0
    %v5329 = vadd.f32 %v5272, %v5328
    %v5330 = vpop.f32.mrb[0].mxu0
    %v5331 = vpop.f32.mrb[0].mxu0
    %v5332 = vadd.f32 %v5275, %v5331
    %v5333 = vpop.f32.mrb[0].mxu0
    %5334 = vdwg.mxu0
    %5335 = vmatprep.subr.bf16.mxu0 %v2642
    %5336 = vmatpush1.bf16.xpose.msra.mxu0 %v2641
    %5337 = vmatprep.subr.bf16.mxu0 %v2738
    %5338 = vmatpush1.bf16.xpose.msra.mxu0 %v2737
    %5339 = vmatprep.subr.bf16.mxu0 0
    %5340 = vmatpush1.bf16.xpose.msra.mxu0 0
    %5341 = vmatprep.subr.bf16.mxu0 0
    %5342 = vmatpush1.bf16.xpose.msra.mxu0 0
    %5343 = vmatprep.subr.bf16.mxu0 0
    %5344 = vmatpush1.bf16.xpose.msra.mxu0 0
    %5345 = vmatprep.subr.bf16.mxu0 0
    %5346 = vmatpush1.bf16.xpose.msra.mxu0 0
    %5347 = vmatprep.subr.bf16.mxu0 0
    %5348 = vmatpush1.bf16.xpose.msra.mxu0 0
    %5349 = vmatprep.subr.bf16.mxu0 0
    %5350 = vmatpush1.bf16.xpose.msra.mxu0 0
    %5351 = vmatprep.subr.bf16.mxu0 0
    %5352 = vmatpush1.bf16.xpose.msra.mxu0 0
    %5353 = vmatprep.subr.bf16.mxu0 0
    %5354 = vmatpush1.bf16.xpose.msra.mxu0 0
    %5355 = vmatprep.subr.bf16.mxu0 0
    %5356 = vmatpush1.bf16.xpose.msra.mxu0 0
    %5357 = vmatprep.subr.bf16.mxu0 0
    %5358 = vmatpush1.bf16.xpose.msra.mxu0 0
    %5359 = vmatprep.subr.bf16.mxu0 0
    %5360 = vmatpush1.bf16.xpose.msra.mxu0 0
    %5361 = vmatprep.subr.bf16.mxu0 0
    %5362 = vmatpush1.bf16.xpose.msra.mxu0 0
    %5363 = vmatprep.subr.bf16.mxu0 0
    %5364 = vmatpush1.bf16.xpose.msra.mxu0 0
    %5365 = vmatprep.subr.bf16.mxu0 0
    %5366 = vmatpush1.bf16.xpose.msra.mxu0 0
    %5367 = vmatprep.mubr.bf16.mxu0 %v1490
    %5368 = vmatmul.mubr.bf16.gmra.mrb[0].mxu0 %v1489
    %v5369 = vpop.f32.mrb[0].mxu0
    %v5370 = vadd.f32 %v5313, %v5369
    %v5371 = vpop.f32.mrb[0].mxu0
    %v5372 = vpop.f32.mrb[0].mxu0
    %v5373 = vadd.f32 %v5316, %v5372
    %v5374 = vpop.f32.mrb[0].mxu0
    %5375 = vmatprep.mubr.bf16.mxu0 %v1586
    %5376 = vmatmul.mubr.bf16.gmra.mrb[0].mxu0 %v1585
    %v5377 = vpop.f32.mrb[0].mxu0
    %v5378 = vadd.f32 %v5321, %v5377
    %v5379 = vpop.f32.mrb[0].mxu0
    %v5380 = vpop.f32.mrb[0].mxu0
    %v5381 = vadd.f32 %v5324, %v5380
    %v5382 = vpop.f32.mrb[0].mxu0
    %5383 = vmatprep.mubr.bf16.mxu0 %v1682
    %5384 = vmatmul.mubr.bf16.gmra.mrb[0].mxu0 %v1681
    %v5385 = vpop.f32.mrb[0].mxu0
    %v5386 = vadd.f32 %v5329, %v5385
    %v5387 = vpop.f32.mrb[0].mxu0
    %v5388 = vpop.f32.mrb[0].mxu0
    %v5389 = vadd.f32 %v5332, %v5388
    %v5390 = vpop.f32.mrb[0].mxu0
    %5391 = vdwg.mxu0
    %5392 = vmatprep.subr.bf16.mxu0 %v2644
    %5393 = vmatpush1.bf16.xpose.msra.mxu0 %v2643
    %5394 = vmatprep.subr.bf16.mxu0 %v2740
    %5395 = vmatpush1.bf16.xpose.msra.mxu0 %v2739
    %5396 = vmatprep.subr.bf16.mxu0 0
    %5397 = vmatpush1.bf16.xpose.msra.mxu0 0
    %5398 = vmatprep.subr.bf16.mxu0 0
    %5399 = vmatpush1.bf16.xpose.msra.mxu0 0
    %5400 = vmatprep.subr.bf16.mxu0 0
    %5401 = vmatpush1.bf16.xpose.msra.mxu0 0
    %5402 = vmatprep.subr.bf16.mxu0 0
    %5403 = vmatpush1.bf16.xpose.msra.mxu0 0
    %5404 = vmatprep.subr.bf16.mxu0 0
    %5405 = vmatpush1.bf16.xpose.msra.mxu0 0
    %5406 = vmatprep.subr.bf16.mxu0 0
    %5407 = vmatpush1.bf16.xpose.msra.mxu0 0
    %5408 = vmatprep.subr.bf16.mxu0 0
    %5409 = vmatpush1.bf16.xpose.msra.mxu0 0
    %5410 = vmatprep.subr.bf16.mxu0 0
    %5411 = vmatpush1.bf16.xpose.msra.mxu0 0
    %5412 = vmatprep.subr.bf16.mxu0 0
    %5413 = vmatpush1.bf16.xpose.msra.mxu0 0
    %5414 = vmatprep.subr.bf16.mxu0 0
    %5415 = vmatpush1.bf16.xpose.msra.mxu0 0
    %5416 = vmatprep.subr.bf16.mxu0 0
    %5417 = vmatpush1.bf16.xpose.msra.mxu0 0
    %5418 = vmatprep.subr.bf16.mxu0 0
    %5419 = vmatpush1.bf16.xpose.msra.mxu0 0
    %5420 = vmatprep.subr.bf16.mxu0 0
    %5421 = vmatpush1.bf16.xpose.msra.mxu0 0
    %5422 = vmatprep.subr.bf16.mxu0 0
    %5423 = vmatpush1.bf16.xpose.msra.mxu0 0
    %5424 = vmatprep.mubr.bf16.mxu0 %v1492
    %5425 = vmatmul.mubr.bf16.gmra.mrb[0].mxu0 %v1491
    %v5426 = vpop.f32.mrb[0].mxu0
    %v5427 = vadd.f32 %v5370, %v5426
    %v5428 = vpop.f32.mrb[0].mxu0
    %v5429 = vpop.f32.mrb[0].mxu0
    %v5430 = vadd.f32 %v5373, %v5429
    %v5431 = vpop.f32.mrb[0].mxu0
    %5432 = vmatprep.mubr.bf16.mxu0 %v1588
    %5433 = vmatmul.mubr.bf16.gmra.mrb[0].mxu0 %v1587
    %v5434 = vpop.f32.mrb[0].mxu0
    %v5435 = vadd.f32 %v5378, %v5434
    %v5436 = vpop.f32.mrb[0].mxu0
    %v5437 = vpop.f32.mrb[0].mxu0
    %v5438 = vadd.f32 %v5381, %v5437
    %v5439 = vpop.f32.mrb[0].mxu0
    %5440 = vmatprep.mubr.bf16.mxu0 %v1684
    %5441 = vmatmul.mubr.bf16.gmra.mrb[0].mxu0 %v1683
    %v5442 = vpop.f32.mrb[0].mxu0
    %v5443 = vadd.f32 %v5386, %v5442
    %v5444 = vpop.f32.mrb[0].mxu0
    %v5445 = vpop.f32.mrb[0].mxu0
    %v5446 = vadd.f32 %v5389, %v5445
    %v5447 = vpop.f32.mrb[0].mxu0
    %5448 = vdwg.mxu0
    %5449 = vmatprep.subr.bf16.mxu0 %v2646
    %5450 = vmatpush1.bf16.xpose.msra.mxu0 %v2645
    %5451 = vmatprep.subr.bf16.mxu0 %v2742
    %5452 = vmatpush1.bf16.xpose.msra.mxu0 %v2741
    %5453 = vmatprep.subr.bf16.mxu0 0
    %5454 = vmatpush1.bf16.xpose.msra.mxu0 0
    %5455 = vmatprep.subr.bf16.mxu0 0
    %5456 = vmatpush1.bf16.xpose.msra.mxu0 0
    %5457 = vmatprep.subr.bf16.mxu0 0
    %5458 = vmatpush1.bf16.xpose.msra.mxu0 0
    %5459 = vmatprep.subr.bf16.mxu0 0
    %5460 = vmatpush1.bf16.xpose.msra.mxu0 0
    %5461 = vmatprep.subr.bf16.mxu0 0
    %5462 = vmatpush1.bf16.xpose.msra.mxu0 0
    %5463 = vmatprep.subr.bf16.mxu0 0
    %5464 = vmatpush1.bf16.xpose.msra.mxu0 0
    %5465 = vmatprep.subr.bf16.mxu0 0
    %5466 = vmatpush1.bf16.xpose.msra.mxu0 0
    %5467 = vmatprep.subr.bf16.mxu0 0
    %5468 = vmatpush1.bf16.xpose.msra.mxu0 0
    %5469 = vmatprep.subr.bf16.mxu0 0
    %5470 = vmatpush1.bf16.xpose.msra.mxu0 0
    %5471 = vmatprep.subr.bf16.mxu0 0
    %5472 = vmatpush1.bf16.xpose.msra.mxu0 0
    %5473 = vmatprep.subr.bf16.mxu0 0
    %5474 = vmatpush1.bf16.xpose.msra.mxu0 0
    %5475 = vmatprep.subr.bf16.mxu0 0
    %5476 = vmatpush1.bf16.xpose.msra.mxu0 0
    %5477 = vmatprep.subr.bf16.mxu0 0
    %5478 = vmatpush1.bf16.xpose.msra.mxu0 0
    %5479 = vmatprep.subr.bf16.mxu0 0
    %5480 = vmatpush1.bf16.xpose.msra.mxu0 0
    %5481 = vmatprep.mubr.bf16.mxu0 %v1494
    %5482 = vmatmul.mubr.bf16.gmra.mrb[0].mxu0 %v1493
    %v5483 = vpop.f32.mrb[0].mxu0
    %v5484 = vadd.f32 %v5427, %v5483
    %v5485 = vpop.f32.mrb[0].mxu0
    %v5486 = vpop.f32.mrb[0].mxu0
    %v5487 = vadd.f32 %v5430, %v5486
    %v5488 = vpop.f32.mrb[0].mxu0
    %5489 = vmatprep.mubr.bf16.mxu0 %v1590
    %5490 = vmatmul.mubr.bf16.gmra.mrb[0].mxu0 %v1589
    %v5491 = vpop.f32.mrb[0].mxu0
    %v5492 = vadd.f32 %v5435, %v5491
    %v5493 = vpop.f32.mrb[0].mxu0
    %v5494 = vpop.f32.mrb[0].mxu0
    %v5495 = vadd.f32 %v5438, %v5494
    %v5496 = vpop.f32.mrb[0].mxu0
    %5497 = vmatprep.mubr.bf16.mxu0 %v1686
    %5498 = vmatmul.mubr.bf16.gmra.mrb[0].mxu0 %v1685
    %v5499 = vpop.f32.mrb[0].mxu0
    %v5500 = vadd.f32 %v5443, %v5499
    %v5501 = vpop.f32.mrb[0].mxu0
    %v5502 = vpop.f32.mrb[0].mxu0
    %v5503 = vadd.f32 %v5446, %v5502
    %v5504 = vpop.f32.mrb[0].mxu0
    %5505 = vdwg.mxu0
    %5506 = vmatprep.subr.bf16.mxu0 %v2648
    %5507 = vmatpush1.bf16.xpose.msra.mxu0 %v2647
    %5508 = vmatprep.subr.bf16.mxu0 %v2744
    %5509 = vmatpush1.bf16.xpose.msra.mxu0 %v2743
    %5510 = vmatprep.subr.bf16.mxu0 0
    %5511 = vmatpush1.bf16.xpose.msra.mxu0 0
    %5512 = vmatprep.subr.bf16.mxu0 0
    %5513 = vmatpush1.bf16.xpose.msra.mxu0 0
    %5514 = vmatprep.subr.bf16.mxu0 0
    %5515 = vmatpush1.bf16.xpose.msra.mxu0 0
    %5516 = vmatprep.subr.bf16.mxu0 0
    %5517 = vmatpush1.bf16.xpose.msra.mxu0 0
    %5518 = vmatprep.subr.bf16.mxu0 0
    %5519 = vmatpush1.bf16.xpose.msra.mxu0 0
    %5520 = vmatprep.subr.bf16.mxu0 0
    %5521 = vmatpush1.bf16.xpose.msra.mxu0 0
    %5522 = vmatprep.subr.bf16.mxu0 0
    %5523 = vmatpush1.bf16.xpose.msra.mxu0 0
    %5524 = vmatprep.subr.bf16.mxu0 0
    %5525 = vmatpush1.bf16.xpose.msra.mxu0 0
    %5526 = vmatprep.subr.bf16.mxu0 0
    %5527 = vmatpush1.bf16.xpose.msra.mxu0 0
    %5528 = vmatprep.subr.bf16.mxu0 0
    %5529 = vmatpush1.bf16.xpose.msra.mxu0 0
    %5530 = vmatprep.subr.bf16.mxu0 0
    %5531 = vmatpush1.bf16.xpose.msra.mxu0 0
    %5532 = vmatprep.subr.bf16.mxu0 0
    %5533 = vmatpush1.bf16.xpose.msra.mxu0 0
    %5534 = vmatprep.subr.bf16.mxu0 0
    %5535 = vmatpush1.bf16.xpose.msra.mxu0 0
    %5536 = vmatprep.subr.bf16.mxu0 0
    %5537 = vmatpush1.bf16.xpose.msra.mxu0 0
    %5538 = vmatprep.mubr.bf16.mxu0 %v1496
    %5539 = vmatmul.mubr.bf16.gmra.mrb[0].mxu0 %v1495
    %v5540 = vpop.f32.mrb[0].mxu0
    %v5541 = vadd.f32 %v5484, %v5540
    %v5542 = vpop.f32.mrb[0].mxu0
    %v5543 = vpop.f32.mrb[0].mxu0
    %v5544 = vadd.f32 %v5487, %v5543
    %v5545 = vpop.f32.mrb[0].mxu0
    %5546 = vmatprep.mubr.bf16.mxu0 %v1592
    %5547 = vmatmul.mubr.bf16.gmra.mrb[0].mxu0 %v1591
    %v5548 = vpop.f32.mrb[0].mxu0
    %v5549 = vadd.f32 %v5492, %v5548
    %v5550 = vpop.f32.mrb[0].mxu0
    %v5551 = vpop.f32.mrb[0].mxu0
    %v5552 = vadd.f32 %v5495, %v5551
    %v5553 = vpop.f32.mrb[0].mxu0
    %5554 = vmatprep.mubr.bf16.mxu0 %v1688
    %5555 = vmatmul.mubr.bf16.gmra.mrb[0].mxu0 %v1687
    %v5556 = vpop.f32.mrb[0].mxu0
    %v5557 = vadd.f32 %v5500, %v5556
    %v5558 = vpop.f32.mrb[0].mxu0
    %v5559 = vpop.f32.mrb[0].mxu0
    %v5560 = vadd.f32 %v5503, %v5559
    %v5561 = vpop.f32.mrb[0].mxu0
    %5562 = vdwg.mxu0
    %5563 = vmatprep.subr.bf16.mxu0 %v2650
    %5564 = vmatpush1.bf16.xpose.msra.mxu0 %v2649
    %5565 = vmatprep.subr.bf16.mxu0 %v2746
    %5566 = vmatpush1.bf16.xpose.msra.mxu0 %v2745
    %5567 = vmatprep.subr.bf16.mxu0 0
    %5568 = vmatpush1.bf16.xpose.msra.mxu0 0
    %5569 = vmatprep.subr.bf16.mxu0 0
    %5570 = vmatpush1.bf16.xpose.msra.mxu0 0
    %5571 = vmatprep.subr.bf16.mxu0 0
    %5572 = vmatpush1.bf16.xpose.msra.mxu0 0
    %5573 = vmatprep.subr.bf16.mxu0 0
    %5574 = vmatpush1.bf16.xpose.msra.mxu0 0
    %5575 = vmatprep.subr.bf16.mxu0 0
    %5576 = vmatpush1.bf16.xpose.msra.mxu0 0
    %5577 = vmatprep.subr.bf16.mxu0 0
    %5578 = vmatpush1.bf16.xpose.msra.mxu0 0
    %5579 = vmatprep.subr.bf16.mxu0 0
    %5580 = vmatpush1.bf16.xpose.msra.mxu0 0
    %5581 = vmatprep.subr.bf16.mxu0 0
    %5582 = vmatpush1.bf16.xpose.msra.mxu0 0
    %5583 = vmatprep.subr.bf16.mxu0 0
    %5584 = vmatpush1.bf16.xpose.msra.mxu0 0
    %5585 = vmatprep.subr.bf16.mxu0 0
    %5586 = vmatpush1.bf16.xpose.msra.mxu0 0
    %5587 = vmatprep.subr.bf16.mxu0 0
    %5588 = vmatpush1.bf16.xpose.msra.mxu0 0
    %5589 = vmatprep.subr.bf16.mxu0 0
    %5590 = vmatpush1.bf16.xpose.msra.mxu0 0
    %5591 = vmatprep.subr.bf16.mxu0 0
    %5592 = vmatpush1.bf16.xpose.msra.mxu0 0
    %5593 = vmatprep.subr.bf16.mxu0 0
    %5594 = vmatpush1.bf16.xpose.msra.mxu0 0
    %5595 = vmatprep.mubr.bf16.mxu0 %v1498
    %5596 = vmatmul.mubr.bf16.gmra.mrb[0].mxu0 %v1497
    %v5597 = vpop.f32.mrb[0].mxu0
    %v5598 = vadd.f32 %v5541, %v5597
    %v5599 = vpop.f32.mrb[0].mxu0
    %v5600 = vpop.f32.mrb[0].mxu0
    %v5601 = vadd.f32 %v5544, %v5600
    %v5602 = vpop.f32.mrb[0].mxu0
    %5603 = vmatprep.mubr.bf16.mxu0 %v1594
    %5604 = vmatmul.mubr.bf16.gmra.mrb[0].mxu0 %v1593
    %v5605 = vpop.f32.mrb[0].mxu0
    %v5606 = vadd.f32 %v5549, %v5605
    %v5607 = vpop.f32.mrb[0].mxu0
    %v5608 = vpop.f32.mrb[0].mxu0
    %v5609 = vadd.f32 %v5552, %v5608
    %v5610 = vpop.f32.mrb[0].mxu0
    %5611 = vmatprep.mubr.bf16.mxu0 %v1690
    %5612 = vmatmul.mubr.bf16.gmra.mrb[0].mxu0 %v1689
    %v5613 = vpop.f32.mrb[0].mxu0
    %v5614 = vadd.f32 %v5557, %v5613
    %v5615 = vpop.f32.mrb[0].mxu0
    %v5616 = vpop.f32.mrb[0].mxu0
    %v5617 = vadd.f32 %v5560, %v5616
    %v5618 = vpop.f32.mrb[0].mxu0
    %5619 = vdwg.mxu0
    %5620 = vmatprep.subr.bf16.mxu0 %v2652
    %5621 = vmatpush1.bf16.xpose.msra.mxu0 %v2651
    %5622 = vmatprep.subr.bf16.mxu0 %v2748
    %5623 = vmatpush1.bf16.xpose.msra.mxu0 %v2747
    %5624 = vmatprep.subr.bf16.mxu0 0
    %5625 = vmatpush1.bf16.xpose.msra.mxu0 0
    %5626 = vmatprep.subr.bf16.mxu0 0
    %5627 = vmatpush1.bf16.xpose.msra.mxu0 0
    %5628 = vmatprep.subr.bf16.mxu0 0
    %5629 = vmatpush1.bf16.xpose.msra.mxu0 0
    %5630 = vmatprep.subr.bf16.mxu0 0
    %5631 = vmatpush1.bf16.xpose.msra.mxu0 0
    %5632 = vmatprep.subr.bf16.mxu0 0
    %5633 = vmatpush1.bf16.xpose.msra.mxu0 0
    %5634 = vmatprep.subr.bf16.mxu0 0
    %5635 = vmatpush1.bf16.xpose.msra.mxu0 0
    %5636 = vmatprep.subr.bf16.mxu0 0
    %5637 = vmatpush1.bf16.xpose.msra.mxu0 0
    %5638 = vmatprep.subr.bf16.mxu0 0
    %5639 = vmatpush1.bf16.xpose.msra.mxu0 0
    %5640 = vmatprep.subr.bf16.mxu0 0
    %5641 = vmatpush1.bf16.xpose.msra.mxu0 0
    %5642 = vmatprep.subr.bf16.mxu0 0
    %5643 = vmatpush1.bf16.xpose.msra.mxu0 0
    %5644 = vmatprep.subr.bf16.mxu0 0
    %5645 = vmatpush1.bf16.xpose.msra.mxu0 0
    %5646 = vmatprep.subr.bf16.mxu0 0
    %5647 = vmatpush1.bf16.xpose.msra.mxu0 0
    %5648 = vmatprep.subr.bf16.mxu0 0
    %5649 = vmatpush1.bf16.xpose.msra.mxu0 0
    %5650 = vmatprep.subr.bf16.mxu0 0
    %5651 = vmatpush1.bf16.xpose.msra.mxu0 0
    %5652 = vmatprep.mubr.bf16.mxu0 %v1500
    %5653 = vmatmul.mubr.bf16.gmra.mrb[0].mxu0 %v1499
    %v5654 = vpop.f32.mrb[0].mxu0
    %v5655 = vadd.f32 %v5598, %v5654
    %v5656 = vpop.f32.mrb[0].mxu0
    %v5657 = vpop.f32.mrb[0].mxu0
    %v5658 = vadd.f32 %v5601, %v5657
    %v5659 = vpop.f32.mrb[0].mxu0
    %5660 = vmatprep.mubr.bf16.mxu0 %v1596
    %5661 = vmatmul.mubr.bf16.gmra.mrb[0].mxu0 %v1595
    %v5662 = vpop.f32.mrb[0].mxu0
    %v5663 = vadd.f32 %v5606, %v5662
    %v5664 = vpop.f32.mrb[0].mxu0
    %v5665 = vpop.f32.mrb[0].mxu0
    %v5666 = vadd.f32 %v5609, %v5665
    %v5667 = vpop.f32.mrb[0].mxu0
    %5668 = vmatprep.mubr.bf16.mxu0 %v1692
    %5669 = vmatmul.mubr.bf16.gmra.mrb[0].mxu0 %v1691
    %v5670 = vpop.f32.mrb[0].mxu0
    %v5671 = vadd.f32 %v5614, %v5670
    %v5672 = vpop.f32.mrb[0].mxu0
    %v5673 = vpop.f32.mrb[0].mxu0
    %v5674 = vadd.f32 %v5617, %v5673
    %v5675 = vpop.f32.mrb[0].mxu0
    %5676 = vdwg.mxu0
    %v5677 = vmax.f32 %v5655, 0.0
    %v5678 = vmax.f32 %v5658, 0.0
    %v5679 = vmax.f32 %v5663, 0.0
    %v5680 = vmax.f32 %v5666, 0.0
    %v5681 = vmax.f32 %v5671, 0.0
    %v5682 = vmax.f32 %v5674, 0.0
    %v5683 = vlaneseq
    %v5684 = vshrl.u32 %v5683, 7
    %v5685 = vadd.s32 %v5684, 8
    %v5686 = vadd.s32 %v5684, 16
    %v5687 = vlaneseq
    %v5688 = vand.u32 %v5687, 127
    %v5689 = vmul.u32 %v5684, 2
    %v5690 = vmul.u32 %v5685, 2
    %v5691 = vmul.u32 %v5686, 2
    %vm5692 = vcmp.eq.s32.totalorder %v5688, %v5689
    %vm5693 = vcmp.eq.s32.totalorder %v5688, %v5690
    %vm5694 = vcmp.eq.s32.totalorder %v5688, %v5691
    %v5695 = vsel %vm5692, 1, 0
    %v5696 = vsel %vm5693, 1, 0
    %v5697 = vsel %vm5694, 1, 0
    %v5698 = vcvt.s32.f32 %v5695
    %v5699 = vcvt.s32.f32 %v5696
    %v5700 = vcvt.s32.f32 %v5697
    %v5701 = vadd.s32 %v5689, 1
    %v5702 = vadd.s32 %v5690, 1
    %v5703 = vadd.s32 %v5691, 1
    %vm5704 = vcmp.eq.s32.totalorder %v5688, %v5701
    %vm5705 = vcmp.eq.s32.totalorder %v5688, %v5702
    %vm5706 = vcmp.eq.s32.totalorder %v5688, %v5703
    %v5707 = vsel %vm5704, 1, 0
    %v5708 = vsel %vm5705, 1, 0
    %v5709 = vsel %vm5706, 1, 0
    %v5710 = vcvt.s32.f32 %v5707
    %v5711 = vcvt.s32.f32 %v5708
    %v5712 = vcvt.s32.f32 %v5709
    %vm5713 = vcmask 392192
    %v5715 = vsel %vm5713, %v5698, 0
    %v5718 = vsel %vm5713, %v5699, 0
    %v5721 = vsel %vm5713, %v5700, 0
    %5723 = vmatprep.subr.mxu0 0.0
    %5724 = vmatpush1.msra.mxu0 %v5677
    %5725 = vmatprep.subr.mxu0 0.0
    %5726 = vmatpush1.msra.mxu0 %v5678
    %5727 = vmatprep.subr.mxu0 0.0
    %5728 = vmatpush1.msra.mxu0 %v5679
    %5729 = vmatprep.subr.mxu0 0.0
    %5730 = vmatpush1.msra.mxu0 %v5680
    %5731 = vmatprep.subr.mxu0 0.0
    %5732 = vmatpush1.msra.mxu0 %v5681
    %5733 = vmatprep.subr.mxu0 0.0
    %5734 = vmatpush1.msra.mxu0 %v5682
    %5735 = vmatprep.subr.mxu0 0.0
    %5736 = vmatpush1.msra.mxu0 0.0
    %5737 = vmatprep.subr.mxu0 0.0
    %5738 = vmatpush1.msra.mxu0 0.0
    %5739 = vmatprep.subr.mxu0 0.0
    %5740 = vmatpush1.msra.mxu0 0.0
    %5741 = vmatprep.subr.mxu0 0.0
    %5742 = vmatpush1.msra.mxu0 0.0
    %5743 = vmatprep.subr.mxu0 0.0
    %5744 = vmatpush1.msra.mxu0 0.0
    %5745 = vmatprep.subr.mxu0 0.0
    %5746 = vmatpush1.msra.mxu0 0.0
    %5747 = vmatprep.subr.mxu0 0.0
    %5748 = vmatpush1.msra.mxu0 0.0
    %5749 = vmatprep.subr.mxu0 0.0
    %5750 = vmatpush1.msra.mxu0 0.0
    %5751 = vmatprep.subr.mxu0 0.0
    %5752 = vmatpush1.msra.mxu0 0.0
    %5753 = vmatprep.subr.mxu0 0.0
    %5754 = vmatpush1.msra.mxu0 0.0
    %5755 = vmatprep.subr.mxu0 0.0
    %5756 = vmatpush1.msra.mxu0 0.0
    %5757 = vmatprep.subr.mxu0 0.0
    %5758 = vmatpush1.msra.mxu0 0.0
    %5759 = vmatprep.subr.mxu0 0.0
    %5760 = vmatpush1.msra.mxu0 0.0
    %5761 = vmatprep.subr.mxu0 0.0
    %5762 = vmatpush1.msra.mxu0 0.0
    %5763 = vmatprep.subr.mxu0 0.0
    %5764 = vmatpush1.msra.mxu0 0.0
    %5765 = vmatprep.subr.mxu0 0.0
    %5766 = vmatpush1.msra.mxu0 0.0
    %5767 = vmatprep.subr.mxu0 0.0
    %5768 = vmatpush1.msra.mxu0 0.0
    %5769 = vmatprep.subr.mxu0 0.0
    %5770 = vmatpush1.msra.mxu0 0.0
    %5771 = vmatprep.subr.mxu0 0.0
    %5772 = vmatpush1.msra.mxu0 0.0
    %5773 = vmatprep.subr.mxu0 0.0
    %5774 = vmatpush1.msra.mxu0 0.0
    %5775 = vmatprep.subr.mxu0 0.0
    %5776 = vmatpush1.msra.mxu0 0.0
    %5777 = vmatprep.subr.mxu0 0.0
    %5778 = vmatpush1.msra.mxu0 0.0
    %5779 = vmatprep.subr.mxu0 0.0
    %5780 = vmatpush1.msra.mxu0 0.0
    %5781 = vmatprep.subr.mxu0 0.0
    %5782 = vmatpush1.msra.mxu0 0.0
    %5783 = vmatprep.subr.mxu0 0.0
    %5784 = vmatpush1.msra.mxu0 0.0
    %5785 = vmatprep.subr.mxu0 0.0
    %5786 = vmatpush1.msra.mxu0 0.0
    %5787 = vmatprep.mubr.f32.mxu0 0.0
    %5788 = vmatmul.mubr.f32.gmra.mrb[0].mxu0 %v5715
    %v5789 = vpop.f32.mrb[0].mxu0
    %v5790 = vadd.f32 0.0, %v5789
    %v5791 = vpop.f32.mrb[0].mxu0
    %5792 = vmatprep.mubr.f32.mxu0 0.0
    %5793 = vmatmul.mubr.f32.gmra.mrb[0].mxu0 %v5718
    %v5794 = vpop.f32.mrb[0].mxu0
    %v5795 = vadd.f32 0.0, %v5794
    %v5796 = vpop.f32.mrb[0].mxu0
    %5797 = vmatprep.mubr.f32.mxu0 0.0
    %5798 = vmatmul.mubr.f32.gmra.mrb[0].mxu0 %v5721
    %v5799 = vpop.f32.mrb[0].mxu0
    %v5800 = vadd.f32 0.0, %v5799
    %v5801 = vpop.f32.mrb[0].mxu0
    %5802 = vdwg.mxu0
    %v5804 = vsel %vm5713, %v5710, 0
    %v5807 = vsel %vm5713, %v5711, 0
    %v5810 = vsel %vm5713, %v5712, 0
    %5812 = vmatprep.subr.mxu0 0.0
    %5813 = vmatpush1.msra.mxu0 %v5677
    %5814 = vmatprep.subr.mxu0 0.0
    %5815 = vmatpush1.msra.mxu0 %v5678
    %5816 = vmatprep.subr.mxu0 0.0
    %5817 = vmatpush1.msra.mxu0 %v5679
    %5818 = vmatprep.subr.mxu0 0.0
    %5819 = vmatpush1.msra.mxu0 %v5680
    %5820 = vmatprep.subr.mxu0 0.0
    %5821 = vmatpush1.msra.mxu0 %v5681
    %5822 = vmatprep.subr.mxu0 0.0
    %5823 = vmatpush1.msra.mxu0 %v5682
    %5824 = vmatprep.subr.mxu0 0.0
    %5825 = vmatpush1.msra.mxu0 0.0
    %5826 = vmatprep.subr.mxu0 0.0
    %5827 = vmatpush1.msra.mxu0 0.0
    %5828 = vmatprep.subr.mxu0 0.0
    %5829 = vmatpush1.msra.mxu0 0.0
    %5830 = vmatprep.subr.mxu0 0.0
    %5831 = vmatpush1.msra.mxu0 0.0
    %5832 = vmatprep.subr.mxu0 0.0
    %5833 = vmatpush1.msra.mxu0 0.0
    %5834 = vmatprep.subr.mxu0 0.0
    %5835 = vmatpush1.msra.mxu0 0.0
    %5836 = vmatprep.subr.mxu0 0.0
    %5837 = vmatpush1.msra.mxu0 0.0
    %5838 = vmatprep.subr.mxu0 0.0
    %5839 = vmatpush1.msra.mxu0 0.0
    %5840 = vmatprep.subr.mxu0 0.0
    %5841 = vmatpush1.msra.mxu0 0.0
    %5842 = vmatprep.subr.mxu0 0.0
    %5843 = vmatpush1.msra.mxu0 0.0
    %5844 = vmatprep.subr.mxu0 0.0
    %5845 = vmatpush1.msra.mxu0 0.0
    %5846 = vmatprep.subr.mxu0 0.0
    %5847 = vmatpush1.msra.mxu0 0.0
    %5848 = vmatprep.subr.mxu0 0.0
    %5849 = vmatpush1.msra.mxu0 0.0
    %5850 = vmatprep.subr.mxu0 0.0
    %5851 = vmatpush1.msra.mxu0 0.0
    %5852 = vmatprep.subr.mxu0 0.0
    %5853 = vmatpush1.msra.mxu0 0.0
    %5854 = vmatprep.subr.mxu0 0.0
    %5855 = vmatpush1.msra.mxu0 0.0
    %5856 = vmatprep.subr.mxu0 0.0
    %5857 = vmatpush1.msra.mxu0 0.0
    %5858 = vmatprep.subr.mxu0 0.0
    %5859 = vmatpush1.msra.mxu0 0.0
    %5860 = vmatprep.subr.mxu0 0.0
    %5861 = vmatpush1.msra.mxu0 0.0
    %5862 = vmatprep.subr.mxu0 0.0
    %5863 = vmatpush1.msra.mxu0 0.0
    %5864 = vmatprep.subr.mxu0 0.0
    %5865 = vmatpush1.msra.mxu0 0.0
    %5866 = vmatprep.subr.mxu0 0.0
    %5867 = vmatpush1.msra.mxu0 0.0
    %5868 = vmatprep.subr.mxu0 0.0
    %5869 = vmatpush1.msra.mxu0 0.0
    %5870 = vmatprep.subr.mxu0 0.0
    %5871 = vmatpush1.msra.mxu0 0.0
    %5872 = vmatprep.subr.mxu0 0.0
    %5873 = vmatpush1.msra.mxu0 0.0
    %5874 = vmatprep.subr.mxu0 0.0
    %5875 = vmatpush1.msra.mxu0 0.0
    %5876 = vmatprep.mubr.f32.mxu0 0.0
    %5877 = vmatmul.mubr.f32.gmra.mrb[0].mxu0 %v5804
    %v5878 = vpop.f32.mrb[0].mxu0
    %v5879 = vadd.f32 0.0, %v5878
    %v5880 = vpop.f32.mrb[0].mxu0
    %5881 = vmatprep.mubr.f32.mxu0 0.0
    %5882 = vmatmul.mubr.f32.gmra.mrb[0].mxu0 %v5807
    %v5883 = vpop.f32.mrb[0].mxu0
    %v5884 = vadd.f32 0.0, %v5883
    %v5885 = vpop.f32.mrb[0].mxu0
    %5886 = vmatprep.mubr.f32.mxu0 0.0
    %5887 = vmatmul.mubr.f32.gmra.mrb[0].mxu0 %v5810
    %v5888 = vpop.f32.mrb[0].mxu0
    %v5889 = vadd.f32 0.0, %v5888
    %v5890 = vpop.f32.mrb[0].mxu0
    %5891 = vdwg.mxu0
    %v5892 = vmax.f32 %v5790, %v5879
    %v5893 = vmax.f32 %v5795, %v5884
    %v5894 = vmax.f32 %v5800, %v5889
    %v5895 = vadd.s32 %v5684, 24
    %v5896 = vmul.u32 %v5688, 2
    %vm5897 = vcmp.eq.s32.totalorder %v5684, %v5896
    %vm5898 = vcmp.eq.s32.totalorder %v5685, %v5896
    %vm5899 = vcmp.eq.s32.totalorder %v5686, %v5896
    %vm5900 = vcmp.eq.s32.totalorder %v5895, %v5896
    %v5901 = vsel %vm5897, 1, 0
    %v5902 = vsel %vm5898, 1, 0
    %v5903 = vsel %vm5899, 1, 0
    %v5904 = vsel %vm5900, 1, 0
    %v5905 = vcvt.s32.f32 %v5901
    %v5906 = vcvt.s32.f32 %v5902
    %v5907 = vcvt.s32.f32 %v5903
    %v5908 = vcvt.s32.f32 %v5904
    %v5909 = vadd.s32 %v5896, 1
    %vm5910 = vcmp.eq.s32.totalorder %v5684, %v5909
    %vm5911 = vcmp.eq.s32.totalorder %v5685, %v5909
    %vm5912 = vcmp.eq.s32.totalorder %v5686, %v5909
    %vm5913 = vcmp.eq.s32.totalorder %v5895, %v5909
    %v5914 = vsel %vm5910, 1, 0
    %v5915 = vsel %vm5911, 1, 0
    %v5916 = vsel %vm5912, 1, 0
    %v5917 = vsel %vm5913, 1, 0
    %v5918 = vcvt.s32.f32 %v5914
    %v5919 = vcvt.s32.f32 %v5915
    %v5920 = vcvt.s32.f32 %v5916
    %v5921 = vcvt.s32.f32 %v5917
    %vm5922 = vcmask 244736
    %v5924 = vsel %vm5922, %v5892, 0
    %v5927 = vsel %vm5922, %v5893, 0
    %v5930 = vsel %vm5922, %v5894, 0
    %vm5932 = vcmask 1045504
    %v5934 = vsel %vm5932, %v5908, 0
    %5936 = vmatprep.subr.mxu0 0.0
    %5937 = vmatpush1.msra.mxu0 %v5905
    %5938 = vmatprep.subr.mxu0 0.0
    %5939 = vmatpush1.msra.mxu0 %v5906
    %5940 = vmatprep.subr.mxu0 0.0
    %5941 = vmatpush1.msra.mxu0 %v5907
    %5942 = vmatprep.subr.mxu0 0.0
    %5943 = vmatpush1.msra.mxu0 %v5934
    %5944 = vmatprep.subr.mxu0 0.0
    %5945 = vmatpush1.msra.mxu0 0.0
    %5946 = vmatprep.subr.mxu0 0.0
    %5947 = vmatpush1.msra.mxu0 0.0
    %5948 = vmatprep.subr.mxu0 0.0
    %5949 = vmatpush1.msra.mxu0 0.0
    %5950 = vmatprep.subr.mxu0 0.0
    %5951 = vmatpush1.msra.mxu0 0.0
    %5952 = vmatprep.subr.mxu0 0.0
    %5953 = vmatpush1.msra.mxu0 0.0
    %5954 = vmatprep.subr.mxu0 0.0
    %5955 = vmatpush1.msra.mxu0 0.0
    %5956 = vmatprep.subr.mxu0 0.0
    %5957 = vmatpush1.msra.mxu0 0.0
    %5958 = vmatprep.subr.mxu0 0.0
    %5959 = vmatpush1.msra.mxu0 0.0
    %5960 = vmatprep.subr.mxu0 0.0
    %5961 = vmatpush1.msra.mxu0 0.0
    %5962 = vmatprep.subr.mxu0 0.0
    %5963 = vmatpush1.msra.mxu0 0.0
    %5964 = vmatprep.subr.mxu0 0.0
    %5965 = vmatpush1.msra.mxu0 0.0
    %5966 = vmatprep.subr.mxu0 0.0
    %5967 = vmatpush1.msra.mxu0 0.0
    %5968 = vmatprep.subr.mxu0 0.0
    %5969 = vmatpush1.msra.mxu0 0.0
    %5970 = vmatprep.subr.mxu0 0.0
    %5971 = vmatpush1.msra.mxu0 0.0
    %5972 = vmatprep.subr.mxu0 0.0
    %5973 = vmatpush1.msra.mxu0 0.0
    %5974 = vmatprep.subr.mxu0 0.0
    %5975 = vmatpush1.msra.mxu0 0.0
    %5976 = vmatprep.subr.mxu0 0.0
    %5977 = vmatpush1.msra.mxu0 0.0
    %5978 = vmatprep.subr.mxu0 0.0
    %5979 = vmatpush1.msra.mxu0 0.0
    %5980 = vmatprep.subr.mxu0 0.0
    %5981 = vmatpush1.msra.mxu0 0.0
    %5982 = vmatprep.subr.mxu0 0.0
    %5983 = vmatpush1.msra.mxu0 0.0
    %5984 = vmatprep.subr.mxu0 0.0
    %5985 = vmatpush1.msra.mxu0 0.0
    %5986 = vmatprep.subr.mxu0 0.0
    %5987 = vmatpush1.msra.mxu0 0.0
    %5988 = vmatprep.subr.mxu0 0.0
    %5989 = vmatpush1.msra.mxu0 0.0
    %5990 = vmatprep.subr.mxu0 0.0
    %5991 = vmatpush1.msra.mxu0 0.0
    %5992 = vmatprep.subr.mxu0 0.0
    %5993 = vmatpush1.msra.mxu0 0.0
    %5994 = vmatprep.subr.mxu0 0.0
    %5995 = vmatpush1.msra.mxu0 0.0
    %5996 = vmatprep.subr.mxu0 0.0
    %5997 = vmatpush1.msra.mxu0 0.0
    %5998 = vmatprep.subr.mxu0 0.0
    %5999 = vmatpush1.msra.mxu0 0.0
    %6000 = vmatprep.mubr.f32.mxu0 0.0
    %6001 = vmatmul.mubr.f32.gmra.mrb[0].mxu0 %v5924
    %v6002 = vpop.f32.mrb[0].mxu0
    %v6003 = vadd.f32 0.0, %v6002
    %v6004 = vpop.f32.mrb[0].mxu0
    %6005 = vmatprep.mubr.f32.mxu0 0.0
    %6006 = vmatmul.mubr.f32.gmra.mrb[0].mxu0 %v5927
    %v6007 = vpop.f32.mrb[0].mxu0
    %v6008 = vadd.f32 0.0, %v6007
    %v6009 = vpop.f32.mrb[0].mxu0
    %6010 = vmatprep.mubr.f32.mxu0 0.0
    %6011 = vmatmul.mubr.f32.gmra.mrb[0].mxu0 %v5930
    %v6012 = vpop.f32.mrb[0].mxu0
    %v6013 = vadd.f32 0.0, %v6012
    %v6014 = vpop.f32.mrb[0].mxu0
    %6015 = vdwg.mxu0
    %v6017 = vsel %vm5932, %v5921, 0
    %6019 = vmatprep.subr.mxu0 0.0
    %6020 = vmatpush1.msra.mxu0 %v5918
    %6021 = vmatprep.subr.mxu0 0.0
    %6022 = vmatpush1.msra.mxu0 %v5919
    %6023 = vmatprep.subr.mxu0 0.0
    %6024 = vmatpush1.msra.mxu0 %v5920
    %6025 = vmatprep.subr.mxu0 0.0
    %6026 = vmatpush1.msra.mxu0 %v6017
    %6027 = vmatprep.subr.mxu0 0.0
    %6028 = vmatpush1.msra.mxu0 0.0
    %6029 = vmatprep.subr.mxu0 0.0
    %6030 = vmatpush1.msra.mxu0 0.0
    %6031 = vmatprep.subr.mxu0 0.0
    %6032 = vmatpush1.msra.mxu0 0.0
    %6033 = vmatprep.subr.mxu0 0.0
    %6034 = vmatpush1.msra.mxu0 0.0
    %6035 = vmatprep.subr.mxu0 0.0
    %6036 = vmatpush1.msra.mxu0 0.0
    %6037 = vmatprep.subr.mxu0 0.0
    %6038 = vmatpush1.msra.mxu0 0.0
    %6039 = vmatprep.subr.mxu0 0.0
    %6040 = vmatpush1.msra.mxu0 0.0
    %6041 = vmatprep.subr.mxu0 0.0
    %6042 = vmatpush1.msra.mxu0 0.0
    %6043 = vmatprep.subr.mxu0 0.0
    %6044 = vmatpush1.msra.mxu0 0.0
    %6045 = vmatprep.subr.mxu0 0.0
    %6046 = vmatpush1.msra.mxu0 0.0
    %6047 = vmatprep.subr.mxu0 0.0
    %6048 = vmatpush1.msra.mxu0 0.0
    %6049 = vmatprep.subr.mxu0 0.0
    %6050 = vmatpush1.msra.mxu0 0.0
    %6051 = vmatprep.subr.mxu0 0.0
    %6052 = vmatpush1.msra.mxu0 0.0
    %6053 = vmatprep.subr.mxu0 0.0
    %6054 = vmatpush1.msra.mxu0 0.0
    %6055 = vmatprep.subr.mxu0 0.0
    %6056 = vmatpush1.msra.mxu0 0.0
    %6057 = vmatprep.subr.mxu0 0.0
    %6058 = vmatpush1.msra.mxu0 0.0
    %6059 = vmatprep.subr.mxu0 0.0
    %6060 = vmatpush1.msra.mxu0 0.0
    %6061 = vmatprep.subr.mxu0 0.0
    %6062 = vmatpush1.msra.mxu0 0.0
    %6063 = vmatprep.subr.mxu0 0.0
    %6064 = vmatpush1.msra.mxu0 0.0
    %6065 = vmatprep.subr.mxu0 0.0
    %6066 = vmatpush1.msra.mxu0 0.0
    %6067 = vmatprep.subr.mxu0 0.0
    %6068 = vmatpush1.msra.mxu0 0.0
    %6069 = vmatprep.subr.mxu0 0.0
    %6070 = vmatpush1.msra.mxu0 0.0
    %6071 = vmatprep.subr.mxu0 0.0
    %6072 = vmatpush1.msra.mxu0 0.0
    %6073 = vmatprep.subr.mxu0 0.0
    %6074 = vmatpush1.msra.mxu0 0.0
    %6075 = vmatprep.subr.mxu0 0.0
    %6076 = vmatpush1.msra.mxu0 0.0
    %6077 = vmatprep.subr.mxu0 0.0
    %6078 = vmatpush1.msra.mxu0 0.0
    %6079 = vmatprep.subr.mxu0 0.0
    %6080 = vmatpush1.msra.mxu0 0.0
    %6081 = vmatprep.subr.mxu0 0.0
    %6082 = vmatpush1.msra.mxu0 0.0
    %6083 = vmatprep.mubr.f32.mxu0 0.0
    %6084 = vmatmul.mubr.f32.gmra.mrb[0].mxu0 %v5924
    %v6085 = vpop.f32.mrb[0].mxu0
    %v6086 = vadd.f32 0.0, %v6085
    %v6087 = vpop.f32.mrb[0].mxu0
    %6088 = vmatprep.mubr.f32.mxu0 0.0
    %6089 = vmatmul.mubr.f32.gmra.mrb[0].mxu0 %v5927
    %v6090 = vpop.f32.mrb[0].mxu0
    %v6091 = vadd.f32 0.0, %v6090
    %v6092 = vpop.f32.mrb[0].mxu0
    %6093 = vmatprep.mubr.f32.mxu0 0.0
    %6094 = vmatmul.mubr.f32.gmra.mrb[0].mxu0 %v5930
    %v6095 = vpop.f32.mrb[0].mxu0
    %v6096 = vadd.f32 0.0, %v6095
    %v6097 = vpop.f32.mrb[0].mxu0
    %6098 = vdwg.mxu0
    %v6099 = vmax.f32 %v6003, %v6086
    %v6100 = vmax.f32 %v6008, %v6091
    %v6101 = vmax.f32 %v6013, %v6096
    %vm6102 = vcmask 121856
    %6103 = vst.msk [vmem:[%s3] sm:$0xff] %vm6102, %v6099
    %6104 = vst.msk [vmem:[%s3 + $0x8] sm:$0xff] %vm6102, %v6100
    %6105 = vst.msk [vmem:[%s3 + $0x10] sm:$0xff] %vm6102, %v6101
    // Predicated region
    $region26: #{tpu_custom_call.1} parent=1 // pred_check
      _
    $region27: #{tpu_custom_call.1} parent=1 // pred_check_branch
      %6107 = sbr.rel (0) target = $region29
    $region28: #{tpu_custom_call.1} parent=1 // pred_region
      _
    $region29: #{tpu_custom_call.1} parent=1 // pred_fallthru
      _
    // Predicated region
    $region30: #{tpu_custom_call.1} parent=1 // pred_check
      _
    $region31: #{tpu_custom_call.1} parent=1 // pred_check_branch
      %6109 = sbr.rel (0) target = $region33
    $region32: #{tpu_custom_call.1} parent=1 // pred_region
      _
    $region33: #{tpu_custom_call.1} parent=1 // pred_fallthru
      _
    %6110 = vsyncpa [#allocation3], 1
    %6111 = vsyncpa [#allocation5], 1

</llo_original>
